<compile_context>
chip_gen: v7x
topology: tpu7x:2x2x1
jax: 0.10.0
libtpu: 0.0.40
codegen_flags: <defaults>
</compile_context>

<pallas_src>
import math
import functools
import numpy as np

import jax
import jax.numpy as jnp
from jax import lax
from jax.experimental import pallas as pl
from jax.experimental.pallas import tpu as pltpu

D_MODEL = 32
N_LAYERS = 2
HEADS = 4
D_FF = 64
EPS = 1e-6
NEG_INF = -1e9


# ----------------------------------------------------------------------------
# Kernel: one grid step == one batch group (rows padded to max_s)
# ----------------------------------------------------------------------------
def _encoder_kernel(heads, lens_ref,
                    xyz_ref, feat_ref,
                    wp_ref, bp_ref,
                    wqkv_ref, bqkv_ref,
                    woh_ref, bo_ref,
                    w1_ref, b1_ref, w2_ref, b2_ref,
                    na1_ref, nb1_ref, na2_ref, nb2_ref,
                    nfa_ref, nfb_ref,
                    out_ref):
    g = pl.program_id(0)
    n_valid = lens_ref[g]                                  # int32 scalar (SMEM)

    xyz = xyz_ref[...].astype(jnp.float32)                 # (max_s, 3)
    feat = feat_ref[...].astype(jnp.float32)               # (max_s, D)
    max_s, D = feat.shape
    H = heads
    d_k = D // H
    scale = 1.0 / math.sqrt(d_k)
    n_layers = wqkv_ref.shape[0]
    bf16 = jnp.bfloat16

    row_ids = lax.broadcasted_iota(jnp.int32, (max_s, 1), 0)
    row_valid = row_ids < n_valid                          # (max_s, 1) bool
    key_valid = lax.broadcasted_iota(jnp.int32, (1, 1, max_s), 2) < n_valid

    def norm(x, alpha, bias):
        mean = jnp.mean(x, axis=-1, keepdims=True)
        # torch.std() is unbiased by default -> divide by (D - 1); eps outside sqrt
        var = jnp.sum((x - mean) ** 2, axis=-1, keepdims=True) * (1.0 / (D - 1))
        inv_std = pl.reciprocal(jnp.sqrt(var) + EPS, approx=True)   # EUP slot
        return alpha * (x - mean) * inv_std + bias

    def split_heads(t):        # (max_s, D) f32 -> (H, max_s, d_k) bf16
        # lane slices + leading-axis stack (chosen over a lane-split reshape
        # for Mosaic lowering safety); all subsequent matmuls are head-batched.
        return jnp.stack([t[:, h * d_k:(h + 1) * d_k] for h in range(H)],
                         axis=0).astype(bf16)

    # ---- positional embedding: xyz centered on the valid-row group mean ----
    inv_cnt = 1.0 / jnp.maximum(n_valid, 1).astype(jnp.float32)
    mean_xyz = jnp.sum(xyz * row_valid.astype(jnp.float32), axis=0,
                       keepdims=True) * inv_cnt
    pos = jnp.dot(xyz - mean_xyz, wp_ref[...],
                  preferred_element_type=jnp.float32) + bp_ref[...]
    x = feat + pos

    for l in range(n_layers):                              # static unroll
        # ------------------ multi-head self-attention -------------------
        x2 = norm(x, na1_ref[l], nb1_ref[l])
        qkv = jnp.dot(x2.astype(bf16), wqkv_ref[l],        # fused (D, 3D) matmul
                      preferred_element_type=jnp.float32) + bqkv_ref[l]
        q = split_heads(qkv[:, :D])
        k = split_heads(qkv[:, D:2 * D])
        v = split_heads(qkv[:, 2 * D:])

        # scores for all heads in one batched dot_general: (H, S, S)
        s = lax.dot_general(q, k, (((2,), (2,)), ((0,), (0,))),
                            preferred_element_type=jnp.float32) * scale
        s = jnp.where(key_valid, s, NEG_INF)               # mask padded keys
        s = s - jnp.max(s, axis=-1, keepdims=True)
        p = jnp.exp(s)
        p = p * pl.reciprocal(jnp.sum(p, axis=-1, keepdims=True), approx=True)

        # P @ V for all heads: (H, S, d_k)
        o = lax.dot_general(p.astype(bf16), v, (((2,), (1,)), ((0,), (0,))),
                            preferred_element_type=jnp.float32)
        # output projection folded per head (no lane concat): sum_h o_h @ Wo_h
        attn_h = lax.dot_general(o.astype(bf16), woh_ref[l],
                                 (((2,), (1,)), ((0,), (0,))),
                                 preferred_element_type=jnp.float32)  # (H,S,D)
        x = x + jnp.sum(attn_h, axis=0) + bo_ref[l]        # dropout == identity

        # ----------------------------- FFN -------------------------------
        x2 = norm(x, na2_ref[l], nb2_ref[l])
        h1 = jnp.maximum(
            jnp.dot(x2.astype(bf16), w1_ref[l],
                    preferred_element_type=jnp.float32) + b1_ref[l], 0.0)
        x = x + jnp.dot(h1.astype(bf16), w2_ref[l],
                        preferred_element_type=jnp.float32) + b2_ref[l]

    out = norm(x, nfa_ref[...], nfb_ref[...])
    out_ref[...] = jnp.where(row_valid, out, 0.0).astype(out_ref.dtype)


# ----------------------------------------------------------------------------
# Device-side wrapper: gather by batch_id, one gridded pallas_call, scatter back
# ----------------------------------------------------------------------------
@functools.partial(jax.jit, static_argnames=("heads", "batch_size", "max_s"))
def _encoder_forward(xyz, features, batch_ids, params, heads, batch_size, max_s):
    P, D = features.shape
    L = params["wq"].shape[0]
    d_k = D // heads
    bf16 = jnp.bfloat16

    # Kernel-layout weights (fused QKV, per-head Wo, bf16 matmul inputs).
    wqkv = jnp.concatenate([params["wq"], params["wk"], params["wv"]],
                           axis=-1).astype(bf16)                   # (L, D, 3D)
    bqkv = jnp.concatenate([params["bq"], params["bk"], params["bv"]],
                           axis=-1)[:, None, :]                    # (L, 1, 3D)
    woh = params["wo"].reshape(L, heads, d_k, D).astype(bf16)      # (L, H, dk, D)
    bo = params["bo"][:, None, :]
    w1 = params["w1"].astype(bf16)
    b1 = params["b1"][:, None, :]
    w2 = params["w2"].astype(bf16)
    b2 = params["b2"][:, None, :]
    na1 = params["na1"][:, None, :]
    nb1 = params["nb1"][:, None, :]
    na2 = params["na2"][:, None, :]
    nb2 = params["nb2"][:, None, :]
    weight_args = (params["wp"], params["bp"], wqkv, bqkv, woh, bo,
                   w1, b1, w2, b2, na1, nb1, na2, nb2,
                   params["nfa"], params["nfb"])

    # On-device gather into a group-contiguous padded layout (no host loop).
    bids = batch_ids.astype(jnp.int32)
    order = jnp.argsort(bids)                                      # stable
    sorted_bid = bids[order]
    counts = jnp.bincount(bids, length=batch_size).astype(jnp.int32)
    starts = jnp.cumsum(counts) - counts
    rank = jnp.arange(P, dtype=jnp.int32) - starts[sorted_bid]
    dest = sorted_bid * max_s + rank                               # (P,)

    xyz_pad = jnp.zeros((batch_size * max_s, 3), jnp.float32).at[dest].set(
        xyz[order].astype(jnp.float32))
    feat_pad = jnp.zeros((batch_size * max_s, D), jnp.float32).at[dest].set(
        features[order].astype(jnp.float32))

    def grp_spec(minor):
        return pl.BlockSpec((max_s, minor), lambda g, lens: (g, 0))

    def full_spec(a):
        nd = a.ndim
        return pl.BlockSpec(a.shape, lambda g, lens, nd=nd: (0,) * nd)

    in_specs = [grp_spec(3), grp_spec(D)] + [full_spec(a) for a in weight_args]

    out_pad = pl.pallas_call(
        functools.partial(_encoder_kernel, heads),
        out_shape=jax.ShapeDtypeStruct((batch_size * max_s, D), jnp.float32),
        grid_spec=pltpu.PrefetchScalarGridSpec(
            num_scalar_prefetch=1,
            grid=(batch_size,),
            in_specs=in_specs,
            out_specs=pl.BlockSpec((max_s, D), lambda g, lens: (g, 0)),
        ),
        compiler_params=pltpu.CompilerParams(
            dimension_semantics=("parallel",)),   # shards groups over TCs (v7x)
    )(counts, xyz_pad, feat_pad, *weight_args)

    # Scatter back to the original point order.
    out_sorted = out_pad[dest]
    return jnp.zeros_like(features).at[order].set(
        out_sorted.astype(features.dtype))


def transformer_encoder(xyz, features, batch_ids, params, heads):
    # Static metadata (like torch's .item()): number of groups and max group size.
    bids_np = np.asarray(batch_ids)
    batch_size = int(bids_np.max()) + 1
    max_group = int(np.bincount(bids_np, minlength=batch_size).max())
    max_s = max(8, ((max_group + 7) // 8) * 8)     # sublane-aligned padding
    return _encoder_forward(jnp.asarray(xyz), jnp.asarray(features),
                            jnp.asarray(bids_np, dtype=jnp.int32), params,
                            heads, batch_size, max_s)


# ----------------------------------------------------------------------------
# Deterministic parameter initialization (synthetic weights, no checkpoint)
# ----------------------------------------------------------------------------
def init_params(key, d_model, n_layers, heads, d_ff):
    ks = jax.random.split(key, 12)

    def w(k, shape, fan_in):
        return jax.random.normal(k, shape, jnp.float32) / math.sqrt(fan_in)

    return {
        "wp": w(ks[0], (3, d_model), 3),
        "bp": jnp.zeros((1, d_model), jnp.float32),
        "wq": w(ks[1], (n_layers, d_model, d_model), d_model),
        "bq": 0.01 * jax.random.normal(ks[2], (n_layers, d_model), jnp.float32),
        "wk": w(ks[3], (n_layers, d_model, d_model), d_model),
        "bk": jnp.zeros((n_layers, d_model), jnp.float32),
        "wv": w(ks[4], (n_layers, d_model, d_model), d_model),
        "bv": jnp.zeros((n_layers, d_model), jnp.float32),
        "wo": w(ks[5], (n_layers, d_model, d_model), d_model),
        "bo": jnp.zeros((n_layers, d_model), jnp.float32),
        "w1": w(ks[6], (n_layers, d_model, d_ff), d_model),
        "b1": 0.01 * jax.random.normal(ks[7], (n_layers, d_ff), jnp.float32),
        "w2": w(ks[8], (n_layers, d_ff, d_model), d_ff),
        "b2": jnp.zeros((n_layers, d_model), jnp.float32),
        "na1": jnp.ones((n_layers, d_model), jnp.float32),
        "nb1": jnp.zeros((n_layers, d_model), jnp.float32),
        "na2": jnp.ones((n_layers, d_model), jnp.float32),
        "nb2": jnp.zeros((n_layers, d_model), jnp.float32),
        "nfa": jnp.ones((1, d_model), jnp.float32),
        "nfb": jnp.zeros((1, d_model), jnp.float32),
    }


# ----------------------------------------------------------------------------
# Pure-numpy float64 reference mirroring the PyTorch forward
# ----------------------------------------------------------------------------
def reference_forward(xyz, features, batch_ids, params, heads):
    p = {k: np.asarray(v, np.float64) for k, v in params.items()}
    xyz = np.asarray(xyz, np.float64)
    features = np.asarray(features, np.float64)
    batch_ids = np.asarray(batch_ids)
    D = features.shape[1]
    d_k = D // heads
    out = np.zeros_like(features)

    def norm(x, a, b):
        mean = x.mean(-1, keepdims=True)
        var = ((x - mean) ** 2).sum(-1, keepdims=True) / (D - 1)
        return a * (x - mean) / (np.sqrt(var) + EPS) + b

    def softmax(x):
        x = x - x.max(-1, keepdims=True)
        e = np.exp(x)
        return e / e.sum(-1, keepdims=True)

    for i in range(int(batch_ids.max()) + 1):
        idx = np.nonzero(batch_ids == i)[0]
        if idx.size == 0:
            continue
        g_xyz = xyz[idx]
        c = g_xyz - g_xyz.mean(0, keepdims=True)
        x = features[idx] + c @ p["wp"] + p["bp"]
        for l in range(p["wq"].shape[0]):
            x2 = norm(x, p["na1"][l], p["nb1"][l])
            q = x2 @ p["wq"][l] + p["bq"][l]
            k = x2 @ p["wk"][l] + p["bk"][l]
            v = x2 @ p["wv"][l] + p["bv"][l]
            heads_out = []
            for h in range(heads):
                sl = slice(h * d_k, (h + 1) * d_k)
                s = (q[:, sl] @ k[:, sl].T) / math.sqrt(d_k)
                heads_out.append(softmax(s) @ v[:, sl])
            x = x + np.concatenate(heads_out, -1) @ p["wo"][l] + p["bo"][l]
            x2 = norm(x, p["na2"][l], p["nb2"][l])
            hdd = np.maximum(x2 @ p["w1"][l] + p["b1"][l], 0.0)
            x = x + hdd @ p["w2"][l] + p["b2"][l]
        out[idx] = norm(x, p["nfa"], p["nfb"])
    return out


if __name__ == "__main__":
    key = jax.random.PRNGKey(0)
    k1, k2, k3 = jax.random.split(key, 3)

    P = 16                                   # total number of points
    xyz = jax.random.normal(k1, (P, 3), jnp.float32)
    features = jax.random.normal(k2, (P, D_MODEL), jnp.float32)
    # two interleaved batch groups of 8 points each
    batch_ids = jnp.asarray(np.tile(np.array([0, 1], np.int32), P // 2))

    params = init_params(k3, D_MODEL, N_LAYERS, HEADS, D_FF)

    out = transformer_encoder(xyz, features, batch_ids, params, HEADS)
    out = jax.block_until_ready(out)

    ref = reference_forward(xyz, features, batch_ids, params, HEADS)
    assert out.shape == features.shape
    np.testing.assert_allclose(np.asarray(out, np.float64), ref,
                               rtol=3e-2, atol=3e-2)
    print("KERNEL_OK")
</pallas_src>

<mosaic_0001>
module attributes {stable_mosaic.version = 11 : i64} {
  func.func private @main(%arg0: i32) attributes {dimension_semantics = [#tpu.dimension_semantics<core_parallel>], iteration_bounds = array<i64: 2>, tpu.core_type = #tpu.core_type<sc_scalar_subcore>, window_params = []} {
    return
  }
}

module attributes {stable_mosaic.version = 11 : i64} {
  func.func private @main(%arg0: i32) attributes {dimension_semantics = [#tpu.dimension_semantics<core_parallel>], iteration_bounds = array<i64: 2>, tpu.core_type = #tpu.core_type<sc_scalar_subcore>, window_params = []} {
    return
  }
}

module attributes {stable_mosaic.version = 11 : i64} {
  func.func @_encoder_kernel(%arg0: i32, %arg1: memref<2xi32, #tpu.memory_space<smem>>, %arg2: memref<8x3xf32, #tpu.memory_space<vmem>>, %arg3: memref<8x32xf32, #tpu.memory_space<vmem>>, %arg4: memref<3x32xf32, #tpu.memory_space<vmem>>, %arg5: memref<1x32xf32, #tpu.memory_space<vmem>>, %arg6: memref<2x32x96xbf16, #tpu.memory_space<vmem>>, %arg7: memref<2x1x96xf32, #tpu.memory_space<vmem>>, %arg8: memref<2x4x8x32xbf16, #tpu.memory_space<vmem>>, %arg9: memref<2x1x32xf32, #tpu.memory_space<vmem>>, %arg10: memref<2x32x64xbf16, #tpu.memory_space<vmem>>, %arg11: memref<2x1x64xf32, #tpu.memory_space<vmem>>, %arg12: memref<2x64x32xbf16, #tpu.memory_space<vmem>>, %arg13: memref<2x1x32xf32, #tpu.memory_space<vmem>>, %arg14: memref<2x1x32xf32, #tpu.memory_space<vmem>>, %arg15: memref<2x1x32xf32, #tpu.memory_space<vmem>>, %arg16: memref<2x1x32xf32, #tpu.memory_space<vmem>>, %arg17: memref<2x1x32xf32, #tpu.memory_space<vmem>>, %arg18: memref<1x32xf32, #tpu.memory_space<vmem>>, %arg19: memref<1x32xf32, #tpu.memory_space<vmem>>, %arg20: memref<8x32xf32, #tpu.memory_space<vmem>>) attributes {dimension_semantics = [#tpu.dimension_semantics<parallel>], iteration_bounds = array<i64: 2>, scalar_prefetch = 1 : i64, scratch_operands = 0 : i64, tpu.core_type = #tpu.core_type<tc>, window_params = [{transform_indices = @transform_0, window_bounds = array<i64: 8, 3>}, {transform_indices = @transform_1, window_bounds = array<i64: 8, 32>}, {pipeline_mode = #tpu.pipeline_mode<synchronous>, transform_indices = @transform_2, window_bounds = array<i64: 3, 32>}, {pipeline_mode = #tpu.pipeline_mode<synchronous>, transform_indices = @transform_3, window_bounds = array<i64: 1, 32>}, {pipeline_mode = #tpu.pipeline_mode<synchronous>, transform_indices = @transform_4, window_bounds = array<i64: 2, 32, 96>}, {pipeline_mode = #tpu.pipeline_mode<synchronous>, transform_indices = @transform_5, window_bounds = array<i64: 2, 1, 96>}, {pipeline_mode = #tpu.pipeline_mode<synchronous>, transform_indices = @transform_6, window_bounds = array<i64: 2, 4, 8, 32>}, {pipeline_mode = #tpu.pipeline_mode<synchronous>, transform_indices = @transform_7, window_bounds = array<i64: 2, 1, 32>}, {pipeline_mode = #tpu.pipeline_mode<synchronous>, transform_indices = @transform_8, window_bounds = array<i64: 2, 32, 64>}, {pipeline_mode = #tpu.pipeline_mode<synchronous>, transform_indices = @transform_9, window_bounds = array<i64: 2, 1, 64>}, {pipeline_mode = #tpu.pipeline_mode<synchronous>, transform_indices = @transform_10, window_bounds = array<i64: 2, 64, 32>}, {pipeline_mode = #tpu.pipeline_mode<synchronous>, transform_indices = @transform_11, window_bounds = array<i64: 2, 1, 32>}, {pipeline_mode = #tpu.pipeline_mode<synchronous>, transform_indices = @transform_12, window_bounds = array<i64: 2, 1, 32>}, {pipeline_mode = #tpu.pipeline_mode<synchronous>, transform_indices = @transform_13, window_bounds = array<i64: 2, 1, 32>}, {pipeline_mode = #tpu.pipeline_mode<synchronous>, transform_indices = @transform_14, window_bounds = array<i64: 2, 1, 32>}, {pipeline_mode = #tpu.pipeline_mode<synchronous>, transform_indices = @transform_15, window_bounds = array<i64: 2, 1, 32>}, {pipeline_mode = #tpu.pipeline_mode<synchronous>, transform_indices = @transform_16, window_bounds = array<i64: 1, 32>}, {pipeline_mode = #tpu.pipeline_mode<synchronous>, transform_indices = @transform_17, window_bounds = array<i64: 1, 32>}, {transform_indices = @transform_18, window_bounds = array<i64: 8, 32>}]} {
    %0 = arith.index_cast %arg0 : i32 to index
    %1 = memref.load %arg1[%0] : memref<2xi32, #tpu.memory_space<smem>>
    %c0 = arith.constant 0 : index
    %c0_0 = arith.constant 0 : index
    %2 = vector.load %arg2[%c0, %c0_0] : memref<8x3xf32, #tpu.memory_space<vmem>>, vector<8x3xf32>
    %c0_1 = arith.constant 0 : index
    %c0_2 = arith.constant 0 : index
    %3 = vector.load %arg3[%c0_1, %c0_2] : memref<8x32xf32, #tpu.memory_space<vmem>>, vector<8x32xf32>
    %4 = tpu.iota {dimensions = array<i32: 0>} : vector<8x1xi32>
    %5 = vector.broadcast %1 : i32 to vector<8x1xi32>
    %6 = arith.cmpi slt, %4, %5 : vector<8x1xi32>
    %7 = tpu.iota {dimensions = array<i32: 2>} : vector<1x1x8xi32>
    %8 = vector.broadcast %1 : i32 to vector<1x1x8xi32>
    %9 = arith.cmpi slt, %7, %8 : vector<1x1x8xi32>
    %c1_i32 = arith.constant 1 : i32
    %10 = arith.maxsi %1, %c1_i32 : i32
    %11 = arith.sitofp %10 : i32 to f32
    %cst = arith.constant 1.000000e+00 : f32
    %12 = arith.divf %cst, %11 : f32
    %13 = arith.extui %6 : vector<8x1xi1> to vector<8x1xi32>
    %14 = arith.sitofp %13 : vector<8x1xi32> to vector<8x1xf32>
    %15 = vector.broadcast %14 : vector<8x1xf32> to vector<8x3xf32>
    %16 = arith.mulf %2, %15 : vector<8x3xf32>
    %cst_3 = arith.constant dense<0.000000e+00> : vector<3xf32>
    %17 = vector.multi_reduction <add>, %16, %cst_3 [0] : vector<8x3xf32> to vector<3xf32>
    %18 = vector.shape_cast %17 : vector<3xf32> to vector<1x3xf32>
    %19 = vector.broadcast %12 : f32 to vector<1x3xf32>
    %20 = arith.mulf %18, %19 : vector<1x3xf32>
    %21 = vector.broadcast %20 : vector<1x3xf32> to vector<8x3xf32>
    %22 = arith.subf %2, %21 : vector<8x3xf32>
    %c0_4 = arith.constant 0 : index
    %c0_5 = arith.constant 0 : index
    %23 = vector.load %arg4[%c0_4, %c0_5] : memref<3x32xf32, #tpu.memory_space<vmem>>, vector<3x32xf32>
    %cst_6 = arith.constant dense<0.000000e+00> : vector<8x32xf32>
    %24 = tpu.matmul %22, %23, %cst_6 {dimension_numbers = #tpu.dot_dimension_numbers<[1], [0], [0], [1], [0, 0, 1, 1], [], []>} : vector<8x3xf32>, vector<3x32xf32>, vector<8x32xf32> -> vector<8x32xf32>
    %c0_7 = arith.constant 0 : index
    %c0_8 = arith.constant 0 : index
    %25 = vector.load %arg5[%c0_7, %c0_8] : memref<1x32xf32, #tpu.memory_space<vmem>>, vector<1x32xf32>
    %26 = vector.broadcast %25 : vector<1x32xf32> to vector<8x32xf32>
    %27 = arith.addf %24, %26 : vector<8x32xf32>
    %28 = arith.addf %3, %27 : vector<8x32xf32>
    %c0_9 = arith.constant 0 : index
    %c0_10 = arith.constant 0 : index
    %c0_11 = arith.constant 0 : index
    %29 = vector.load %arg14[%c0_9, %c0_10, %c0_11] : memref<2x1x32xf32, #tpu.memory_space<vmem>>, vector<1x1x32xf32>
    %30 = vector.shape_cast %29 : vector<1x1x32xf32> to vector<1x32xf32>
    %c0_12 = arith.constant 0 : index
    %c0_13 = arith.constant 0 : index
    %c0_14 = arith.constant 0 : index
    %31 = vector.load %arg15[%c0_12, %c0_13, %c0_14] : memref<2x1x32xf32, #tpu.memory_space<vmem>>, vector<1x1x32xf32>
    %32 = vector.shape_cast %31 : vector<1x1x32xf32> to vector<1x32xf32>
    %cst_15 = arith.constant dense<0.000000e+00> : vector<8xf32>
    %33 = vector.multi_reduction <add>, %28, %cst_15 [1] : vector<8x32xf32> to vector<8xf32>
    %34 = vector.shape_cast %33 : vector<8xf32> to vector<8x1xf32>
    %cst_16 = arith.constant 3.200000e+01 : f32
    %35 = vector.broadcast %cst_16 : f32 to vector<8x1xf32>
    %36 = arith.divf %34, %35 : vector<8x1xf32>
    %37 = vector.broadcast %36 : vector<8x1xf32> to vector<8x32xf32>
    %38 = arith.subf %28, %37 : vector<8x32xf32>
    %39 = arith.mulf %38, %38 : vector<8x32xf32>
    %cst_17 = arith.constant dense<0.000000e+00> : vector<8xf32>
    %40 = vector.multi_reduction <add>, %39, %cst_17 [1] : vector<8x32xf32> to vector<8xf32>
    %41 = vector.shape_cast %40 : vector<8xf32> to vector<8x1xf32>
    %cst_18 = arith.constant 0.0322580636 : f32
    %42 = vector.broadcast %cst_18 : f32 to vector<8x1xf32>
    %43 = arith.mulf %41, %42 : vector<8x1xf32>
    %44 = math.sqrt %43 : vector<8x1xf32>
    %cst_19 = arith.constant 9.99999997E-7 : f32
    %45 = vector.broadcast %cst_19 : f32 to vector<8x1xf32>
    %46 = arith.addf %44, %45 : vector<8x1xf32>
    %47 = tpu.reciprocal %46 {approx = true} : vector<8x1xf32> -> vector<8x1xf32>
    %48 = vector.broadcast %36 : vector<8x1xf32> to vector<8x32xf32>
    %49 = arith.subf %28, %48 : vector<8x32xf32>
    %50 = vector.broadcast %30 : vector<1x32xf32> to vector<8x32xf32>
    %51 = arith.mulf %50, %49 : vector<8x32xf32>
    %52 = vector.broadcast %47 : vector<8x1xf32> to vector<8x32xf32>
    %53 = arith.mulf %51, %52 : vector<8x32xf32>
    %54 = vector.broadcast %32 : vector<1x32xf32> to vector<8x32xf32>
    %55 = arith.addf %53, %54 : vector<8x32xf32>
    %56 = arith.truncf %55 : vector<8x32xf32> to vector<8x32xbf16>
    %c0_20 = arith.constant 0 : index
    %c0_21 = arith.constant 0 : index
    %c0_22 = arith.constant 0 : index
    %57 = vector.load %arg6[%c0_20, %c0_21, %c0_22] : memref<2x32x96xbf16, #tpu.memory_space<vmem>>, vector<1x32x96xbf16>
    %58 = vector.shape_cast %57 : vector<1x32x96xbf16> to vector<32x96xbf16>
    %cst_23 = arith.constant dense<0.000000e+00> : vector<8x96xf32>
    %59 = tpu.matmul %56, %58, %cst_23 {dimension_numbers = #tpu.dot_dimension_numbers<[1], [0], [0], [1], [0, 0, 1, 1], [], []>} : vector<8x32xbf16>, vector<32x96xbf16>, vector<8x96xf32> -> vector<8x96xf32>
    %c0_24 = arith.constant 0 : index
    %c0_25 = arith.constant 0 : index
    %c0_26 = arith.constant 0 : index
    %60 = vector.load %arg7[%c0_24, %c0_25, %c0_26] : memref<2x1x96xf32, #tpu.memory_space<vmem>>, vector<1x1x96xf32>
    %61 = vector.shape_cast %60 : vector<1x1x96xf32> to vector<1x96xf32>
    %62 = vector.broadcast %61 : vector<1x96xf32> to vector<8x96xf32>
    %63 = arith.addf %59, %62 : vector<8x96xf32>
    %64 = vector.extract_strided_slice %63 {offsets = [0, 0], sizes = [8, 32], strides = [1, 1]} : vector<8x96xf32> to vector<8x32xf32>
    %65 = vector.extract_strided_slice %64 {offsets = [0, 0], sizes = [8, 8], strides = [1, 1]} : vector<8x32xf32> to vector<8x8xf32>
    %66 = vector.extract_strided_slice %64 {offsets = [0, 8], sizes = [8, 8], strides = [1, 1]} : vector<8x32xf32> to vector<8x8xf32>
    %67 = vector.extract_strided_slice %64 {offsets = [0, 16], sizes = [8, 8], strides = [1, 1]} : vector<8x32xf32> to vector<8x8xf32>
    %68 = vector.extract_strided_slice %64 {offsets = [0, 24], sizes = [8, 8], strides = [1, 1]} : vector<8x32xf32> to vector<8x8xf32>
    %69 = vector.shape_cast %65 : vector<8x8xf32> to vector<1x8x8xf32>
    %70 = vector.shape_cast %66 : vector<8x8xf32> to vector<1x8x8xf32>
    %71 = vector.shape_cast %67 : vector<8x8xf32> to vector<1x8x8xf32>
    %72 = vector.shape_cast %68 : vector<8x8xf32> to vector<1x8x8xf32>
    %73 = tpu.concatenate %69, %70, %71, %72 in 0 : vector<1x8x8xf32>, vector<1x8x8xf32>, vector<1x8x8xf32>, vector<1x8x8xf32> -> vector<4x8x8xf32>
    %74 = arith.truncf %73 : vector<4x8x8xf32> to vector<4x8x8xbf16>
    %75 = vector.extract_strided_slice %63 {offsets = [0, 32], sizes = [8, 32], strides = [1, 1]} : vector<8x96xf32> to vector<8x32xf32>
    %76 = vector.extract_strided_slice %75 {offsets = [0, 0], sizes = [8, 8], strides = [1, 1]} : vector<8x32xf32> to vector<8x8xf32>
    %77 = vector.extract_strided_slice %75 {offsets = [0, 8], sizes = [8, 8], strides = [1, 1]} : vector<8x32xf32> to vector<8x8xf32>
    %78 = vector.extract_strided_slice %75 {offsets = [0, 16], sizes = [8, 8], strides = [1, 1]} : vector<8x32xf32> to vector<8x8xf32>
    %79 = vector.extract_strided_slice %75 {offsets = [0, 24], sizes = [8, 8], strides = [1, 1]} : vector<8x32xf32> to vector<8x8xf32>
    %80 = vector.shape_cast %76 : vector<8x8xf32> to vector<1x8x8xf32>
    %81 = vector.shape_cast %77 : vector<8x8xf32> to vector<1x8x8xf32>
    %82 = vector.shape_cast %78 : vector<8x8xf32> to vector<1x8x8xf32>
    %83 = vector.shape_cast %79 : vector<8x8xf32> to vector<1x8x8xf32>
    %84 = tpu.concatenate %80, %81, %82, %83 in 0 : vector<1x8x8xf32>, vector<1x8x8xf32>, vector<1x8x8xf32>, vector<1x8x8xf32> -> vector<4x8x8xf32>
    %85 = arith.truncf %84 : vector<4x8x8xf32> to vector<4x8x8xbf16>
    %86 = vector.extract_strided_slice %63 {offsets = [0, 64], sizes = [8, 32], strides = [1, 1]} : vector<8x96xf32> to vector<8x32xf32>
    %87 = vector.extract_strided_slice %86 {offsets = [0, 0], sizes = [8, 8], strides = [1, 1]} : vector<8x32xf32> to vector<8x8xf32>
    %88 = vector.extract_strided_slice %86 {offsets = [0, 8], sizes = [8, 8], strides = [1, 1]} : vector<8x32xf32> to vector<8x8xf32>
    %89 = vector.extract_strided_slice %86 {offsets = [0, 16], sizes = [8, 8], strides = [1, 1]} : vector<8x32xf32> to vector<8x8xf32>
    %90 = vector.extract_strided_slice %86 {offsets = [0, 24], sizes = [8, 8], strides = [1, 1]} : vector<8x32xf32> to vector<8x8xf32>
    %91 = vector.shape_cast %87 : vector<8x8xf32> to vector<1x8x8xf32>
    %92 = vector.shape_cast %88 : vector<8x8xf32> to vector<1x8x8xf32>
    %93 = vector.shape_cast %89 : vector<8x8xf32> to vector<1x8x8xf32>
    %94 = vector.shape_cast %90 : vector<8x8xf32> to vector<1x8x8xf32>
    %95 = tpu.concatenate %91, %92, %93, %94 in 0 : vector<1x8x8xf32>, vector<1x8x8xf32>, vector<1x8x8xf32>, vector<1x8x8xf32> -> vector<4x8x8xf32>
    %96 = arith.truncf %95 : vector<4x8x8xf32> to vector<4x8x8xbf16>
    %cst_27 = arith.constant dense<0.000000e+00> : vector<4x8x8xf32>
    %97 = tpu.matmul %74, %85, %cst_27 {dimension_numbers = #tpu.dot_dimension_numbers<[2], [2], [1], [1], [0, 0, 0, 1, 1, 1], [0], [0]>} : vector<4x8x8xbf16>, vector<4x8x8xbf16>, vector<4x8x8xf32> -> vector<4x8x8xf32>
    %cst_28 = arith.constant 0.353553385 : f32
    %98 = vector.broadcast %cst_28 : f32 to vector<4x8x8xf32>
    %99 = arith.mulf %97, %98 : vector<4x8x8xf32>
    %cst_29 = arith.constant -1.000000e+09 : f32
    %100 = vector.shape_cast %9 : vector<1x1x8xi1> to vector<1x1x8xi1>
    %101 = vector.broadcast %100 : vector<1x1x8xi1> to vector<4x8x8xi1>
    %102 = vector.broadcast %cst_29 : f32 to vector<4x8x8xf32>
    %103 = arith.select %101, %99, %102 : vector<4x8x8xi1>, vector<4x8x8xf32>
    %cst_30 = arith.constant dense<0xFF800000> : vector<4x8xf32>
    %104 = vector.multi_reduction <maximumf>, %103, %cst_30 [2] : vector<4x8x8xf32> to vector<4x8xf32>
    %105 = vector.shape_cast %104 : vector<4x8xf32> to vector<4x8x1xf32>
    %106 = vector.broadcast %105 : vector<4x8x1xf32> to vector<4x8x8xf32>
    %107 = arith.subf %103, %106 : vector<4x8x8xf32>
    %108 = math.exp %107 : vector<4x8x8xf32>
    %cst_31 = arith.constant dense<0.000000e+00> : vector<4x8xf32>
    %109 = vector.multi_reduction <add>, %108, %cst_31 [2] : vector<4x8x8xf32> to vector<4x8xf32>
    %110 = vector.shape_cast %109 : vector<4x8xf32> to vector<4x8x1xf32>
    %111 = tpu.reciprocal %110 {approx = true} : vector<4x8x1xf32> -> vector<4x8x1xf32>
    %112 = vector.broadcast %111 : vector<4x8x1xf32> to vector<4x8x8xf32>
    %113 = arith.mulf %108, %112 : vector<4x8x8xf32>
    %114 = arith.truncf %113 : vector<4x8x8xf32> to vector<4x8x8xbf16>
    %cst_32 = arith.constant dense<0.000000e+00> : vector<4x8x8xf32>
    %115 = tpu.matmul %114, %96, %cst_32 {dimension_numbers = #tpu.dot_dimension_numbers<[2], [1], [1], [2], [0, 0, 0, 1, 1, 2], [0], [0]>} : vector<4x8x8xbf16>, vector<4x8x8xbf16>, vector<4x8x8xf32> -> vector<4x8x8xf32>
    %116 = arith.truncf %115 : vector<4x8x8xf32> to vector<4x8x8xbf16>
    %c0_33 = arith.constant 0 : index
    %c0_34 = arith.constant 0 : index
    %c0_35 = arith.constant 0 : index
    %c0_36 = arith.constant 0 : index
    %117 = vector.load %arg8[%c0_33, %c0_34, %c0_35, %c0_36] : memref<2x4x8x32xbf16, #tpu.memory_space<vmem>>, vector<1x4x8x32xbf16>
    %118 = vector.shape_cast %117 : vector<1x4x8x32xbf16> to vector<4x8x32xbf16>
    %cst_37 = arith.constant dense<0.000000e+00> : vector<4x8x32xf32>
    %119 = tpu.matmul %116, %118, %cst_37 {dimension_numbers = #tpu.dot_dimension_numbers<[2], [1], [1], [2], [0, 0, 0, 1, 1, 2], [0], [0]>} : vector<4x8x8xbf16>, vector<4x8x32xbf16>, vector<4x8x32xf32> -> vector<4x8x32xf32>
    %cst_38 = arith.constant dense<0.000000e+00> : vector<8x32xf32>
    %120 = vector.multi_reduction <add>, %119, %cst_38 [0] : vector<4x8x32xf32> to vector<8x32xf32>
    %121 = arith.addf %28, %120 : vector<8x32xf32>
    %c0_39 = arith.constant 0 : index
    %c0_40 = arith.constant 0 : index
    %c0_41 = arith.constant 0 : index
    %122 = vector.load %arg9[%c0_39, %c0_40, %c0_41] : memref<2x1x32xf32, #tpu.memory_space<vmem>>, vector<1x1x32xf32>
    %123 = vector.shape_cast %122 : vector<1x1x32xf32> to vector<1x32xf32>
    %124 = vector.broadcast %123 : vector<1x32xf32> to vector<8x32xf32>
    %125 = arith.addf %121, %124 : vector<8x32xf32>
    %c0_42 = arith.constant 0 : index
    %c0_43 = arith.constant 0 : index
    %c0_44 = arith.constant 0 : index
    %126 = vector.load %arg16[%c0_42, %c0_43, %c0_44] : memref<2x1x32xf32, #tpu.memory_space<vmem>>, vector<1x1x32xf32>
    %127 = vector.shape_cast %126 : vector<1x1x32xf32> to vector<1x32xf32>
    %c0_45 = arith.constant 0 : index
    %c0_46 = arith.constant 0 : index
    %c0_47 = arith.constant 0 : index
    %128 = vector.load %arg17[%c0_45, %c0_46, %c0_47] : memref<2x1x32xf32, #tpu.memory_space<vmem>>, vector<1x1x32xf32>
    %129 = vector.shape_cast %128 : vector<1x1x32xf32> to vector<1x32xf32>
    %cst_48 = arith.constant dense<0.000000e+00> : vector<8xf32>
    %130 = vector.multi_reduction <add>, %125, %cst_48 [1] : vector<8x32xf32> to vector<8xf32>
    %131 = vector.shape_cast %130 : vector<8xf32> to vector<8x1xf32>
    %cst_49 = arith.constant 3.200000e+01 : f32
    %132 = vector.broadcast %cst_49 : f32 to vector<8x1xf32>
    %133 = arith.divf %131, %132 : vector<8x1xf32>
    %134 = vector.broadcast %133 : vector<8x1xf32> to vector<8x32xf32>
    %135 = arith.subf %125, %134 : vector<8x32xf32>
    %136 = arith.mulf %135, %135 : vector<8x32xf32>
    %cst_50 = arith.constant dense<0.000000e+00> : vector<8xf32>
    %137 = vector.multi_reduction <add>, %136, %cst_50 [1] : vector<8x32xf32> to vector<8xf32>
    %138 = vector.shape_cast %137 : vector<8xf32> to vector<8x1xf32>
    %cst_51 = arith.constant 0.0322580636 : f32
    %139 = vector.broadcast %cst_51 : f32 to vector<8x1xf32>
    %140 = arith.mulf %138, %139 : vector<8x1xf32>
    %141 = math.sqrt %140 : vector<8x1xf32>
    %cst_52 = arith.constant 9.99999997E-7 : f32
    %142 = vector.broadcast %cst_52 : f32 to vector<8x1xf32>
    %143 = arith.addf %141, %142 : vector<8x1xf32>
    %144 = tpu.reciprocal %143 {approx = true} : vector<8x1xf32> -> vector<8x1xf32>
    %145 = vector.broadcast %133 : vector<8x1xf32> to vector<8x32xf32>
    %146 = arith.subf %125, %145 : vector<8x32xf32>
    %147 = vector.broadcast %127 : vector<1x32xf32> to vector<8x32xf32>
    %148 = arith.mulf %147, %146 : vector<8x32xf32>
    %149 = vector.broadcast %144 : vector<8x1xf32> to vector<8x32xf32>
    %150 = arith.mulf %148, %149 : vector<8x32xf32>
    %151 = vector.broadcast %129 : vector<1x32xf32> to vector<8x32xf32>
    %152 = arith.addf %150, %151 : vector<8x32xf32>
    %153 = arith.truncf %152 : vector<8x32xf32> to vector<8x32xbf16>
    %c0_53 = arith.constant 0 : index
    %c0_54 = arith.constant 0 : index
    %c0_55 = arith.constant 0 : index
    %154 = vector.load %arg10[%c0_53, %c0_54, %c0_55] : memref<2x32x64xbf16, #tpu.memory_space<vmem>>, vector<1x32x64xbf16>
    %155 = vector.shape_cast %154 : vector<1x32x64xbf16> to vector<32x64xbf16>
    %cst_56 = arith.constant dense<0.000000e+00> : vector<8x64xf32>
    %156 = tpu.matmul %153, %155, %cst_56 {dimension_numbers = #tpu.dot_dimension_numbers<[1], [0], [0], [1], [0, 0, 1, 1], [], []>} : vector<8x32xbf16>, vector<32x64xbf16>, vector<8x64xf32> -> vector<8x64xf32>
    %c0_57 = arith.constant 0 : index
    %c0_58 = arith.constant 0 : index
    %c0_59 = arith.constant 0 : index
    %157 = vector.load %arg11[%c0_57, %c0_58, %c0_59] : memref<2x1x64xf32, #tpu.memory_space<vmem>>, vector<1x1x64xf32>
    %158 = vector.shape_cast %157 : vector<1x1x64xf32> to vector<1x64xf32>
    %159 = vector.broadcast %158 : vector<1x64xf32> to vector<8x64xf32>
    %160 = arith.addf %156, %159 : vector<8x64xf32>
    %cst_60 = arith.constant 0.000000e+00 : f32
    %161 = vector.broadcast %cst_60 : f32 to vector<8x64xf32>
    %162 = arith.maximumf %160, %161 : vector<8x64xf32>
    %163 = arith.truncf %162 : vector<8x64xf32> to vector<8x64xbf16>
    %c0_61 = arith.constant 0 : index
    %c0_62 = arith.constant 0 : index
    %c0_63 = arith.constant 0 : index
    %164 = vector.load %arg12[%c0_61, %c0_62, %c0_63] : memref<2x64x32xbf16, #tpu.memory_space<vmem>>, vector<1x64x32xbf16>
    %165 = vector.shape_cast %164 : vector<1x64x32xbf16> to vector<64x32xbf16>
    %cst_64 = arith.constant dense<0.000000e+00> : vector<8x32xf32>
    %166 = tpu.matmul %163, %165, %cst_64 {dimension_numbers = #tpu.dot_dimension_numbers<[1], [0], [0], [1], [0, 0, 1, 1], [], []>} : vector<8x64xbf16>, vector<64x32xbf16>, vector<8x32xf32> -> vector<8x32xf32>
    %167 = arith.addf %125, %166 : vector<8x32xf32>
    %c0_65 = arith.constant 0 : index
    %c0_66 = arith.constant 0 : index
    %c0_67 = arith.constant 0 : index
    %168 = vector.load %arg13[%c0_65, %c0_66, %c0_67] : memref<2x1x32xf32, #tpu.memory_space<vmem>>, vector<1x1x32xf32>
    %169 = vector.shape_cast %168 : vector<1x1x32xf32> to vector<1x32xf32>
    %170 = vector.broadcast %169 : vector<1x32xf32> to vector<8x32xf32>
    %171 = arith.addf %167, %170 : vector<8x32xf32>
    %c1 = arith.constant 1 : index
    %c0_68 = arith.constant 0 : index
    %c0_69 = arith.constant 0 : index
    %172 = vector.load %arg14[%c1, %c0_68, %c0_69] : memref<2x1x32xf32, #tpu.memory_space<vmem>>, vector<1x1x32xf32>
    %173 = vector.shape_cast %172 : vector<1x1x32xf32> to vector<1x32xf32>
    %c1_70 = arith.constant 1 : index
    %c0_71 = arith.constant 0 : index
    %c0_72 = arith.constant 0 : index
    %174 = vector.load %arg15[%c1_70, %c0_71, %c0_72] : memref<2x1x32xf32, #tpu.memory_space<vmem>>, vector<1x1x32xf32>
    %175 = vector.shape_cast %174 : vector<1x1x32xf32> to vector<1x32xf32>
    %cst_73 = arith.constant dense<0.000000e+00> : vector<8xf32>
    %176 = vector.multi_reduction <add>, %171, %cst_73 [1] : vector<8x32xf32> to vector<8xf32>
    %177 = vector.shape_cast %176 : vector<8xf32> to vector<8x1xf32>
    %cst_74 = arith.constant 3.200000e+01 : f32
    %178 = vector.broadcast %cst_74 : f32 to vector<8x1xf32>
    %179 = arith.divf %177, %178 : vector<8x1xf32>
    %180 = vector.broadcast %179 : vector<8x1xf32> to vector<8x32xf32>
    %181 = arith.subf %171, %180 : vector<8x32xf32>
    %182 = arith.mulf %181, %181 : vector<8x32xf32>
    %cst_75 = arith.constant dense<0.000000e+00> : vector<8xf32>
    %183 = vector.multi_reduction <add>, %182, %cst_75 [1] : vector<8x32xf32> to vector<8xf32>
    %184 = vector.shape_cast %183 : vector<8xf32> to vector<8x1xf32>
    %cst_76 = arith.constant 0.0322580636 : f32
    %185 = vector.broadcast %cst_76 : f32 to vector<8x1xf32>
    %186 = arith.mulf %184, %185 : vector<8x1xf32>
    %187 = math.sqrt %186 : vector<8x1xf32>
    %cst_77 = arith.constant 9.99999997E-7 : f32
    %188 = vector.broadcast %cst_77 : f32 to vector<8x1xf32>
    %189 = arith.addf %187, %188 : vector<8x1xf32>
    %190 = tpu.reciprocal %189 {approx = true} : vector<8x1xf32> -> vector<8x1xf32>
    %191 = vector.broadcast %179 : vector<8x1xf32> to vector<8x32xf32>
    %192 = arith.subf %171, %191 : vector<8x32xf32>
    %193 = vector.broadcast %173 : vector<1x32xf32> to vector<8x32xf32>
    %194 = arith.mulf %193, %192 : vector<8x32xf32>
    %195 = vector.broadcast %190 : vector<8x1xf32> to vector<8x32xf32>
    %196 = arith.mulf %194, %195 : vector<8x32xf32>
    %197 = vector.broadcast %175 : vector<1x32xf32> to vector<8x32xf32>
    %198 = arith.addf %196, %197 : vector<8x32xf32>
    %199 = arith.truncf %198 : vector<8x32xf32> to vector<8x32xbf16>
    %c1_78 = arith.constant 1 : index
    %c0_79 = arith.constant 0 : index
    %c0_80 = arith.constant 0 : index
    %200 = vector.load %arg6[%c1_78, %c0_79, %c0_80] : memref<2x32x96xbf16, #tpu.memory_space<vmem>>, vector<1x32x96xbf16>
    %201 = vector.shape_cast %200 : vector<1x32x96xbf16> to vector<32x96xbf16>
    %cst_81 = arith.constant dense<0.000000e+00> : vector<8x96xf32>
    %202 = tpu.matmul %199, %201, %cst_81 {dimension_numbers = #tpu.dot_dimension_numbers<[1], [0], [0], [1], [0, 0, 1, 1], [], []>} : vector<8x32xbf16>, vector<32x96xbf16>, vector<8x96xf32> -> vector<8x96xf32>
    %c1_82 = arith.constant 1 : index
    %c0_83 = arith.constant 0 : index
    %c0_84 = arith.constant 0 : index
    %203 = vector.load %arg7[%c1_82, %c0_83, %c0_84] : memref<2x1x96xf32, #tpu.memory_space<vmem>>, vector<1x1x96xf32>
    %204 = vector.shape_cast %203 : vector<1x1x96xf32> to vector<1x96xf32>
    %205 = vector.broadcast %204 : vector<1x96xf32> to vector<8x96xf32>
    %206 = arith.addf %202, %205 : vector<8x96xf32>
    %207 = vector.extract_strided_slice %206 {offsets = [0, 0], sizes = [8, 32], strides = [1, 1]} : vector<8x96xf32> to vector<8x32xf32>
    %208 = vector.extract_strided_slice %207 {offsets = [0, 0], sizes = [8, 8], strides = [1, 1]} : vector<8x32xf32> to vector<8x8xf32>
    %209 = vector.extract_strided_slice %207 {offsets = [0, 8], sizes = [8, 8], strides = [1, 1]} : vector<8x32xf32> to vector<8x8xf32>
    %210 = vector.extract_strided_slice %207 {offsets = [0, 16], sizes = [8, 8], strides = [1, 1]} : vector<8x32xf32> to vector<8x8xf32>
    %211 = vector.extract_strided_slice %207 {offsets = [0, 24], sizes = [8, 8], strides = [1, 1]} : vector<8x32xf32> to vector<8x8xf32>
    %212 = vector.shape_cast %208 : vector<8x8xf32> to vector<1x8x8xf32>
    %213 = vector.shape_cast %209 : vector<8x8xf32> to vector<1x8x8xf32>
    %214 = vector.shape_cast %210 : vector<8x8xf32> to vector<1x8x8xf32>
    %215 = vector.shape_cast %211 : vector<8x8xf32> to vector<1x8x8xf32>
    %216 = tpu.concatenate %212, %213, %214, %215 in 0 : vector<1x8x8xf32>, vector<1x8x8xf32>, vector<1x8x8xf32>, vector<1x8x8xf32> -> vector<4x8x8xf32>
    %217 = arith.truncf %216 : vector<4x8x8xf32> to vector<4x8x8xbf16>
    %218 = vector.extract_strided_slice %206 {offsets = [0, 32], sizes = [8, 32], strides = [1, 1]} : vector<8x96xf32> to vector<8x32xf32>
    %219 = vector.extract_strided_slice %218 {offsets = [0, 0], sizes = [8, 8], strides = [1, 1]} : vector<8x32xf32> to vector<8x8xf32>
    %220 = vector.extract_strided_slice %218 {offsets = [0, 8], sizes = [8, 8], strides = [1, 1]} : vector<8x32xf32> to vector<8x8xf32>
    %221 = vector.extract_strided_slice %218 {offsets = [0, 16], sizes = [8, 8], strides = [1, 1]} : vector<8x32xf32> to vector<8x8xf32>
    %222 = vector.extract_strided_slice %218 {offsets = [0, 24], sizes = [8, 8], strides = [1, 1]} : vector<8x32xf32> to vector<8x8xf32>
    %223 = vector.shape_cast %219 : vector<8x8xf32> to vector<1x8x8xf32>
    %224 = vector.shape_cast %220 : vector<8x8xf32> to vector<1x8x8xf32>
    %225 = vector.shape_cast %221 : vector<8x8xf32> to vector<1x8x8xf32>
    %226 = vector.shape_cast %222 : vector<8x8xf32> to vector<1x8x8xf32>
    %227 = tpu.concatenate %223, %224, %225, %226 in 0 : vector<1x8x8xf32>, vector<1x8x8xf32>, vector<1x8x8xf32>, vector<1x8x8xf32> -> vector<4x8x8xf32>
    %228 = arith.truncf %227 : vector<4x8x8xf32> to vector<4x8x8xbf16>
    %229 = vector.extract_strided_slice %206 {offsets = [0, 64], sizes = [8, 32], strides = [1, 1]} : vector<8x96xf32> to vector<8x32xf32>
    %230 = vector.extract_strided_slice %229 {offsets = [0, 0], sizes = [8, 8], strides = [1, 1]} : vector<8x32xf32> to vector<8x8xf32>
    %231 = vector.extract_strided_slice %229 {offsets = [0, 8], sizes = [8, 8], strides = [1, 1]} : vector<8x32xf32> to vector<8x8xf32>
    %232 = vector.extract_strided_slice %229 {offsets = [0, 16], sizes = [8, 8], strides = [1, 1]} : vector<8x32xf32> to vector<8x8xf32>
    %233 = vector.extract_strided_slice %229 {offsets = [0, 24], sizes = [8, 8], strides = [1, 1]} : vector<8x32xf32> to vector<8x8xf32>
    %234 = vector.shape_cast %230 : vector<8x8xf32> to vector<1x8x8xf32>
    %235 = vector.shape_cast %231 : vector<8x8xf32> to vector<1x8x8xf32>
    %236 = vector.shape_cast %232 : vector<8x8xf32> to vector<1x8x8xf32>
    %237 = vector.shape_cast %233 : vector<8x8xf32> to vector<1x8x8xf32>
    %238 = tpu.concatenate %234, %235, %236, %237 in 0 : vector<1x8x8xf32>, vector<1x8x8xf32>, vector<1x8x8xf32>, vector<1x8x8xf32> -> vector<4x8x8xf32>
    %239 = arith.truncf %238 : vector<4x8x8xf32> to vector<4x8x8xbf16>
    %cst_85 = arith.constant dense<0.000000e+00> : vector<4x8x8xf32>
    %240 = tpu.matmul %217, %228, %cst_85 {dimension_numbers = #tpu.dot_dimension_numbers<[2], [2], [1], [1], [0, 0, 0, 1, 1, 1], [0], [0]>} : vector<4x8x8xbf16>, vector<4x8x8xbf16>, vector<4x8x8xf32> -> vector<4x8x8xf32>
    %cst_86 = arith.constant 0.353553385 : f32
    %241 = vector.broadcast %cst_86 : f32 to vector<4x8x8xf32>
    %242 = arith.mulf %240, %241 : vector<4x8x8xf32>
    %cst_87 = arith.constant -1.000000e+09 : f32
    %243 = vector.shape_cast %9 : vector<1x1x8xi1> to vector<1x1x8xi1>
    %244 = vector.broadcast %243 : vector<1x1x8xi1> to vector<4x8x8xi1>
    %245 = vector.broadcast %cst_87 : f32 to vector<4x8x8xf32>
    %246 = arith.select %244, %242, %245 : vector<4x8x8xi1>, vector<4x8x8xf32>
    %cst_88 = arith.constant dense<0xFF800000> : vector<4x8xf32>
    %247 = vector.multi_reduction <maximumf>, %246, %cst_88 [2] : vector<4x8x8xf32> to vector<4x8xf32>
    %248 = vector.shape_cast %247 : vector<4x8xf32> to vector<4x8x1xf32>
    %249 = vector.broadcast %248 : vector<4x8x1xf32> to vector<4x8x8xf32>
    %250 = arith.subf %246, %249 : vector<4x8x8xf32>
    %251 = math.exp %250 : vector<4x8x8xf32>
    %cst_89 = arith.constant dense<0.000000e+00> : vector<4x8xf32>
    %252 = vector.multi_reduction <add>, %251, %cst_89 [2] : vector<4x8x8xf32> to vector<4x8xf32>
    %253 = vector.shape_cast %252 : vector<4x8xf32> to vector<4x8x1xf32>
    %254 = tpu.reciprocal %253 {approx = true} : vector<4x8x1xf32> -> vector<4x8x1xf32>
    %255 = vector.broadcast %254 : vector<4x8x1xf32> to vector<4x8x8xf32>
    %256 = arith.mulf %251, %255 : vector<4x8x8xf32>
    %257 = arith.truncf %256 : vector<4x8x8xf32> to vector<4x8x8xbf16>
    %cst_90 = arith.constant dense<0.000000e+00> : vector<4x8x8xf32>
    %258 = tpu.matmul %257, %239, %cst_90 {dimension_numbers = #tpu.dot_dimension_numbers<[2], [1], [1], [2], [0, 0, 0, 1, 1, 2], [0], [0]>} : vector<4x8x8xbf16>, vector<4x8x8xbf16>, vector<4x8x8xf32> -> vector<4x8x8xf32>
    %259 = arith.truncf %258 : vector<4x8x8xf32> to vector<4x8x8xbf16>
    %c1_91 = arith.constant 1 : index
    %c0_92 = arith.constant 0 : index
    %c0_93 = arith.constant 0 : index
    %c0_94 = arith.constant 0 : index
    %260 = vector.load %arg8[%c1_91, %c0_92, %c0_93, %c0_94] : memref<2x4x8x32xbf16, #tpu.memory_space<vmem>>, vector<1x4x8x32xbf16>
    %261 = vector.shape_cast %260 : vector<1x4x8x32xbf16> to vector<4x8x32xbf16>
    %cst_95 = arith.constant dense<0.000000e+00> : vector<4x8x32xf32>
    %262 = tpu.matmul %259, %261, %cst_95 {dimension_numbers = #tpu.dot_dimension_numbers<[2], [1], [1], [2], [0, 0, 0, 1, 1, 2], [0], [0]>} : vector<4x8x8xbf16>, vector<4x8x32xbf16>, vector<4x8x32xf32> -> vector<4x8x32xf32>
    %cst_96 = arith.constant dense<0.000000e+00> : vector<8x32xf32>
    %263 = vector.multi_reduction <add>, %262, %cst_96 [0] : vector<4x8x32xf32> to vector<8x32xf32>
    %264 = arith.addf %171, %263 : vector<8x32xf32>
    %c1_97 = arith.constant 1 : index
    %c0_98 = arith.constant 0 : index
    %c0_99 = arith.constant 0 : index
    %265 = vector.load %arg9[%c1_97, %c0_98, %c0_99] : memref<2x1x32xf32, #tpu.memory_space<vmem>>, vector<1x1x32xf32>
    %266 = vector.shape_cast %265 : vector<1x1x32xf32> to vector<1x32xf32>
    %267 = vector.broadcast %266 : vector<1x32xf32> to vector<8x32xf32>
    %268 = arith.addf %264, %267 : vector<8x32xf32>
    %c1_100 = arith.constant 1 : index
    %c0_101 = arith.constant 0 : index
    %c0_102 = arith.constant 0 : index
    %269 = vector.load %arg16[%c1_100, %c0_101, %c0_102] : memref<2x1x32xf32, #tpu.memory_space<vmem>>, vector<1x1x32xf32>
    %270 = vector.shape_cast %269 : vector<1x1x32xf32> to vector<1x32xf32>
    %c1_103 = arith.constant 1 : index
    %c0_104 = arith.constant 0 : index
    %c0_105 = arith.constant 0 : index
    %271 = vector.load %arg17[%c1_103, %c0_104, %c0_105] : memref<2x1x32xf32, #tpu.memory_space<vmem>>, vector<1x1x32xf32>
    %272 = vector.shape_cast %271 : vector<1x1x32xf32> to vector<1x32xf32>
    %cst_106 = arith.constant dense<0.000000e+00> : vector<8xf32>
    %273 = vector.multi_reduction <add>, %268, %cst_106 [1] : vector<8x32xf32> to vector<8xf32>
    %274 = vector.shape_cast %273 : vector<8xf32> to vector<8x1xf32>
    %cst_107 = arith.constant 3.200000e+01 : f32
    %275 = vector.broadcast %cst_107 : f32 to vector<8x1xf32>
    %276 = arith.divf %274, %275 : vector<8x1xf32>
    %277 = vector.broadcast %276 : vector<8x1xf32> to vector<8x32xf32>
    %278 = arith.subf %268, %277 : vector<8x32xf32>
    %279 = arith.mulf %278, %278 : vector<8x32xf32>
    %cst_108 = arith.constant dense<0.000000e+00> : vector<8xf32>
    %280 = vector.multi_reduction <add>, %279, %cst_108 [1] : vector<8x32xf32> to vector<8xf32>
    %281 = vector.shape_cast %280 : vector<8xf32> to vector<8x1xf32>
    %cst_109 = arith.constant 0.0322580636 : f32
    %282 = vector.broadcast %cst_109 : f32 to vector<8x1xf32>
    %283 = arith.mulf %281, %282 : vector<8x1xf32>
    %284 = math.sqrt %283 : vector<8x1xf32>
    %cst_110 = arith.constant 9.99999997E-7 : f32
    %285 = vector.broadcast %cst_110 : f32 to vector<8x1xf32>
    %286 = arith.addf %284, %285 : vector<8x1xf32>
    %287 = tpu.reciprocal %286 {approx = true} : vector<8x1xf32> -> vector<8x1xf32>
    %288 = vector.broadcast %276 : vector<8x1xf32> to vector<8x32xf32>
    %289 = arith.subf %268, %288 : vector<8x32xf32>
    %290 = vector.broadcast %270 : vector<1x32xf32> to vector<8x32xf32>
    %291 = arith.mulf %290, %289 : vector<8x32xf32>
    %292 = vector.broadcast %287 : vector<8x1xf32> to vector<8x32xf32>
    %293 = arith.mulf %291, %292 : vector<8x32xf32>
    %294 = vector.broadcast %272 : vector<1x32xf32> to vector<8x32xf32>
    %295 = arith.addf %293, %294 : vector<8x32xf32>
    %296 = arith.truncf %295 : vector<8x32xf32> to vector<8x32xbf16>
    %c1_111 = arith.constant 1 : index
    %c0_112 = arith.constant 0 : index
    %c0_113 = arith.constant 0 : index
    %297 = vector.load %arg10[%c1_111, %c0_112, %c0_113] : memref<2x32x64xbf16, #tpu.memory_space<vmem>>, vector<1x32x64xbf16>
    %298 = vector.shape_cast %297 : vector<1x32x64xbf16> to vector<32x64xbf16>
    %cst_114 = arith.constant dense<0.000000e+00> : vector<8x64xf32>
    %299 = tpu.matmul %296, %298, %cst_114 {dimension_numbers = #tpu.dot_dimension_numbers<[1], [0], [0], [1], [0, 0, 1, 1], [], []>} : vector<8x32xbf16>, vector<32x64xbf16>, vector<8x64xf32> -> vector<8x64xf32>
    %c1_115 = arith.constant 1 : index
    %c0_116 = arith.constant 0 : index
    %c0_117 = arith.constant 0 : index
    %300 = vector.load %arg11[%c1_115, %c0_116, %c0_117] : memref<2x1x64xf32, #tpu.memory_space<vmem>>, vector<1x1x64xf32>
    %301 = vector.shape_cast %300 : vector<1x1x64xf32> to vector<1x64xf32>
    %302 = vector.broadcast %301 : vector<1x64xf32> to vector<8x64xf32>
    %303 = arith.addf %299, %302 : vector<8x64xf32>
    %cst_118 = arith.constant 0.000000e+00 : f32
    %304 = vector.broadcast %cst_118 : f32 to vector<8x64xf32>
    %305 = arith.maximumf %303, %304 : vector<8x64xf32>
    %306 = arith.truncf %305 : vector<8x64xf32> to vector<8x64xbf16>
    %c1_119 = arith.constant 1 : index
    %c0_120 = arith.constant 0 : index
    %c0_121 = arith.constant 0 : index
    %307 = vector.load %arg12[%c1_119, %c0_120, %c0_121] : memref<2x64x32xbf16, #tpu.memory_space<vmem>>, vector<1x64x32xbf16>
    %308 = vector.shape_cast %307 : vector<1x64x32xbf16> to vector<64x32xbf16>
    %cst_122 = arith.constant dense<0.000000e+00> : vector<8x32xf32>
    %309 = tpu.matmul %306, %308, %cst_122 {dimension_numbers = #tpu.dot_dimension_numbers<[1], [0], [0], [1], [0, 0, 1, 1], [], []>} : vector<8x64xbf16>, vector<64x32xbf16>, vector<8x32xf32> -> vector<8x32xf32>
    %310 = arith.addf %268, %309 : vector<8x32xf32>
    %c1_123 = arith.constant 1 : index
    %c0_124 = arith.constant 0 : index
    %c0_125 = arith.constant 0 : index
    %311 = vector.load %arg13[%c1_123, %c0_124, %c0_125] : memref<2x1x32xf32, #tpu.memory_space<vmem>>, vector<1x1x32xf32>
    %312 = vector.shape_cast %311 : vector<1x1x32xf32> to vector<1x32xf32>
    %313 = vector.broadcast %312 : vector<1x32xf32> to vector<8x32xf32>
    %314 = arith.addf %310, %313 : vector<8x32xf32>
    %c0_126 = arith.constant 0 : index
    %c0_127 = arith.constant 0 : index
    %315 = vector.load %arg18[%c0_126, %c0_127] : memref<1x32xf32, #tpu.memory_space<vmem>>, vector<1x32xf32>
    %c0_128 = arith.constant 0 : index
    %c0_129 = arith.constant 0 : index
    %316 = vector.load %arg19[%c0_128, %c0_129] : memref<1x32xf32, #tpu.memory_space<vmem>>, vector<1x32xf32>
    %cst_130 = arith.constant dense<0.000000e+00> : vector<8xf32>
    %317 = vector.multi_reduction <add>, %314, %cst_130 [1] : vector<8x32xf32> to vector<8xf32>
    %318 = vector.shape_cast %317 : vector<8xf32> to vector<8x1xf32>
    %cst_131 = arith.constant 3.200000e+01 : f32
    %319 = vector.broadcast %cst_131 : f32 to vector<8x1xf32>
    %320 = arith.divf %318, %319 : vector<8x1xf32>
    %321 = vector.broadcast %320 : vector<8x1xf32> to vector<8x32xf32>
    %322 = arith.subf %314, %321 : vector<8x32xf32>
    %323 = arith.mulf %322, %322 : vector<8x32xf32>
    %cst_132 = arith.constant dense<0.000000e+00> : vector<8xf32>
    %324 = vector.multi_reduction <add>, %323, %cst_132 [1] : vector<8x32xf32> to vector<8xf32>
    %325 = vector.shape_cast %324 : vector<8xf32> to vector<8x1xf32>
    %cst_133 = arith.constant 0.0322580636 : f32
    %326 = vector.broadcast %cst_133 : f32 to vector<8x1xf32>
    %327 = arith.mulf %325, %326 : vector<8x1xf32>
    %328 = math.sqrt %327 : vector<8x1xf32>
    %cst_134 = arith.constant 9.99999997E-7 : f32
    %329 = vector.broadcast %cst_134 : f32 to vector<8x1xf32>
    %330 = arith.addf %328, %329 : vector<8x1xf32>
    %331 = tpu.reciprocal %330 {approx = true} : vector<8x1xf32> -> vector<8x1xf32>
    %332 = vector.broadcast %320 : vector<8x1xf32> to vector<8x32xf32>
    %333 = arith.subf %314, %332 : vector<8x32xf32>
    %334 = vector.broadcast %315 : vector<1x32xf32> to vector<8x32xf32>
    %335 = arith.mulf %334, %333 : vector<8x32xf32>
    %336 = vector.broadcast %331 : vector<8x1xf32> to vector<8x32xf32>
    %337 = arith.mulf %335, %336 : vector<8x32xf32>
    %338 = vector.broadcast %316 : vector<1x32xf32> to vector<8x32xf32>
    %339 = arith.addf %337, %338 : vector<8x32xf32>
    %cst_135 = arith.constant 0.000000e+00 : f32
    %340 = vector.shape_cast %6 : vector<8x1xi1> to vector<8x1xi1>
    %341 = vector.broadcast %340 : vector<8x1xi1> to vector<8x32xi1>
    %342 = vector.broadcast %cst_135 : f32 to vector<8x32xf32>
    %343 = arith.select %341, %339, %342 : vector<8x32xi1>, vector<8x32xf32>
    %c0_136 = arith.constant 0 : index
    %c0_137 = arith.constant 0 : index
    %344 = vector.load %arg20[%c0_136, %c0_137] : memref<8x32xf32, #tpu.memory_space<vmem>>, vector<8x32xf32>
    tpu.vector_store %arg20[%c0_136, %c0_137], %343 {strides = array<i32>} : memref<8x32xf32, #tpu.memory_space<vmem>>, vector<8x32xf32>,
    return
  }
  func.func @transform_0(%arg0: i32, %arg1: memref<2xi32, #tpu.memory_space<smem>>) -> (i32, i32) {
    %c0_i32 = arith.constant 0 : i32
    %c0_i32_0 = arith.constant 0 : i32
    return %arg0, %c0_i32 : i32, i32
  }
  func.func @transform_1(%arg0: i32, %arg1: memref<2xi32, #tpu.memory_space<smem>>) -> (i32, i32) {
    %c0_i32 = arith.constant 0 : i32
    %c0_i32_0 = arith.constant 0 : i32
    return %arg0, %c0_i32 : i32, i32
  }
  func.func @transform_2(%arg0: i32, %arg1: memref<2xi32, #tpu.memory_space<smem>>) -> (i32, i32) {
    %c0_i32 = arith.constant 0 : i32
    %c0_i32_0 = arith.constant 0 : i32
    %c0_i32_1 = arith.constant 0 : i32
    return %c0_i32, %c0_i32_0 : i32, i32
  }
  func.func @transform_3(%arg0: i32, %arg1: memref<2xi32, #tpu.memory_space<smem>>) -> (i32, i32) {
    %c0_i32 = arith.constant 0 : i32
    %c0_i32_0 = arith.constant 0 : i32
    %c0_i32_1 = arith.constant 0 : i32
    return %c0_i32, %c0_i32_0 : i32, i32
  }
  func.func @transform_4(%arg0: i32, %arg1: memref<2xi32, #tpu.memory_space<smem>>) -> (i32, i32, i32) {
    %c0_i32 = arith.constant 0 : i32
    %c0_i32_0 = arith.constant 0 : i32
    %c0_i32_1 = arith.constant 0 : i32
    %c0_i32_2 = arith.constant 0 : i32
    return %c0_i32, %c0_i32_0, %c0_i32_1 : i32, i32, i32
  }
  func.func @transform_5(%arg0: i32, %arg1: memref<2xi32, #tpu.memory_space<smem>>) -> (i32, i32, i32) {
    %c0_i32 = arith.constant 0 : i32
    %c0_i32_0 = arith.constant 0 : i32
    %c0_i32_1 = arith.constant 0 : i32
    %c0_i32_2 = arith.constant 0 : i32
    return %c0_i32, %c0_i32_0, %c0_i32_1 : i32, i32, i32
  }
  func.func @transform_6(%arg0: i32, %arg1: memref<2xi32, #tpu.memory_space<smem>>) -> (i32, i32, i32, i32) {
    %c0_i32 = arith.constant 0 : i32
    %c0_i32_0 = arith.constant 0 : i32
    %c0_i32_1 = arith.constant 0 : i32
    %c0_i32_2 = arith.constant 0 : i32
    %c0_i32_3 = arith.constant 0 : i32
    return %c0_i32, %c0_i32_0, %c0_i32_1, %c0_i32_2 : i32, i32, i32, i32
  }
  func.func @transform_7(%arg0: i32, %arg1: memref<2xi32, #tpu.memory_space<smem>>) -> (i32, i32, i32) {
    %c0_i32 = arith.constant 0 : i32
    %c0_i32_0 = arith.constant 0 : i32
    %c0_i32_1 = arith.constant 0 : i32
    %c0_i32_2 = arith.constant 0 : i32
    return %c0_i32, %c0_i32_0, %c0_i32_1 : i32, i32, i32
  }
  func.func @transform_8(%arg0: i32, %arg1: memref<2xi32, #tpu.memory_space<smem>>) -> (i32, i32, i32) {
    %c0_i32 = arith.constant 0 : i32
    %c0_i32_0 = arith.constant 0 : i32
    %c0_i32_1 = arith.constant 0 : i32
    %c0_i32_2 = arith.constant 0 : i32
    return %c0_i32, %c0_i32_0, %c0_i32_1 : i32, i32, i32
  }
  func.func @transform_9(%arg0: i32, %arg1: memref<2xi32, #tpu.memory_space<smem>>) -> (i32, i32, i32) {
    %c0_i32 = arith.constant 0 : i32
    %c0_i32_0 = arith.constant 0 : i32
    %c0_i32_1 = arith.constant 0 : i32
    %c0_i32_2 = arith.constant 0 : i32
    return %c0_i32, %c0_i32_0, %c0_i32_1 : i32, i32, i32
  }
  func.func @transform_10(%arg0: i32, %arg1: memref<2xi32, #tpu.memory_space<smem>>) -> (i32, i32, i32) {
    %c0_i32 = arith.constant 0 : i32
    %c0_i32_0 = arith.constant 0 : i32
    %c0_i32_1 = arith.constant 0 : i32
    %c0_i32_2 = arith.constant 0 : i32
    return %c0_i32, %c0_i32_0, %c0_i32_1 : i32, i32, i32
  }
  func.func @transform_11(%arg0: i32, %arg1: memref<2xi32, #tpu.memory_space<smem>>) -> (i32, i32, i32) {
    %c0_i32 = arith.constant 0 : i32
    %c0_i32_0 = arith.constant 0 : i32
    %c0_i32_1 = arith.constant 0 : i32
    %c0_i32_2 = arith.constant 0 : i32
    return %c0_i32, %c0_i32_0, %c0_i32_1 : i32, i32, i32
  }
  func.func @transform_12(%arg0: i32, %arg1: memref<2xi32, #tpu.memory_space<smem>>) -> (i32, i32, i32) {
    %c0_i32 = arith.constant 0 : i32
    %c0_i32_0 = arith.constant 0 : i32
    %c0_i32_1 = arith.constant 0 : i32
    %c0_i32_2 = arith.constant 0 : i32
    return %c0_i32, %c0_i32_0, %c0_i32_1 : i32, i32, i32
  }
  func.func @transform_13(%arg0: i32, %arg1: memref<2xi32, #tpu.memory_space<smem>>) -> (i32, i32, i32) {
    %c0_i32 = arith.constant 0 : i32
    %c0_i32_0 = arith.constant 0 : i32
    %c0_i32_1 = arith.constant 0 : i32
    %c0_i32_2 = arith.constant 0 : i32
    return %c0_i32, %c0_i32_0, %c0_i32_1 : i32, i32, i32
  }
  func.func @transform_14(%arg0: i32, %arg1: memref<2xi32, #tpu.memory_space<smem>>) -> (i32, i32, i32) {
    %c0_i32 = arith.constant 0 : i32
    %c0_i32_0 = arith.constant 0 : i32
    %c0_i32_1 = arith.constant 0 : i32
    %c0_i32_2 = arith.constant 0 : i32
    return %c0_i32, %c0_i32_0, %c0_i32_1 : i32, i32, i32
  }
  func.func @transform_15(%arg0: i32, %arg1: memref<2xi32, #tpu.memory_space<smem>>) -> (i32, i32, i32) {
    %c0_i32 = arith.constant 0 : i32
    %c0_i32_0 = arith.constant 0 : i32
    %c0_i32_1 = arith.constant 0 : i32
    %c0_i32_2 = arith.constant 0 : i32
    return %c0_i32, %c0_i32_0, %c0_i32_1 : i32, i32, i32
  }
  func.func @transform_16(%arg0: i32, %arg1: memref<2xi32, #tpu.memory_space<smem>>) -> (i32, i32) {
    %c0_i32 = arith.constant 0 : i32
    %c0_i32_0 = arith.constant 0 : i32
    %c0_i32_1 = arith.constant 0 : i32
    return %c0_i32, %c0_i32_0 : i32, i32
  }
  func.func @transform_17(%arg0: i32, %arg1: memref<2xi32, #tpu.memory_space<smem>>) -> (i32, i32) {
    %c0_i32 = arith.constant 0 : i32
    %c0_i32_0 = arith.constant 0 : i32
    %c0_i32_1 = arith.constant 0 : i32
    return %c0_i32, %c0_i32_0 : i32, i32
  }
  func.func @transform_18(%arg0: i32, %arg1: memref<2xi32, #tpu.memory_space<smem>>) -> (i32, i32) {
    %c0_i32 = arith.constant 0 : i32
    %c0_i32_0 = arith.constant 0 : i32
    return %arg0, %c0_i32 : i32, i32
  }
}

</mosaic_0001>

<llo_original>
// kernel: _encoder_forward.1
$region0: #{_encoder_forward.1}
  #allocation0 [shape = 'u32[]', space=smem, size = 0x4, offset = 0x4, fixed_abs, tag = 'smem constant byte address 0x4 - core index']
  #allocation1 [shape = 'u32[144,128]{1,0:T(1,128)}', space=vmem, size = 0x12000, scoped, tag = 'internal scratch']
  #allocation2 [shape = 's32[1]{0}', space=sflag, size = 0x4, scoped, tag = 'scoped memory for _encoder_forward.1']
  #allocation3 [shape = 'u8[512]{0}', space=smem, size = 0x200, scoped, tag = 'prefetched SMEM operand 0']
  %s0 = inlined_call_operand.vmem [shape: s32[2], index: 0, kind: input, shape index: {}]
  %s1 = inlined_call_operand.vmem [shape: f32[16,3], index: 1, kind: input, shape index: {}]
  %s2 = inlined_call_operand.vmem [shape: f32[16,32], index: 2, kind: input, shape index: {}]
  %s3 = inlined_call_operand.vmem [shape: f32[3,32], index: 3, kind: input, shape index: {}]
  %s4 = inlined_call_operand.vmem [shape: f32[1,32], index: 4, kind: input, shape index: {}]
  %s5 = inlined_call_operand.vmem [shape: bf16[2,32,96], index: 5, kind: input, shape index: {}]
  %s6 = inlined_call_operand.vmem [shape: f32[2,1,96], index: 6, kind: input, shape index: {}]
  %s7 = inlined_call_operand.vmem [shape: bf16[2,4,8,32], index: 7, kind: input, shape index: {}]
  %s8 = inlined_call_operand.vmem [shape: f32[2,1,32], index: 8, kind: input, shape index: {}]
  %s9 = inlined_call_operand.vmem [shape: bf16[2,32,64], index: 9, kind: input, shape index: {}]
  %s10 = inlined_call_operand.vmem [shape: f32[2,1,64], index: 10, kind: input, shape index: {}]
  %s11 = inlined_call_operand.vmem [shape: bf16[2,64,32], index: 11, kind: input, shape index: {}]
  %s12 = inlined_call_operand.vmem [shape: f32[2,1,32], index: 12, kind: input, shape index: {}]
  %s13 = inlined_call_operand.vmem [shape: f32[2,1,32], index: 13, kind: input, shape index: {}]
  %s14 = inlined_call_operand.vmem [shape: f32[2,1,32], index: 14, kind: input, shape index: {}]
  %s15 = inlined_call_operand.vmem [shape: f32[2,1,32], index: 15, kind: input, shape index: {}]
  %s16 = inlined_call_operand.vmem [shape: f32[2,1,32], index: 16, kind: input, shape index: {}]
  %s17 = inlined_call_operand.vmem [shape: f32[1,32], index: 17, kind: input, shape index: {}]
  %s18 = inlined_call_operand.vmem [shape: f32[1,32], index: 18, kind: input, shape index: {}]
  %s19 = inlined_call_operand.vmem [shape: f32[16,32], index: 19, kind: output, shape index: {}]
  %s20 = sld [smem:[#allocation0]]
  $region105: #{_encoder_forward.1} parent=0
    _
  %s22 = ssub.s32 1, %s20
  %s23 = scalar_select 0, %s22, %s20
  %s24 = sshll.u32 %s0, 4
  %s25 = int_to_ptr.vmem [resolvable:$true] %s24
  %27 = dma.vmem_to_smem %s25, 16, [#allocation3], [#allocation2]
  %28 = dma.done [#allocation2], 16
  %29 = sfence
  loop: start=0, step=1, limit=4
  $region2: #{_encoder_forward.1} parent=0 // loop_pre_header
    _
  $region3: #{_encoder_forward.1} parent=0 // loop_header
    %s31 = sphi 0, %s35
    %p32 = scmp.ge.s32.totalorder %s31, 4
    %s41 = sphi 0, %s43
    %s44 = sphi 0, %s41
    %s45 = sphi 0, %s44
    %s61 = sphi 0, %s45
    %s67 = sphi 0, %s69
    %s70 = sphi 0, %s67
    %s71 = sphi 0, %s70
    %s87 = sphi 0, %s71
    %s91 = sphi 0, %s91
    %s93 = sphi 0, %s91
    %s94 = sphi 0, %s93
    %s108 = sphi 0, %s94
    %s112 = sphi 0, %s112
    %s114 = sphi 0, %s112
    %s115 = sphi 0, %s114
    %s129 = sphi 0, %s115
    %s133 = sphi 0, %s133
    %s135 = sphi 0, %s133
    %s136 = sphi 0, %s135
    %s150 = sphi 0, %s136
    %s154 = sphi 0, %s154
    %s156 = sphi 0, %s154
    %s157 = sphi 0, %s156
    %s171 = sphi 0, %s157
    %s175 = sphi 0, %s175
    %s177 = sphi 0, %s175
    %s178 = sphi 0, %s177
    %s192 = sphi 0, %s178
    %s196 = sphi 0, %s196
    %s198 = sphi 0, %s196
    %s199 = sphi 0, %s198
    %s213 = sphi 0, %s199
    %s217 = sphi 0, %s217
    %s219 = sphi 0, %s217
    %s220 = sphi 0, %s219
    %s234 = sphi 0, %s220
    %s238 = sphi 0, %s238
    %s240 = sphi 0, %s238
    %s241 = sphi 0, %s240
    %s255 = sphi 0, %s241
    %s259 = sphi 0, %s259
    %s261 = sphi 0, %s259
    %s262 = sphi 0, %s261
    %s276 = sphi 0, %s262
    %s280 = sphi 0, %s280
    %s282 = sphi 0, %s280
    %s283 = sphi 0, %s282
    %s297 = sphi 0, %s283
    %s301 = sphi 0, %s301
    %s303 = sphi 0, %s301
    %s304 = sphi 0, %s303
    %s318 = sphi 0, %s304
    %s322 = sphi 0, %s322
    %s324 = sphi 0, %s322
    %s325 = sphi 0, %s324
    %s339 = sphi 0, %s325
    %s343 = sphi 0, %s343
    %s345 = sphi 0, %s343
    %s346 = sphi 0, %s345
    %s360 = sphi 0, %s346
    %s364 = sphi 0, %s364
    %s366 = sphi 0, %s364
    %s367 = sphi 0, %s366
    %s381 = sphi 0, %s367
    %s385 = sphi 0, %s385
    %s387 = sphi 0, %s385
    %s388 = sphi 0, %s387
    %s402 = sphi 0, %s388
    %s406 = sphi 0, %s406
    %s408 = sphi 0, %s406
    %s409 = sphi 0, %s408
    %s423 = sphi 0, %s409
    %s429 = sphi 0, %s431
    %s432 = sphi 0, %s429
    %s433 = sphi 0, %s432
    %s449 = sphi 0, %s433
  $region4: #{_encoder_forward.1} parent=0 // loop_header_branch
    %34 = sbr.rel (%p32) target = $region8
  $region5: #{_encoder_forward.1} parent=0 // loop_body
    %s36 = ssub.s32 %s31, 1
    %s37 = ssub.s32 %s31, 2
    %s38 = sadd.s32 %s31, 1
    %s39 = ssub.s32 %s31, %s38
    %p40 = scmp.eq.s32.totalorder %s39, 0
    %s42 = sadd.s32 %s41, 1
    %s43 = scalar_select %p40, %s41, %s42
    %p46 = pneg %p40
    %p47 = scmp.eq.s32.totalorder %s31, 1
    %p48 = por %p46, %p47
    %p49 = scmp.ne.s32.totalorder %s41, %s44
    %p50 = scmp.eq.s32.totalorder %s31, 0
    %p51 = por %p49, %p50
    %p52 = scmp.ne.s32.totalorder %s41, %s44
    %p53 = scmp.eq.s32.totalorder %s36, 1
    %p54 = por %p52, %p53
    %p55 = scmp.ne.s32.totalorder %s44, %s45
    %p56 = scmp.eq.s32.totalorder %s36, 0
    %p57 = por %p55, %p56
    %p58 = scmp.ne.s32.totalorder %s44, %s45
    %p59 = scmp.eq.s32.totalorder %s37, 1
    %p60 = por %p58, %p59
    %p62 = scmp.ne.s32.totalorder %s45, %s61
    %p63 = scmp.eq.s32.totalorder %s37, 0
    %p64 = por %p62, %p63
    %s65 = ssub.s32 %s31, %s38
    %p66 = scmp.eq.s32.totalorder %s65, 0
    %s68 = sadd.s32 %s67, 1
    %s69 = scalar_select %p66, %s67, %s68
    %p72 = pneg %p66
    %p73 = scmp.eq.s32.totalorder %s31, 1
    %p74 = por %p72, %p73
    %p75 = scmp.ne.s32.totalorder %s67, %s70
    %p76 = scmp.eq.s32.totalorder %s31, 0
    %p77 = por %p75, %p76
    %p78 = scmp.ne.s32.totalorder %s67, %s70
    %p79 = scmp.eq.s32.totalorder %s36, 1
    %p80 = por %p78, %p79
    %p81 = scmp.ne.s32.totalorder %s70, %s71
    %p82 = scmp.eq.s32.totalorder %s36, 0
    %p83 = por %p81, %p82
    %p84 = scmp.ne.s32.totalorder %s70, %s71
    %p85 = scmp.eq.s32.totalorder %s37, 1
    %p86 = por %p84, %p85
    %p88 = scmp.ne.s32.totalorder %s71, %s87
    %p89 = scmp.eq.s32.totalorder %s37, 0
    %p90 = por %p88, %p89
    %s92 = sadd.s32 %s91, 1
    %p95 = scmp.eq.s32.totalorder %s31, 1
    %p96 = scmp.ne.s32.totalorder %s91, %s93
    %p97 = scmp.eq.s32.totalorder %s31, 0
    %p98 = por %p96, %p97
    %p99 = scmp.ne.s32.totalorder %s91, %s93
    %p100 = scmp.eq.s32.totalorder %s36, 1
    %p101 = por %p99, %p100
    %p102 = scmp.ne.s32.totalorder %s93, %s94
    %p103 = scmp.eq.s32.totalorder %s36, 0
    %p104 = por %p102, %p103
    %p105 = scmp.ne.s32.totalorder %s93, %s94
    %p106 = scmp.eq.s32.totalorder %s37, 1
    %p107 = por %p105, %p106
    %p109 = scmp.ne.s32.totalorder %s94, %s108
    %p110 = scmp.eq.s32.totalorder %s37, 0
    %p111 = por %p109, %p110
    %s113 = sadd.s32 %s112, 1
    %p116 = scmp.eq.s32.totalorder %s31, 1
    %p117 = scmp.ne.s32.totalorder %s112, %s114
    %p118 = scmp.eq.s32.totalorder %s31, 0
    %p119 = por %p117, %p118
    %p120 = scmp.ne.s32.totalorder %s112, %s114
    %p121 = scmp.eq.s32.totalorder %s36, 1
    %p122 = por %p120, %p121
    %p123 = scmp.ne.s32.totalorder %s114, %s115
    %p124 = scmp.eq.s32.totalorder %s36, 0
    %p125 = por %p123, %p124
    %p126 = scmp.ne.s32.totalorder %s114, %s115
    %p127 = scmp.eq.s32.totalorder %s37, 1
    %p128 = por %p126, %p127
    %p130 = scmp.ne.s32.totalorder %s115, %s129
    %p131 = scmp.eq.s32.totalorder %s37, 0
    %p132 = por %p130, %p131
    %s134 = sadd.s32 %s133, 1
    %p137 = scmp.eq.s32.totalorder %s31, 1
    %p138 = scmp.ne.s32.totalorder %s133, %s135
    %p139 = scmp.eq.s32.totalorder %s31, 0
    %p140 = por %p138, %p139
    %p141 = scmp.ne.s32.totalorder %s133, %s135
    %p142 = scmp.eq.s32.totalorder %s36, 1
    %p143 = por %p141, %p142
    %p144 = scmp.ne.s32.totalorder %s135, %s136
    %p145 = scmp.eq.s32.totalorder %s36, 0
    %p146 = por %p144, %p145
    %p147 = scmp.ne.s32.totalorder %s135, %s136
    %p148 = scmp.eq.s32.totalorder %s37, 1
    %p149 = por %p147, %p148
    %p151 = scmp.ne.s32.totalorder %s136, %s150
    %p152 = scmp.eq.s32.totalorder %s37, 0
    %p153 = por %p151, %p152
    %s155 = sadd.s32 %s154, 1
    %p158 = scmp.eq.s32.totalorder %s31, 1
    %p159 = scmp.ne.s32.totalorder %s154, %s156
    %p160 = scmp.eq.s32.totalorder %s31, 0
    %p161 = por %p159, %p160
    %p162 = scmp.ne.s32.totalorder %s154, %s156
    %p163 = scmp.eq.s32.totalorder %s36, 1
    %p164 = por %p162, %p163
    %p165 = scmp.ne.s32.totalorder %s156, %s157
    %p166 = scmp.eq.s32.totalorder %s36, 0
    %p167 = por %p165, %p166
    %p168 = scmp.ne.s32.totalorder %s156, %s157
    %p169 = scmp.eq.s32.totalorder %s37, 1
    %p170 = por %p168, %p169
    %p172 = scmp.ne.s32.totalorder %s157, %s171
    %p173 = scmp.eq.s32.totalorder %s37, 0
    %p174 = por %p172, %p173
    %s176 = sadd.s32 %s175, 1
    %p179 = scmp.eq.s32.totalorder %s31, 1
    %p180 = scmp.ne.s32.totalorder %s175, %s177
    %p181 = scmp.eq.s32.totalorder %s31, 0
    %p182 = por %p180, %p181
    %p183 = scmp.ne.s32.totalorder %s175, %s177
    %p184 = scmp.eq.s32.totalorder %s36, 1
    %p185 = por %p183, %p184
    %p186 = scmp.ne.s32.totalorder %s177, %s178
    %p187 = scmp.eq.s32.totalorder %s36, 0
    %p188 = por %p186, %p187
    %p189 = scmp.ne.s32.totalorder %s177, %s178
    %p190 = scmp.eq.s32.totalorder %s37, 1
    %p191 = por %p189, %p190
    %p193 = scmp.ne.s32.totalorder %s178, %s192
    %p194 = scmp.eq.s32.totalorder %s37, 0
    %p195 = por %p193, %p194
    %s197 = sadd.s32 %s196, 1
    %p200 = scmp.eq.s32.totalorder %s31, 1
    %p201 = scmp.ne.s32.totalorder %s196, %s198
    %p202 = scmp.eq.s32.totalorder %s31, 0
    %p203 = por %p201, %p202
    %p204 = scmp.ne.s32.totalorder %s196, %s198
    %p205 = scmp.eq.s32.totalorder %s36, 1
    %p206 = por %p204, %p205
    %p207 = scmp.ne.s32.totalorder %s198, %s199
    %p208 = scmp.eq.s32.totalorder %s36, 0
    %p209 = por %p207, %p208
    %p210 = scmp.ne.s32.totalorder %s198, %s199
    %p211 = scmp.eq.s32.totalorder %s37, 1
    %p212 = por %p210, %p211
    %p214 = scmp.ne.s32.totalorder %s199, %s213
    %p215 = scmp.eq.s32.totalorder %s37, 0
    %p216 = por %p214, %p215
    %s218 = sadd.s32 %s217, 1
    %p221 = scmp.eq.s32.totalorder %s31, 1
    %p222 = scmp.ne.s32.totalorder %s217, %s219
    %p223 = scmp.eq.s32.totalorder %s31, 0
    %p224 = por %p222, %p223
    %p225 = scmp.ne.s32.totalorder %s217, %s219
    %p226 = scmp.eq.s32.totalorder %s36, 1
    %p227 = por %p225, %p226
    %p228 = scmp.ne.s32.totalorder %s219, %s220
    %p229 = scmp.eq.s32.totalorder %s36, 0
    %p230 = por %p228, %p229
    %p231 = scmp.ne.s32.totalorder %s219, %s220
    %p232 = scmp.eq.s32.totalorder %s37, 1
    %p233 = por %p231, %p232
    %p235 = scmp.ne.s32.totalorder %s220, %s234
    %p236 = scmp.eq.s32.totalorder %s37, 0
    %p237 = por %p235, %p236
    %s239 = sadd.s32 %s238, 1
    %p242 = scmp.eq.s32.totalorder %s31, 1
    %p243 = scmp.ne.s32.totalorder %s238, %s240
    %p244 = scmp.eq.s32.totalorder %s31, 0
    %p245 = por %p243, %p244
    %p246 = scmp.ne.s32.totalorder %s238, %s240
    %p247 = scmp.eq.s32.totalorder %s36, 1
    %p248 = por %p246, %p247
    %p249 = scmp.ne.s32.totalorder %s240, %s241
    %p250 = scmp.eq.s32.totalorder %s36, 0
    %p251 = por %p249, %p250
    %p252 = scmp.ne.s32.totalorder %s240, %s241
    %p253 = scmp.eq.s32.totalorder %s37, 1
    %p254 = por %p252, %p253
    %p256 = scmp.ne.s32.totalorder %s241, %s255
    %p257 = scmp.eq.s32.totalorder %s37, 0
    %p258 = por %p256, %p257
    %s260 = sadd.s32 %s259, 1
    %p263 = scmp.eq.s32.totalorder %s31, 1
    %p264 = scmp.ne.s32.totalorder %s259, %s261
    %p265 = scmp.eq.s32.totalorder %s31, 0
    %p266 = por %p264, %p265
    %p267 = scmp.ne.s32.totalorder %s259, %s261
    %p268 = scmp.eq.s32.totalorder %s36, 1
    %p269 = por %p267, %p268
    %p270 = scmp.ne.s32.totalorder %s261, %s262
    %p271 = scmp.eq.s32.totalorder %s36, 0
    %p272 = por %p270, %p271
    %p273 = scmp.ne.s32.totalorder %s261, %s262
    %p274 = scmp.eq.s32.totalorder %s37, 1
    %p275 = por %p273, %p274
    %p277 = scmp.ne.s32.totalorder %s262, %s276
    %p278 = scmp.eq.s32.totalorder %s37, 0
    %p279 = por %p277, %p278
    %s281 = sadd.s32 %s280, 1
    %p284 = scmp.eq.s32.totalorder %s31, 1
    %p285 = scmp.ne.s32.totalorder %s280, %s282
    %p286 = scmp.eq.s32.totalorder %s31, 0
    %p287 = por %p285, %p286
    %p288 = scmp.ne.s32.totalorder %s280, %s282
    %p289 = scmp.eq.s32.totalorder %s36, 1
    %p290 = por %p288, %p289
    %p291 = scmp.ne.s32.totalorder %s282, %s283
    %p292 = scmp.eq.s32.totalorder %s36, 0
    %p293 = por %p291, %p292
    %p294 = scmp.ne.s32.totalorder %s282, %s283
    %p295 = scmp.eq.s32.totalorder %s37, 1
    %p296 = por %p294, %p295
    %p298 = scmp.ne.s32.totalorder %s283, %s297
    %p299 = scmp.eq.s32.totalorder %s37, 0
    %p300 = por %p298, %p299
    %s302 = sadd.s32 %s301, 1
    %p305 = scmp.eq.s32.totalorder %s31, 1
    %p306 = scmp.ne.s32.totalorder %s301, %s303
    %p307 = scmp.eq.s32.totalorder %s31, 0
    %p308 = por %p306, %p307
    %p309 = scmp.ne.s32.totalorder %s301, %s303
    %p310 = scmp.eq.s32.totalorder %s36, 1
    %p311 = por %p309, %p310
    %p312 = scmp.ne.s32.totalorder %s303, %s304
    %p313 = scmp.eq.s32.totalorder %s36, 0
    %p314 = por %p312, %p313
    %p315 = scmp.ne.s32.totalorder %s303, %s304
    %p316 = scmp.eq.s32.totalorder %s37, 1
    %p317 = por %p315, %p316
    %p319 = scmp.ne.s32.totalorder %s304, %s318
    %p320 = scmp.eq.s32.totalorder %s37, 0
    %p321 = por %p319, %p320
    %s323 = sadd.s32 %s322, 1
    %p326 = scmp.eq.s32.totalorder %s31, 1
    %p327 = scmp.ne.s32.totalorder %s322, %s324
    %p328 = scmp.eq.s32.totalorder %s31, 0
    %p329 = por %p327, %p328
    %p330 = scmp.ne.s32.totalorder %s322, %s324
    %p331 = scmp.eq.s32.totalorder %s36, 1
    %p332 = por %p330, %p331
    %p333 = scmp.ne.s32.totalorder %s324, %s325
    %p334 = scmp.eq.s32.totalorder %s36, 0
    %p335 = por %p333, %p334
    %p336 = scmp.ne.s32.totalorder %s324, %s325
    %p337 = scmp.eq.s32.totalorder %s37, 1
    %p338 = por %p336, %p337
    %p340 = scmp.ne.s32.totalorder %s325, %s339
    %p341 = scmp.eq.s32.totalorder %s37, 0
    %p342 = por %p340, %p341
    %s344 = sadd.s32 %s343, 1
    %p347 = scmp.eq.s32.totalorder %s31, 1
    %p348 = scmp.ne.s32.totalorder %s343, %s345
    %p349 = scmp.eq.s32.totalorder %s31, 0
    %p350 = por %p348, %p349
    %p351 = scmp.ne.s32.totalorder %s343, %s345
    %p352 = scmp.eq.s32.totalorder %s36, 1
    %p353 = por %p351, %p352
    %p354 = scmp.ne.s32.totalorder %s345, %s346
    %p355 = scmp.eq.s32.totalorder %s36, 0
    %p356 = por %p354, %p355
    %p357 = scmp.ne.s32.totalorder %s345, %s346
    %p358 = scmp.eq.s32.totalorder %s37, 1
    %p359 = por %p357, %p358
    %p361 = scmp.ne.s32.totalorder %s346, %s360
    %p362 = scmp.eq.s32.totalorder %s37, 0
    %p363 = por %p361, %p362
    %s365 = sadd.s32 %s364, 1
    %p368 = scmp.eq.s32.totalorder %s31, 1
    %p369 = scmp.ne.s32.totalorder %s364, %s366
    %p370 = scmp.eq.s32.totalorder %s31, 0
    %p371 = por %p369, %p370
    %p372 = scmp.ne.s32.totalorder %s364, %s366
    %p373 = scmp.eq.s32.totalorder %s36, 1
    %p374 = por %p372, %p373
    %p375 = scmp.ne.s32.totalorder %s366, %s367
    %p376 = scmp.eq.s32.totalorder %s36, 0
    %p377 = por %p375, %p376
    %p378 = scmp.ne.s32.totalorder %s366, %s367
    %p379 = scmp.eq.s32.totalorder %s37, 1
    %p380 = por %p378, %p379
    %p382 = scmp.ne.s32.totalorder %s367, %s381
    %p383 = scmp.eq.s32.totalorder %s37, 0
    %p384 = por %p382, %p383
    %s386 = sadd.s32 %s385, 1
    %p389 = scmp.eq.s32.totalorder %s31, 1
    %p390 = scmp.ne.s32.totalorder %s385, %s387
    %p391 = scmp.eq.s32.totalorder %s31, 0
    %p392 = por %p390, %p391
    %p393 = scmp.ne.s32.totalorder %s385, %s387
    %p394 = scmp.eq.s32.totalorder %s36, 1
    %p395 = por %p393, %p394
    %p396 = scmp.ne.s32.totalorder %s387, %s388
    %p397 = scmp.eq.s32.totalorder %s36, 0
    %p398 = por %p396, %p397
    %p399 = scmp.ne.s32.totalorder %s387, %s388
    %p400 = scmp.eq.s32.totalorder %s37, 1
    %p401 = por %p399, %p400
    %p403 = scmp.ne.s32.totalorder %s388, %s402
    %p404 = scmp.eq.s32.totalorder %s37, 0
    %p405 = por %p403, %p404
    %s407 = sadd.s32 %s406, 1
    %p410 = scmp.eq.s32.totalorder %s31, 1
    %p411 = scmp.ne.s32.totalorder %s406, %s408
    %p412 = scmp.eq.s32.totalorder %s31, 0
    %p413 = por %p411, %p412
    %p414 = scmp.ne.s32.totalorder %s406, %s408
    %p415 = scmp.eq.s32.totalorder %s36, 1
    %p416 = por %p414, %p415
    %p417 = scmp.ne.s32.totalorder %s408, %s409
    %p418 = scmp.eq.s32.totalorder %s36, 0
    %p419 = por %p417, %p418
    %p420 = scmp.ne.s32.totalorder %s408, %s409
    %p421 = scmp.eq.s32.totalorder %s37, 1
    %p422 = por %p420, %p421
    %p424 = scmp.ne.s32.totalorder %s409, %s423
    %p425 = scmp.eq.s32.totalorder %s37, 0
    %p426 = por %p424, %p425
    %s427 = ssub.s32 %s31, %s38
    %p428 = scmp.eq.s32.totalorder %s427, 0
    %s430 = sadd.s32 %s429, 1
    %s431 = scalar_select %p428, %s429, %s430
    %p434 = pneg %p428
    %p435 = scmp.eq.s32.totalorder %s31, 1
    %p436 = por %p434, %p435
    %p437 = scmp.ne.s32.totalorder %s429, %s432
    %p438 = scmp.eq.s32.totalorder %s31, 0
    %p439 = por %p437, %p438
    %p440 = scmp.ne.s32.totalorder %s429, %s432
    %p441 = scmp.eq.s32.totalorder %s36, 1
    %p442 = por %p440, %p441
    %p443 = scmp.ne.s32.totalorder %s432, %s433
    %p444 = scmp.eq.s32.totalorder %s36, 0
    %p445 = por %p443, %p444
    %p446 = scmp.ne.s32.totalorder %s432, %s433
    %p447 = scmp.eq.s32.totalorder %s37, 1
    %p448 = por %p446, %p447
    %p450 = scmp.ne.s32.totalorder %s433, %s449
    %p451 = scmp.eq.s32.totalorder %s37, 0
    %p452 = por %p450, %p451
    %p453 = scmp.le.s32.totalorder 1, %s31
    %p454 = scmp.lt.s32.totalorder %s31, 3
    %p455 = pnand %p453, %p454
    %p456 = pneg %p455
    // Predicated region
    $region9: #{_encoder_forward.1} parent=5 // pred_check
      _
    $region10: #{_encoder_forward.1} parent=5 // pred_check_branch
      %458 = sbr.rel (%p455) target = $region12
    $region11: #{_encoder_forward.1} parent=5 // pred_region
      %s459 = ssub.s32 %s31, 1
      // Predicated region
      $region13: #{_encoder_forward.1} parent=11 // pred_check
        %p460 = pneg %p104
      $region14: #{_encoder_forward.1} parent=11 // pred_check_branch
        %462 = sbr.rel (%p460) target = $region16
      $region15: #{_encoder_forward.1} parent=11 // pred_region
        _
      $region16: #{_encoder_forward.1} parent=11 // pred_fallthru
        _
      // Predicated region
      $region17: #{_encoder_forward.1} parent=11 // pred_check
        %p463 = pneg %p125
      $region18: #{_encoder_forward.1} parent=11 // pred_check_branch
        %465 = sbr.rel (%p463) target = $region20
      $region19: #{_encoder_forward.1} parent=11 // pred_region
        _
      $region20: #{_encoder_forward.1} parent=11 // pred_fallthru
        _
      // Predicated region
      $region21: #{_encoder_forward.1} parent=11 // pred_check
        %p466 = pneg %p146
      $region22: #{_encoder_forward.1} parent=11 // pred_check_branch
        %468 = sbr.rel (%p466) target = $region24
      $region23: #{_encoder_forward.1} parent=11 // pred_region
        _
      $region24: #{_encoder_forward.1} parent=11 // pred_fallthru
        _
      // Predicated region
      $region25: #{_encoder_forward.1} parent=11 // pred_check
        %p469 = pneg %p167
      $region26: #{_encoder_forward.1} parent=11 // pred_check_branch
        %471 = sbr.rel (%p469) target = $region28
      $region27: #{_encoder_forward.1} parent=11 // pred_region
        _
      $region28: #{_encoder_forward.1} parent=11 // pred_fallthru
        _
      // Predicated region
      $region29: #{_encoder_forward.1} parent=11 // pred_check
        %p472 = pneg %p188
      $region30: #{_encoder_forward.1} parent=11 // pred_check_branch
        %474 = sbr.rel (%p472) target = $region32
      $region31: #{_encoder_forward.1} parent=11 // pred_region
        _
      $region32: #{_encoder_forward.1} parent=11 // pred_fallthru
        _
      // Predicated region
      $region33: #{_encoder_forward.1} parent=11 // pred_check
        %p475 = pneg %p209
      $region34: #{_encoder_forward.1} parent=11 // pred_check_branch
        %477 = sbr.rel (%p475) target = $region36
      $region35: #{_encoder_forward.1} parent=11 // pred_region
        _
      $region36: #{_encoder_forward.1} parent=11 // pred_fallthru
        _
      // Predicated region
      $region37: #{_encoder_forward.1} parent=11 // pred_check
        %p478 = pneg %p230
      $region38: #{_encoder_forward.1} parent=11 // pred_check_branch
        %480 = sbr.rel (%p478) target = $region40
      $region39: #{_encoder_forward.1} parent=11 // pred_region
        _
      $region40: #{_encoder_forward.1} parent=11 // pred_fallthru
        _
      // Predicated region
      $region41: #{_encoder_forward.1} parent=11 // pred_check
        %p481 = pneg %p251
      $region42: #{_encoder_forward.1} parent=11 // pred_check_branch
        %483 = sbr.rel (%p481) target = $region44
      $region43: #{_encoder_forward.1} parent=11 // pred_region
        _
      $region44: #{_encoder_forward.1} parent=11 // pred_fallthru
        _
      // Predicated region
      $region45: #{_encoder_forward.1} parent=11 // pred_check
        %p484 = pneg %p272
      $region46: #{_encoder_forward.1} parent=11 // pred_check_branch
        %486 = sbr.rel (%p484) target = $region48
      $region47: #{_encoder_forward.1} parent=11 // pred_region
        _
      $region48: #{_encoder_forward.1} parent=11 // pred_fallthru
        _
      // Predicated region
      $region49: #{_encoder_forward.1} parent=11 // pred_check
        %p487 = pneg %p293
      $region50: #{_encoder_forward.1} parent=11 // pred_check_branch
        %489 = sbr.rel (%p487) target = $region52
      $region51: #{_encoder_forward.1} parent=11 // pred_region
        _
      $region52: #{_encoder_forward.1} parent=11 // pred_fallthru
        _
      // Predicated region
      $region53: #{_encoder_forward.1} parent=11 // pred_check
        %p490 = pneg %p314
      $region54: #{_encoder_forward.1} parent=11 // pred_check_branch
        %492 = sbr.rel (%p490) target = $region56
      $region55: #{_encoder_forward.1} parent=11 // pred_region
        _
      $region56: #{_encoder_forward.1} parent=11 // pred_fallthru
        _
      // Predicated region
      $region57: #{_encoder_forward.1} parent=11 // pred_check
        %p493 = pneg %p335
      $region58: #{_encoder_forward.1} parent=11 // pred_check_branch
        %495 = sbr.rel (%p493) target = $region60
      $region59: #{_encoder_forward.1} parent=11 // pred_region
        _
      $region60: #{_encoder_forward.1} parent=11 // pred_fallthru
        _
      // Predicated region
      $region61: #{_encoder_forward.1} parent=11 // pred_check
        %p496 = pneg %p356
      $region62: #{_encoder_forward.1} parent=11 // pred_check_branch
        %498 = sbr.rel (%p496) target = $region64
      $region63: #{_encoder_forward.1} parent=11 // pred_region
        _
      $region64: #{_encoder_forward.1} parent=11 // pred_fallthru
        _
      // Predicated region
      $region65: #{_encoder_forward.1} parent=11 // pred_check
        %p499 = pneg %p377
      $region66: #{_encoder_forward.1} parent=11 // pred_check_branch
        %501 = sbr.rel (%p499) target = $region68
      $region67: #{_encoder_forward.1} parent=11 // pred_region
        _
      $region68: #{_encoder_forward.1} parent=11 // pred_fallthru
        _
      // Predicated region
      $region69: #{_encoder_forward.1} parent=11 // pred_check
        %p502 = pneg %p398
      $region70: #{_encoder_forward.1} parent=11 // pred_check_branch
        %504 = sbr.rel (%p502) target = $region72
      $region71: #{_encoder_forward.1} parent=11 // pred_region
        _
      $region72: #{_encoder_forward.1} parent=11 // pred_fallthru
        _
      // Predicated region
      $region73: #{_encoder_forward.1} parent=11 // pred_check
        %p505 = pneg %p419
      $region74: #{_encoder_forward.1} parent=11 // pred_check_branch
        %507 = sbr.rel (%p505) target = $region76
      $region75: #{_encoder_forward.1} parent=11 // pred_region
        _
      $region76: #{_encoder_forward.1} parent=11 // pred_fallthru
        _
    $region12: #{_encoder_forward.1} parent=5 // pred_fallthru
      _
    %p508 = scmp.lt.s32.totalorder %s31, 2
    // Predicated region
    $region77: #{_encoder_forward.1} parent=5 // pred_check
      %p509 = pneg %p508
    $region78: #{_encoder_forward.1} parent=5 // pred_check_branch
      %511 = sbr.rel (%p509) target = $region80
    $region79: #{_encoder_forward.1} parent=5 // pred_region
      // Predicated region
      $region81: #{_encoder_forward.1} parent=79 // pred_check
        %p512 = pneg %p51
      $region82: #{_encoder_forward.1} parent=79 // pred_check_branch
        %514 = sbr.rel (%p512) target = $region84
      $region83: #{_encoder_forward.1} parent=79 // pred_region
        %p515 = scmp.lt.s32.totalorder %s31, 1
        %s516 = scalar_select %p515, %s31, 1
        %s517 = smul.addr %s516, 8
        %s518 = scalar_lea.vmem %s1, %s517
      $region84: #{_encoder_forward.1} parent=79 // pred_fallthru
        _
      // Predicated region
      $region85: #{_encoder_forward.1} parent=79 // pred_check
        %p519 = pneg %p77
      $region86: #{_encoder_forward.1} parent=79 // pred_check_branch
        %521 = sbr.rel (%p519) target = $region88
      $region87: #{_encoder_forward.1} parent=79 // pred_region
        %p522 = scmp.lt.s32.totalorder %s31, 1
        %s523 = scalar_select %p522, %s31, 1
        %s524 = smul.addr %s523, 8
        %s525 = scalar_lea.vmem %s2, %s524
      $region88: #{_encoder_forward.1} parent=79 // pred_fallthru
        _
    $region80: #{_encoder_forward.1} parent=5 // pred_fallthru
      _
    %p526 = scmp.le.s32.totalorder 1, %s31
    %p527 = scmp.lt.s32.totalorder %s31, 3
    %p528 = pnand %p526, %p527
    %p529 = pneg %p528
    // Predicated region
    $region89: #{_encoder_forward.1} parent=5 // pred_check
      _
    $region90: #{_encoder_forward.1} parent=5 // pred_check_branch
      %531 = sbr.rel (%p528) target = $region92
    $region91: #{_encoder_forward.1} parent=5 // pred_region
      %s532 = ssub.s32 %s31, 1
      %p533 = scmp.lt.s32.totalorder %s36, 1
      %s534 = scalar_select %p533, %s36, 1
      %s535 = smul.addr %s534, 8
      %s536 = scalar_lea.vmem %s1, %s535
      %p537 = pneg %p57
      %p538 = pneg %p54
      %p539 = scmp.lt.s32.totalorder %s36, 1
      %s540 = scalar_select %p539, %s36, 1
      %s541 = smul.addr %s540, 8
      %s542 = scalar_lea.vmem %s2, %s541
      %p543 = pneg %p83
      %p544 = pneg %p80
      %p545 = pneg %p104
      %p546 = pneg %p101
      %p547 = pneg %p125
      %p548 = pneg %p122
      %p549 = pneg %p146
      %p550 = pneg %p143
      %p551 = pneg %p167
      %p552 = pneg %p164
      %p553 = pneg %p188
      %p554 = pneg %p185
      %p555 = pneg %p209
      %p556 = pneg %p206
      %p557 = pneg %p230
      %p558 = pneg %p227
      %p559 = pneg %p251
      %p560 = pneg %p248
      %p561 = pneg %p272
      %p562 = pneg %p269
      %p563 = pneg %p293
      %p564 = pneg %p290
      %p565 = pneg %p314
      %p566 = pneg %p311
      %p567 = pneg %p335
      %p568 = pneg %p332
      %p569 = pneg %p356
      %p570 = pneg %p353
      %p571 = pneg %p377
      %p572 = pneg %p374
      %p573 = pneg %p398
      %p574 = pneg %p395
      %p575 = pneg %p419
      %p576 = pneg %p416
      %p577 = pneg %p445
      %p578 = pneg %p442
      %p579 = scmp.lt.s32.totalorder %s36, 1
      %s580 = scalar_select %p579, %s36, 1
      %s581 = smul.addr %s580, 8
      %s582 = scalar_lea.vmem %s19, %s581
      %p583 = scmp.lt.s32.totalorder %s36, 1
      %s584 = scalar_select %p583, %s36, 1
      %s585 = smul.addr %s584, 8
      %s586 = scalar_lea.vmem %s1, %s585
      %p587 = scmp.lt.s32.totalorder %s36, 1
      %s588 = scalar_select %p587, %s36, 1
      %s589 = smul.addr %s588, 8
      %s590 = scalar_lea.vmem %s2, %s589
      %p591 = scmp.lt.s32.totalorder %s36, 1
      %s592 = scalar_select %p591, %s36, 1
      %s593 = smul.addr %s592, 8
      %s594 = scalar_lea.vmem %s19, %s593
      %s596 = sld [smem:[#allocation3 + %s36]]
      %v597 = vld [vmem:[%s586] sm:$0xff]
      %v598 = vld [vmem:[%s590] sm:$0xff]
      %v599 = vlaneseq
      %v600 = vshrl.u32 %v599, 7
      %v601 = vstv %s596
      %vm602 = vcmp.lt.s32.totalorder %v600, %v601
      %v603 = vlaneseq
      %v604 = vand.u32 %v603, 127
      %vm605 = vcmp.lt.s32.totalorder %v604, %v601
      %p606 = scmp.gt.s32.totalorder %s596, 1
      %s607 = scalar_select %p606, %s596, 1
      %s608 = scvt.s32.f32 %s607
      %v609 = vstv %s608
      %v610 = vrcp.pop %v609
      %s611 = vtos %v610
      %v612 = vsel %vm602, 1, 0
      %v613 = vcvt.s32.f32 %v612
      %v614 = vmul.f32 %v597, %v613
      %vm615 = vcmask 23552
      %v616 = vsel %vm615, %v614, 0.0
      %v617 = vrot.slane %v616, 4
      %v618 = vadd.f32 %v616, %v617
      %v619 = vrot.slane %v618, 2
      %v620 = vadd.f32 %v618, %v619
      %v621 = vrot.slane %v620, 1
      %v622 = vadd.f32 %v620, %v621
      %v623 = vstv %s611
      %v624 = vmul.f32 %v622, %v623
      %v625 = vsub.f32 %v597, %v624
      %v626 = vld [vmem:[%s3] sm:$0x7]
      %v627 = vld [vmem:[%s4] sm:$0x1]
      %v629 = vlaneseq
      %v630 = vshrl.u32 %v629, 7
      %v631 = vsub.s32 0, %v630
      %v632 = vrot.slane %v627, %v631
      %v635 = vsel %vm615, %v625, 0
      %vm637 = vcmask 1042432
      %v639 = vsel %vm637, %v626, 0
      %641 = vmatprep.subr.mxu0 0.0
      %642 = vmatpush1.msra.mxu0 %v639
      %643 = vmatprep.subr.mxu0 0.0
      %644 = vmatpush1.msra.mxu0 0.0
      %645 = vmatprep.subr.mxu0 0.0
      %646 = vmatpush1.msra.mxu0 0.0
      %647 = vmatprep.subr.mxu0 0.0
      %648 = vmatpush1.msra.mxu0 0.0
      %649 = vmatprep.subr.mxu0 0.0
      %650 = vmatpush1.msra.mxu0 0.0
      %651 = vmatprep.subr.mxu0 0.0
      %652 = vmatpush1.msra.mxu0 0.0
      %653 = vmatprep.subr.mxu0 0.0
      %654 = vmatpush1.msra.mxu0 0.0
      %655 = vmatprep.subr.mxu0 0.0
      %656 = vmatpush1.msra.mxu0 0.0
      %657 = vmatprep.subr.mxu0 0.0
      %658 = vmatpush1.msra.mxu0 0.0
      %659 = vmatprep.subr.mxu0 0.0
      %660 = vmatpush1.msra.mxu0 0.0
      %661 = vmatprep.subr.mxu0 0.0
      %662 = vmatpush1.msra.mxu0 0.0
      %663 = vmatprep.subr.mxu0 0.0
      %664 = vmatpush1.msra.mxu0 0.0
      %665 = vmatprep.subr.mxu0 0.0
      %666 = vmatpush1.msra.mxu0 0.0
      %667 = vmatprep.subr.mxu0 0.0
      %668 = vmatpush1.msra.mxu0 0.0
      %669 = vmatprep.subr.mxu0 0.0
      %670 = vmatpush1.msra.mxu0 0.0
      %671 = vmatprep.subr.mxu0 0.0
      %672 = vmatpush1.msra.mxu0 0.0
      %673 = vmatprep.subr.mxu0 0.0
      %674 = vmatpush1.msra.mxu0 0.0
      %675 = vmatprep.subr.mxu0 0.0
      %676 = vmatpush1.msra.mxu0 0.0
      %677 = vmatprep.subr.mxu0 0.0
      %678 = vmatpush1.msra.mxu0 0.0
      %679 = vmatprep.subr.mxu0 0.0
      %680 = vmatpush1.msra.mxu0 0.0
      %681 = vmatprep.subr.mxu0 0.0
      %682 = vmatpush1.msra.mxu0 0.0
      %683 = vmatprep.subr.mxu0 0.0
      %684 = vmatpush1.msra.mxu0 0.0
      %685 = vmatprep.subr.mxu0 0.0
      %686 = vmatpush1.msra.mxu0 0.0
      %687 = vmatprep.subr.mxu0 0.0
      %688 = vmatpush1.msra.mxu0 0.0
      %689 = vmatprep.subr.mxu0 0.0
      %690 = vmatpush1.msra.mxu0 0.0
      %691 = vmatprep.subr.mxu0 0.0
      %692 = vmatpush1.msra.mxu0 0.0
      %693 = vmatprep.subr.mxu0 0.0
      %694 = vmatpush1.msra.mxu0 0.0
      %695 = vmatprep.subr.mxu0 0.0
      %696 = vmatpush1.msra.mxu0 0.0
      %697 = vmatprep.subr.mxu0 0.0
      %698 = vmatpush1.msra.mxu0 0.0
      %699 = vmatprep.subr.mxu0 0.0
      %700 = vmatpush1.msra.mxu0 0.0
      %701 = vmatprep.subr.mxu0 0.0
      %702 = vmatpush1.msra.mxu0 0.0
      %703 = vmatprep.subr.mxu0 0.0
      %704 = vmatpush1.msra.mxu0 0.0
      %705 = vmatprep.mubr.f32.mxu0 0.0
      %706 = vmatmul.mubr.f32.gmra.mrb[0].mxu0 %v635
      %v707 = vpop.f32.mrb[0].mxu0
      %v708 = vadd.f32 %v632, %v707
      %v709 = vpop.f32.mrb[0].mxu0
      %710 = vdwg.mxu0
      %v711 = vadd.f32 %v598, %v708
      %v712 = vld [vmem:[%s13] sm:$0x1]
      %v713 = vld [vmem:[%s14] sm:$0x1]
      %vm714 = vcmask 261120
      %v715 = vsel %vm714, %v711, 0.0
      %716 = vadd.xlane.f32.xlu0 %v715
      %v717 = vpop.xlane.xlu0 %716
      %v718 = vrcp.pop 32.0
      %v719 = vmul.f32 %v717, %v718
      %v720 = vsub.f32 %v711, %v719
      %v721 = vmul.f32 %v720, %v720
      %v722 = vsel %vm714, %v721, 0.0
      %723 = vadd.xlane.f32.xlu0 %v722
      %v724 = vpop.xlane.xlu0 %723
      %v725 = vmul.f32 %v724, 0.032258064
      %v726 = vrsqrt.pop %v725
      %v727 = vmul.f32 %v725, %v726
      %vm728 = vcmp.eq.f32.partialorder %v725, inf
      %v729 = vsel %vm728, %v725, %v727
      %vm730 = vcmp.eq.f32.partialorder %v725, 0.0
      %v731 = vand.u32 %v725, 2147483648
      %v732 = vsel %vm730, %v731, %v729
      %v733 = vadd.f32 %v732, 1e-06
      %v734 = vrcp.pop %v733
      %v736 = vlaneseq
      %v737 = vshrl.u32 %v736, 7
      %v738 = vsub.s32 0, %v737
      %v739 = vrot.slane %v712, %v738
      %v741 = vmul.f32 %v739, %v720
      %v742 = vmul.f32 %v741, %v734
      %v744 = vlaneseq
      %v745 = vshrl.u32 %v744, 7
      %v746 = vsub.s32 0, %v745
      %v747 = vrot.slane %v713, %v746
      %v749 = vadd.f32 %v742, %v747
      %v750 = vpack.c.bf16 %v749, %v749
      %v751 = vld [vmem:[%s5] sm:$0xf]
      %v752 = vld [vmem:[%s5 + $0x4] sm:$0xf]
      %v753 = vld [vmem:[%s5 + $0x8] sm:$0xf]
      %v754 = vld [vmem:[%s5 + $0xc] sm:$0xf]
      %v755 = vld [vmem:[%s6] sm:$0x1]
      %v757 = vlaneseq
      %v758 = vshrl.u32 %v757, 7
      %v759 = vsub.s32 0, %v758
      %v760 = vrot.slane %v755, %v759
      %v766 = vunpack.c.l.b16 %v751
      %v767 = vunpack.c.l.b16 %v752
      %v768 = vunpack.c.l.b16 %v753
      %v769 = vunpack.c.l.b16 %v754
      %v770 = vpack.c.b16 %v767, %v766
      %v771 = vpack.c.b16 %v769, %v768
      %v775 = vsel %vm714, %v750, 0
      %777 = vmatprep.subr.bf16.mxu0 0
      %778 = vmatpush1.bf16.msra.mxu0 %v770
      %779 = vmatprep.subr.bf16.mxu0 0
      %780 = vmatpush1.bf16.msra.mxu0 %v771
      %781 = vmatprep.subr.bf16.mxu0 0
      %782 = vmatpush1.bf16.msra.mxu0 0
      %783 = vmatprep.subr.bf16.mxu0 0
      %784 = vmatpush1.bf16.msra.mxu0 0
      %785 = vmatprep.subr.bf16.mxu0 0
      %786 = vmatpush1.bf16.msra.mxu0 0
      %787 = vmatprep.subr.bf16.mxu0 0
      %788 = vmatpush1.bf16.msra.mxu0 0
      %789 = vmatprep.subr.bf16.mxu0 0
      %790 = vmatpush1.bf16.msra.mxu0 0
      %791 = vmatprep.subr.bf16.mxu0 0
      %792 = vmatpush1.bf16.msra.mxu0 0
      %793 = vmatprep.subr.bf16.mxu0 0
      %794 = vmatpush1.bf16.msra.mxu0 0
      %795 = vmatprep.subr.bf16.mxu0 0
      %796 = vmatpush1.bf16.msra.mxu0 0
      %797 = vmatprep.subr.bf16.mxu0 0
      %798 = vmatpush1.bf16.msra.mxu0 0
      %799 = vmatprep.subr.bf16.mxu0 0
      %800 = vmatpush1.bf16.msra.mxu0 0
      %801 = vmatprep.subr.bf16.mxu0 0
      %802 = vmatpush1.bf16.msra.mxu0 0
      %803 = vmatprep.subr.bf16.mxu0 0
      %804 = vmatpush1.bf16.msra.mxu0 0
      %805 = vmatprep.subr.bf16.mxu0 0
      %806 = vmatpush1.bf16.msra.mxu0 0
      %807 = vmatprep.subr.bf16.mxu0 0
      %808 = vmatpush1.bf16.msra.mxu0 0
      %809 = vmatprep.mubr.bf16.mxu0 0
      %810 = vmatmul.mubr.bf16.gmra.mrb[0].mxu0 %v775
      %v811 = vpop.f32.mrb[0].mxu0
      %v812 = vadd.f32 %v760, %v811
      %v813 = vpop.f32.mrb[0].mxu0
      %v814 = vpop.f32.mrb[0].mxu0
      %v815 = vpop.f32.mrb[0].mxu0
      %816 = vdwg.mxu0
      %818 = vrot.lane.b32.xlu0 %v812, 120
      %v819 = vpop.permute.xlu0 %818
      %821 = vrot.lane.b32.xlu0 %v812, 112
      %v822 = vpop.permute.xlu0 %821
      %824 = vrot.lane.b32.xlu0 %v812, 104
      %v825 = vpop.permute.xlu0 %824
      %v827 = vpack.c.bf16 %v812, %v812
      %v828 = vpack.c.bf16 %v819, %v819
      %v829 = vpack.c.bf16 %v822, %v822
      %v830 = vpack.c.bf16 %v825, %v825
      %832 = vrot.lane.b32.xlu0 %v827, 96
      %v833 = vpop.permute.xlu0 %832
      %vm834 = vcmask 64512
      %v836 = vsel %vm834, %v827, 0
      %v839 = vsel %vm834, %v833, 0
      %841 = vmatprep.subr.bf16.mxu0 0
      %842 = vmatpush1.bf16.xpose.msra.mxu0 %v839
      %843 = vmatprep.subr.bf16.mxu0 0
      %844 = vmatpush1.bf16.xpose.msra.mxu0 0
      %845 = vmatprep.subr.bf16.mxu0 0
      %846 = vmatpush1.bf16.xpose.msra.mxu0 0
      %847 = vmatprep.subr.bf16.mxu0 0
      %848 = vmatpush1.bf16.xpose.msra.mxu0 0
      %849 = vmatprep.subr.bf16.mxu0 0
      %850 = vmatpush1.bf16.xpose.msra.mxu0 0
      %851 = vmatprep.subr.bf16.mxu0 0
      %852 = vmatpush1.bf16.xpose.msra.mxu0 0
      %853 = vmatprep.subr.bf16.mxu0 0
      %854 = vmatpush1.bf16.xpose.msra.mxu0 0
      %855 = vmatprep.subr.bf16.mxu0 0
      %856 = vmatpush1.bf16.xpose.msra.mxu0 0
      %857 = vmatprep.subr.bf16.mxu0 0
      %858 = vmatpush1.bf16.xpose.msra.mxu0 0
      %859 = vmatprep.subr.bf16.mxu0 0
      %860 = vmatpush1.bf16.xpose.msra.mxu0 0
      %861 = vmatprep.subr.bf16.mxu0 0
      %862 = vmatpush1.bf16.xpose.msra.mxu0 0
      %863 = vmatprep.subr.bf16.mxu0 0
      %864 = vmatpush1.bf16.xpose.msra.mxu0 0
      %865 = vmatprep.subr.bf16.mxu0 0
      %866 = vmatpush1.bf16.xpose.msra.mxu0 0
      %867 = vmatprep.subr.bf16.mxu0 0
      %868 = vmatpush1.bf16.xpose.msra.mxu0 0
      %869 = vmatprep.subr.bf16.mxu0 0
      %870 = vmatpush1.bf16.xpose.msra.mxu0 0
      %871 = vmatprep.subr.bf16.mxu0 0
      %872 = vmatpush1.bf16.xpose.msra.mxu0 0
      %873 = vmatprep.mubr.bf16.mxu0 0
      %874 = vmatmul.mubr.bf16.gmra.mrb[0].mxu0 %v836
      %v875 = vpop.f32.mrb[0].mxu0
      %v876 = vadd.f32 0.0, %v875
      %v877 = vpop.f32.mrb[0].mxu0
      %v878 = vpop.f32.mrb[0].mxu0
      %v879 = vpop.f32.mrb[0].mxu0
      %880 = vdwg.mxu0
      %882 = vrot.lane.b32.xlu0 %v828, 96
      %v883 = vpop.permute.xlu0 %882
      %v885 = vsel %vm834, %v828, 0
      %v888 = vsel %vm834, %v883, 0
      %890 = vmatprep.subr.bf16.mxu0 0
      %891 = vmatpush1.bf16.xpose.msra.mxu0 %v888
      %892 = vmatprep.subr.bf16.mxu0 0
      %893 = vmatpush1.bf16.xpose.msra.mxu0 0
      %894 = vmatprep.subr.bf16.mxu0 0
      %895 = vmatpush1.bf16.xpose.msra.mxu0 0
      %896 = vmatprep.subr.bf16.mxu0 0
      %897 = vmatpush1.bf16.xpose.msra.mxu0 0
      %898 = vmatprep.subr.bf16.mxu0 0
      %899 = vmatpush1.bf16.xpose.msra.mxu0 0
      %900 = vmatprep.subr.bf16.mxu0 0
      %901 = vmatpush1.bf16.xpose.msra.mxu0 0
      %902 = vmatprep.subr.bf16.mxu0 0
      %903 = vmatpush1.bf16.xpose.msra.mxu0 0
      %904 = vmatprep.subr.bf16.mxu0 0
      %905 = vmatpush1.bf16.xpose.msra.mxu0 0
      %906 = vmatprep.subr.bf16.mxu0 0
      %907 = vmatpush1.bf16.xpose.msra.mxu0 0
      %908 = vmatprep.subr.bf16.mxu0 0
      %909 = vmatpush1.bf16.xpose.msra.mxu0 0
      %910 = vmatprep.subr.bf16.mxu0 0
      %911 = vmatpush1.bf16.xpose.msra.mxu0 0
      %912 = vmatprep.subr.bf16.mxu0 0
      %913 = vmatpush1.bf16.xpose.msra.mxu0 0
      %914 = vmatprep.subr.bf16.mxu0 0
      %915 = vmatpush1.bf16.xpose.msra.mxu0 0
      %916 = vmatprep.subr.bf16.mxu0 0
      %917 = vmatpush1.bf16.xpose.msra.mxu0 0
      %918 = vmatprep.subr.bf16.mxu0 0
      %919 = vmatpush1.bf16.xpose.msra.mxu0 0
      %920 = vmatprep.subr.bf16.mxu0 0
      %921 = vmatpush1.bf16.xpose.msra.mxu0 0
      %922 = vmatprep.mubr.bf16.mxu0 0
      %923 = vmatmul.mubr.bf16.gmra.mrb[0].mxu0 %v885
      %v924 = vpop.f32.mrb[0].mxu0
      %v925 = vadd.f32 0.0, %v924
      %v926 = vpop.f32.mrb[0].mxu0
      %v927 = vpop.f32.mrb[0].mxu0
      %v928 = vpop.f32.mrb[0].mxu0
      %929 = vdwg.mxu0
      %931 = vrot.lane.b32.xlu0 %v829, 96
      %v932 = vpop.permute.xlu0 %931
      %v934 = vsel %vm834, %v829, 0
      %v937 = vsel %vm834, %v932, 0
      %939 = vmatprep.subr.bf16.mxu0 0
      %940 = vmatpush1.bf16.xpose.msra.mxu0 %v937
      %941 = vmatprep.subr.bf16.mxu0 0
      %942 = vmatpush1.bf16.xpose.msra.mxu0 0
      %943 = vmatprep.subr.bf16.mxu0 0
      %944 = vmatpush1.bf16.xpose.msra.mxu0 0
      %945 = vmatprep.subr.bf16.mxu0 0
      %946 = vmatpush1.bf16.xpose.msra.mxu0 0
      %947 = vmatprep.subr.bf16.mxu0 0
      %948 = vmatpush1.bf16.xpose.msra.mxu0 0
      %949 = vmatprep.subr.bf16.mxu0 0
      %950 = vmatpush1.bf16.xpose.msra.mxu0 0
      %951 = vmatprep.subr.bf16.mxu0 0
      %952 = vmatpush1.bf16.xpose.msra.mxu0 0
      %953 = vmatprep.subr.bf16.mxu0 0
      %954 = vmatpush1.bf16.xpose.msra.mxu0 0
      %955 = vmatprep.subr.bf16.mxu0 0
      %956 = vmatpush1.bf16.xpose.msra.mxu0 0
      %957 = vmatprep.subr.bf16.mxu0 0
      %958 = vmatpush1.bf16.xpose.msra.mxu0 0
      %959 = vmatprep.subr.bf16.mxu0 0
      %960 = vmatpush1.bf16.xpose.msra.mxu0 0
      %961 = vmatprep.subr.bf16.mxu0 0
      %962 = vmatpush1.bf16.xpose.msra.mxu0 0
      %963 = vmatprep.subr.bf16.mxu0 0
      %964 = vmatpush1.bf16.xpose.msra.mxu0 0
      %965 = vmatprep.subr.bf16.mxu0 0
      %966 = vmatpush1.bf16.xpose.msra.mxu0 0
      %967 = vmatprep.subr.bf16.mxu0 0
      %968 = vmatpush1.bf16.xpose.msra.mxu0 0
      %969 = vmatprep.subr.bf16.mxu0 0
      %970 = vmatpush1.bf16.xpose.msra.mxu0 0
      %971 = vmatprep.mubr.bf16.mxu0 0
      %972 = vmatmul.mubr.bf16.gmra.mrb[0].mxu0 %v934
      %v973 = vpop.f32.mrb[0].mxu0
      %v974 = vadd.f32 0.0, %v973
      %v975 = vpop.f32.mrb[0].mxu0
      %v976 = vpop.f32.mrb[0].mxu0
      %v977 = vpop.f32.mrb[0].mxu0
      %978 = vdwg.mxu0
      %980 = vrot.lane.b32.xlu0 %v830, 96
      %v981 = vpop.permute.xlu0 %980
      %v983 = vsel %vm834, %v830, 0
      %v986 = vsel %vm834, %v981, 0
      %988 = vmatprep.subr.bf16.mxu0 0
      %989 = vmatpush1.bf16.xpose.msra.mxu0 %v986
      %990 = vmatprep.subr.bf16.mxu0 0
      %991 = vmatpush1.bf16.xpose.msra.mxu0 0
      %992 = vmatprep.subr.bf16.mxu0 0
      %993 = vmatpush1.bf16.xpose.msra.mxu0 0
      %994 = vmatprep.subr.bf16.mxu0 0
      %995 = vmatpush1.bf16.xpose.msra.mxu0 0
      %996 = vmatprep.subr.bf16.mxu0 0
      %997 = vmatpush1.bf16.xpose.msra.mxu0 0
      %998 = vmatprep.subr.bf16.mxu0 0
      %999 = vmatpush1.bf16.xpose.msra.mxu0 0
      %1000 = vmatprep.subr.bf16.mxu0 0
      %1001 = vmatpush1.bf16.xpose.msra.mxu0 0
      %1002 = vmatprep.subr.bf16.mxu0 0
      %1003 = vmatpush1.bf16.xpose.msra.mxu0 0
      %1004 = vmatprep.subr.bf16.mxu0 0
      %1005 = vmatpush1.bf16.xpose.msra.mxu0 0
      %1006 = vmatprep.subr.bf16.mxu0 0
      %1007 = vmatpush1.bf16.xpose.msra.mxu0 0
      %1008 = vmatprep.subr.bf16.mxu0 0
      %1009 = vmatpush1.bf16.xpose.msra.mxu0 0
      %1010 = vmatprep.subr.bf16.mxu0 0
      %1011 = vmatpush1.bf16.xpose.msra.mxu0 0
      %1012 = vmatprep.subr.bf16.mxu0 0
      %1013 = vmatpush1.bf16.xpose.msra.mxu0 0
      %1014 = vmatprep.subr.bf16.mxu0 0
      %1015 = vmatpush1.bf16.xpose.msra.mxu0 0
      %1016 = vmatprep.subr.bf16.mxu0 0
      %1017 = vmatpush1.bf16.xpose.msra.mxu0 0
      %1018 = vmatprep.subr.bf16.mxu0 0
      %1019 = vmatpush1.bf16.xpose.msra.mxu0 0
      %1020 = vmatprep.mubr.bf16.mxu0 0
      %1021 = vmatmul.mubr.bf16.gmra.mrb[0].mxu0 %v983
      %v1022 = vpop.f32.mrb[0].mxu0
      %v1023 = vadd.f32 0.0, %v1022
      %v1024 = vpop.f32.mrb[0].mxu0
      %v1025 = vpop.f32.mrb[0].mxu0
      %v1026 = vpop.f32.mrb[0].mxu0
      %1027 = vdwg.mxu0
      %v1028 = vmul.f32 %v876, 0.35355338
      %v1029 = vmul.f32 %v925, 0.35355338
      %v1030 = vmul.f32 %v974, 0.35355338
      %v1031 = vmul.f32 %v1023, 0.35355338
      %v1032 = vsel %vm605, 1, 0
      %vm1033 = vcmp.eq.s32.totalorder %v1032, 1
      %v1034 = vsel %vm1033, %v1028, -1e+09
      %v1035 = vsel %vm1033, %v1029, -1e+09
      %v1036 = vsel %vm1033, %v1030, -1e+09
      %v1037 = vsel %vm1033, %v1031, -1e+09
      %v1038 = vsel %vm834, %v1034, -inf
      %1039 = vmax.xlane.f32.xlu0 %v1038
      %v1040 = vpop.xlane.xlu0 %1039
      %v1041 = vsel %vm834, %v1035, -inf
      %1042 = vmax.xlane.f32.xlu0 %v1041
      %v1043 = vpop.xlane.xlu0 %1042
      %v1044 = vsel %vm834, %v1036, -inf
      %1045 = vmax.xlane.f32.xlu0 %v1044
      %v1046 = vpop.xlane.xlu0 %1045
      %v1047 = vsel %vm834, %v1037, -inf
      %1048 = vmax.xlane.f32.xlu0 %v1047
      %v1049 = vpop.xlane.xlu0 %1048
      %v1050 = vsub.f32 %v1034, %v1040
      %v1051 = vsub.f32 %v1035, %v1043
      %v1052 = vsub.f32 %v1036, %v1046
      %v1053 = vsub.f32 %v1037, %v1049
      %v1054 = vmul.f32 %v1050, 1.442695
      %v1055 = vpow.pop %v1054
      %v1056 = vmul.f32 %v1051, 1.442695
      %v1057 = vpow.pop %v1056
      %v1058 = vmul.f32 %v1052, 1.442695
      %v1059 = vpow.pop %v1058
      %v1060 = vmul.f32 %v1053, 1.442695
      %v1061 = vpow.pop %v1060
      %v1062 = vsel %vm834, %v1055, 0.0
      %1063 = vadd.xlane.f32.xlu0 %v1062
      %v1064 = vpop.xlane.xlu0 %1063
      %v1065 = vsel %vm834, %v1057, 0.0
      %1066 = vadd.xlane.f32.xlu0 %v1065
      %v1067 = vpop.xlane.xlu0 %1066
      %v1068 = vsel %vm834, %v1059, 0.0
      %1069 = vadd.xlane.f32.xlu0 %v1068
      %v1070 = vpop.xlane.xlu0 %1069
      %v1071 = vsel %vm834, %v1061, 0.0
      %1072 = vadd.xlane.f32.xlu0 %v1071
      %v1073 = vpop.xlane.xlu0 %1072
      %v1074 = vrcp.pop %v1064
      %v1075 = vrcp.pop %v1067
      %v1076 = vrcp.pop %v1070
      %v1077 = vrcp.pop %v1073
      %v1078 = vmul.f32 %v1055, %v1074
      %v1079 = vmul.f32 %v1057, %v1075
      %v1080 = vmul.f32 %v1059, %v1076
      %v1081 = vmul.f32 %v1061, %v1077
      %v1082 = vpack.c.bf16 %v1078, %v1078
      %v1083 = vpack.c.bf16 %v1079, %v1079
      %v1084 = vpack.c.bf16 %v1080, %v1080
      %v1085 = vpack.c.bf16 %v1081, %v1081
      %1086 = vrot.lane.b32.xlu0 %v827, 64
      %v1087 = vpop.permute.xlu0 %1086
      %v1089 = vsel %vm834, %v1082, 0
      %vm1091 = vcmask 1043456
      %v1093 = vsel %vm1091, %v1087, 0
      %1095 = vmatprep.subr.bf16.mxu0 0
      %1096 = vmatpush1.bf16.msra.mxu0 %v1093
      %1097 = vmatprep.subr.bf16.mxu0 0
      %1098 = vmatpush1.bf16.msra.mxu0 0
      %1099 = vmatprep.subr.bf16.mxu0 0
      %1100 = vmatpush1.bf16.msra.mxu0 0
      %1101 = vmatprep.subr.bf16.mxu0 0
      %1102 = vmatpush1.bf16.msra.mxu0 0
      %1103 = vmatprep.subr.bf16.mxu0 0
      %1104 = vmatpush1.bf16.msra.mxu0 0
      %1105 = vmatprep.subr.bf16.mxu0 0
      %1106 = vmatpush1.bf16.msra.mxu0 0
      %1107 = vmatprep.subr.bf16.mxu0 0
      %1108 = vmatpush1.bf16.msra.mxu0 0
      %1109 = vmatprep.subr.bf16.mxu0 0
      %1110 = vmatpush1.bf16.msra.mxu0 0
      %1111 = vmatprep.subr.bf16.mxu0 0
      %1112 = vmatpush1.bf16.msra.mxu0 0
      %1113 = vmatprep.subr.bf16.mxu0 0
      %1114 = vmatpush1.bf16.msra.mxu0 0
      %1115 = vmatprep.subr.bf16.mxu0 0
      %1116 = vmatpush1.bf16.msra.mxu0 0
      %1117 = vmatprep.subr.bf16.mxu0 0
      %1118 = vmatpush1.bf16.msra.mxu0 0
      %1119 = vmatprep.subr.bf16.mxu0 0
      %1120 = vmatpush1.bf16.msra.mxu0 0
      %1121 = vmatprep.subr.bf16.mxu0 0
      %1122 = vmatpush1.bf16.msra.mxu0 0
      %1123 = vmatprep.subr.bf16.mxu0 0
      %1124 = vmatpush1.bf16.msra.mxu0 0
      %1125 = vmatprep.subr.bf16.mxu0 0
      %1126 = vmatpush1.bf16.msra.mxu0 0
      %1127 = vmatprep.mubr.bf16.mxu0 0
      %1128 = vmatmul.mubr.bf16.gmra.mrb[0].mxu0 %v1089
      %v1129 = vpop.f32.mrb[0].mxu0
      %v1130 = vadd.f32 0.0, %v1129
      %v1131 = vpop.f32.mrb[0].mxu0
      %v1132 = vpop.f32.mrb[0].mxu0
      %v1133 = vpop.f32.mrb[0].mxu0
      %1134 = vdwg.mxu0
      %1135 = vrot.lane.b32.xlu0 %v828, 64
      %v1136 = vpop.permute.xlu0 %1135
      %v1138 = vsel %vm834, %v1083, 0
      %v1141 = vsel %vm1091, %v1136, 0
      %1143 = vmatprep.subr.bf16.mxu0 0
      %1144 = vmatpush1.bf16.msra.mxu0 %v1141
      %1145 = vmatprep.subr.bf16.mxu0 0
      %1146 = vmatpush1.bf16.msra.mxu0 0
      %1147 = vmatprep.subr.bf16.mxu0 0
      %1148 = vmatpush1.bf16.msra.mxu0 0
      %1149 = vmatprep.subr.bf16.mxu0 0
      %1150 = vmatpush1.bf16.msra.mxu0 0
      %1151 = vmatprep.subr.bf16.mxu0 0
      %1152 = vmatpush1.bf16.msra.mxu0 0
      %1153 = vmatprep.subr.bf16.mxu0 0
      %1154 = vmatpush1.bf16.msra.mxu0 0
      %1155 = vmatprep.subr.bf16.mxu0 0
      %1156 = vmatpush1.bf16.msra.mxu0 0
      %1157 = vmatprep.subr.bf16.mxu0 0
      %1158 = vmatpush1.bf16.msra.mxu0 0
      %1159 = vmatprep.subr.bf16.mxu0 0
      %1160 = vmatpush1.bf16.msra.mxu0 0
      %1161 = vmatprep.subr.bf16.mxu0 0
      %1162 = vmatpush1.bf16.msra.mxu0 0
      %1163 = vmatprep.subr.bf16.mxu0 0
      %1164 = vmatpush1.bf16.msra.mxu0 0
      %1165 = vmatprep.subr.bf16.mxu0 0
      %1166 = vmatpush1.bf16.msra.mxu0 0
      %1167 = vmatprep.subr.bf16.mxu0 0
      %1168 = vmatpush1.bf16.msra.mxu0 0
      %1169 = vmatprep.subr.bf16.mxu0 0
      %1170 = vmatpush1.bf16.msra.mxu0 0
      %1171 = vmatprep.subr.bf16.mxu0 0
      %1172 = vmatpush1.bf16.msra.mxu0 0
      %1173 = vmatprep.subr.bf16.mxu0 0
      %1174 = vmatpush1.bf16.msra.mxu0 0
      %1175 = vmatprep.mubr.bf16.mxu0 0
      %1176 = vmatmul.mubr.bf16.gmra.mrb[0].mxu0 %v1138
      %v1177 = vpop.f32.mrb[0].mxu0
      %v1178 = vadd.f32 0.0, %v1177
      %v1179 = vpop.f32.mrb[0].mxu0
      %v1180 = vpop.f32.mrb[0].mxu0
      %v1181 = vpop.f32.mrb[0].mxu0
      %1182 = vdwg.mxu0
      %1183 = vrot.lane.b32.xlu0 %v829, 64
      %v1184 = vpop.permute.xlu0 %1183
      %v1186 = vsel %vm834, %v1084, 0
      %v1189 = vsel %vm1091, %v1184, 0
      %1191 = vmatprep.subr.bf16.mxu0 0
      %1192 = vmatpush1.bf16.msra.mxu0 %v1189
      %1193 = vmatprep.subr.bf16.mxu0 0
      %1194 = vmatpush1.bf16.msra.mxu0 0
      %1195 = vmatprep.subr.bf16.mxu0 0
      %1196 = vmatpush1.bf16.msra.mxu0 0
      %1197 = vmatprep.subr.bf16.mxu0 0
      %1198 = vmatpush1.bf16.msra.mxu0 0
      %1199 = vmatprep.subr.bf16.mxu0 0
      %1200 = vmatpush1.bf16.msra.mxu0 0
      %1201 = vmatprep.subr.bf16.mxu0 0
      %1202 = vmatpush1.bf16.msra.mxu0 0
      %1203 = vmatprep.subr.bf16.mxu0 0
      %1204 = vmatpush1.bf16.msra.mxu0 0
      %1205 = vmatprep.subr.bf16.mxu0 0
      %1206 = vmatpush1.bf16.msra.mxu0 0
      %1207 = vmatprep.subr.bf16.mxu0 0
      %1208 = vmatpush1.bf16.msra.mxu0 0
      %1209 = vmatprep.subr.bf16.mxu0 0
      %1210 = vmatpush1.bf16.msra.mxu0 0
      %1211 = vmatprep.subr.bf16.mxu0 0
      %1212 = vmatpush1.bf16.msra.mxu0 0
      %1213 = vmatprep.subr.bf16.mxu0 0
      %1214 = vmatpush1.bf16.msra.mxu0 0
      %1215 = vmatprep.subr.bf16.mxu0 0
      %1216 = vmatpush1.bf16.msra.mxu0 0
      %1217 = vmatprep.subr.bf16.mxu0 0
      %1218 = vmatpush1.bf16.msra.mxu0 0
      %1219 = vmatprep.subr.bf16.mxu0 0
      %1220 = vmatpush1.bf16.msra.mxu0 0
      %1221 = vmatprep.subr.bf16.mxu0 0
      %1222 = vmatpush1.bf16.msra.mxu0 0
      %1223 = vmatprep.mubr.bf16.mxu0 0
      %1224 = vmatmul.mubr.bf16.gmra.mrb[0].mxu0 %v1186
      %v1225 = vpop.f32.mrb[0].mxu0
      %v1226 = vadd.f32 0.0, %v1225
      %v1227 = vpop.f32.mrb[0].mxu0
      %v1228 = vpop.f32.mrb[0].mxu0
      %v1229 = vpop.f32.mrb[0].mxu0
      %1230 = vdwg.mxu0
      %1231 = vrot.lane.b32.xlu0 %v830, 64
      %v1232 = vpop.permute.xlu0 %1231
      %v1234 = vsel %vm834, %v1085, 0
      %v1237 = vsel %vm1091, %v1232, 0
      %1239 = vmatprep.subr.bf16.mxu0 0
      %1240 = vmatpush1.bf16.msra.mxu0 %v1237
      %1241 = vmatprep.subr.bf16.mxu0 0
      %1242 = vmatpush1.bf16.msra.mxu0 0
      %1243 = vmatprep.subr.bf16.mxu0 0
      %1244 = vmatpush1.bf16.msra.mxu0 0
      %1245 = vmatprep.subr.bf16.mxu0 0
      %1246 = vmatpush1.bf16.msra.mxu0 0
      %1247 = vmatprep.subr.bf16.mxu0 0
      %1248 = vmatpush1.bf16.msra.mxu0 0
      %1249 = vmatprep.subr.bf16.mxu0 0
      %1250 = vmatpush1.bf16.msra.mxu0 0
      %1251 = vmatprep.subr.bf16.mxu0 0
      %1252 = vmatpush1.bf16.msra.mxu0 0
      %1253 = vmatprep.subr.bf16.mxu0 0
      %1254 = vmatpush1.bf16.msra.mxu0 0
      %1255 = vmatprep.subr.bf16.mxu0 0
      %1256 = vmatpush1.bf16.msra.mxu0 0
      %1257 = vmatprep.subr.bf16.mxu0 0
      %1258 = vmatpush1.bf16.msra.mxu0 0
      %1259 = vmatprep.subr.bf16.mxu0 0
      %1260 = vmatpush1.bf16.msra.mxu0 0
      %1261 = vmatprep.subr.bf16.mxu0 0
      %1262 = vmatpush1.bf16.msra.mxu0 0
      %1263 = vmatprep.subr.bf16.mxu0 0
      %1264 = vmatpush1.bf16.msra.mxu0 0
      %1265 = vmatprep.subr.bf16.mxu0 0
      %1266 = vmatpush1.bf16.msra.mxu0 0
      %1267 = vmatprep.subr.bf16.mxu0 0
      %1268 = vmatpush1.bf16.msra.mxu0 0
      %1269 = vmatprep.subr.bf16.mxu0 0
      %1270 = vmatpush1.bf16.msra.mxu0 0
      %1271 = vmatprep.mubr.bf16.mxu0 0
      %1272 = vmatmul.mubr.bf16.gmra.mrb[0].mxu0 %v1234
      %v1273 = vpop.f32.mrb[0].mxu0
      %v1274 = vadd.f32 0.0, %v1273
      %v1275 = vpop.f32.mrb[0].mxu0
      %v1276 = vpop.f32.mrb[0].mxu0
      %v1277 = vpop.f32.mrb[0].mxu0
      %1278 = vdwg.mxu0
      %v1279 = vpack.c.bf16 %v1130, %v1130
      %v1280 = vpack.c.bf16 %v1178, %v1178
      %v1281 = vpack.c.bf16 %v1226, %v1226
      %v1282 = vpack.c.bf16 %v1274, %v1274
      %v1283 = vld [vmem:[%s7] sm:$0xf]
      %v1284 = vld [vmem:[%s7 + $0x4] sm:$0xf]
      %v1285 = vld [vmem:[%s7 + $0x8] sm:$0xf]
      %v1286 = vld [vmem:[%s7 + $0xc] sm:$0xf]
      %v1288 = vsel %vm834, %v1279, 0
      %v1291 = vsel %vm1091, %v1283, 0
      %1293 = vmatprep.subr.bf16.mxu0 0
      %1294 = vmatpush1.bf16.msra.mxu0 %v1291
      %1295 = vmatprep.subr.bf16.mxu0 0
      %1296 = vmatpush1.bf16.msra.mxu0 0
      %1297 = vmatprep.subr.bf16.mxu0 0
      %1298 = vmatpush1.bf16.msra.mxu0 0
      %1299 = vmatprep.subr.bf16.mxu0 0
      %1300 = vmatpush1.bf16.msra.mxu0 0
      %1301 = vmatprep.subr.bf16.mxu0 0
      %1302 = vmatpush1.bf16.msra.mxu0 0
      %1303 = vmatprep.subr.bf16.mxu0 0
      %1304 = vmatpush1.bf16.msra.mxu0 0
      %1305 = vmatprep.subr.bf16.mxu0 0
      %1306 = vmatpush1.bf16.msra.mxu0 0
      %1307 = vmatprep.subr.bf16.mxu0 0
      %1308 = vmatpush1.bf16.msra.mxu0 0
      %1309 = vmatprep.subr.bf16.mxu0 0
      %1310 = vmatpush1.bf16.msra.mxu0 0
      %1311 = vmatprep.subr.bf16.mxu0 0
      %1312 = vmatpush1.bf16.msra.mxu0 0
      %1313 = vmatprep.subr.bf16.mxu0 0
      %1314 = vmatpush1.bf16.msra.mxu0 0
      %1315 = vmatprep.subr.bf16.mxu0 0
      %1316 = vmatpush1.bf16.msra.mxu0 0
      %1317 = vmatprep.subr.bf16.mxu0 0
      %1318 = vmatpush1.bf16.msra.mxu0 0
      %1319 = vmatprep.subr.bf16.mxu0 0
      %1320 = vmatpush1.bf16.msra.mxu0 0
      %1321 = vmatprep.subr.bf16.mxu0 0
      %1322 = vmatpush1.bf16.msra.mxu0 0
      %1323 = vmatprep.subr.bf16.mxu0 0
      %1324 = vmatpush1.bf16.msra.mxu0 0
      %1325 = vmatprep.mubr.bf16.mxu0 0
      %1326 = vmatmul.mubr.bf16.gmra.mrb[0].mxu0 %v1288
      %v1327 = vpop.f32.mrb[0].mxu0
      %v1328 = vadd.f32 0.0, %v1327
      %v1329 = vpop.f32.mrb[0].mxu0
      %v1330 = vpop.f32.mrb[0].mxu0
      %v1331 = vpop.f32.mrb[0].mxu0
      %1332 = vdwg.mxu0
      %v1334 = vsel %vm834, %v1280, 0
      %v1337 = vsel %vm1091, %v1284, 0
      %1339 = vmatprep.subr.bf16.mxu0 0
      %1340 = vmatpush1.bf16.msra.mxu0 %v1337
      %1341 = vmatprep.subr.bf16.mxu0 0
      %1342 = vmatpush1.bf16.msra.mxu0 0
      %1343 = vmatprep.subr.bf16.mxu0 0
      %1344 = vmatpush1.bf16.msra.mxu0 0
      %1345 = vmatprep.subr.bf16.mxu0 0
      %1346 = vmatpush1.bf16.msra.mxu0 0
      %1347 = vmatprep.subr.bf16.mxu0 0
      %1348 = vmatpush1.bf16.msra.mxu0 0
      %1349 = vmatprep.subr.bf16.mxu0 0
      %1350 = vmatpush1.bf16.msra.mxu0 0
      %1351 = vmatprep.subr.bf16.mxu0 0
      %1352 = vmatpush1.bf16.msra.mxu0 0
      %1353 = vmatprep.subr.bf16.mxu0 0
      %1354 = vmatpush1.bf16.msra.mxu0 0
      %1355 = vmatprep.subr.bf16.mxu0 0
      %1356 = vmatpush1.bf16.msra.mxu0 0
      %1357 = vmatprep.subr.bf16.mxu0 0
      %1358 = vmatpush1.bf16.msra.mxu0 0
      %1359 = vmatprep.subr.bf16.mxu0 0
      %1360 = vmatpush1.bf16.msra.mxu0 0
      %1361 = vmatprep.subr.bf16.mxu0 0
      %1362 = vmatpush1.bf16.msra.mxu0 0
      %1363 = vmatprep.subr.bf16.mxu0 0
      %1364 = vmatpush1.bf16.msra.mxu0 0
      %1365 = vmatprep.subr.bf16.mxu0 0
      %1366 = vmatpush1.bf16.msra.mxu0 0
      %1367 = vmatprep.subr.bf16.mxu0 0
      %1368 = vmatpush1.bf16.msra.mxu0 0
      %1369 = vmatprep.subr.bf16.mxu0 0
      %1370 = vmatpush1.bf16.msra.mxu0 0
      %1371 = vmatprep.mubr.bf16.mxu0 0
      %1372 = vmatmul.mubr.bf16.gmra.mrb[0].mxu0 %v1334
      %v1373 = vpop.f32.mrb[0].mxu0
      %v1374 = vadd.f32 0.0, %v1373
      %v1375 = vpop.f32.mrb[0].mxu0
      %v1376 = vpop.f32.mrb[0].mxu0
      %v1377 = vpop.f32.mrb[0].mxu0
      %1378 = vdwg.mxu0
      %v1380 = vsel %vm834, %v1281, 0
      %v1383 = vsel %vm1091, %v1285, 0
      %1385 = vmatprep.subr.bf16.mxu0 0
      %1386 = vmatpush1.bf16.msra.mxu0 %v1383
      %1387 = vmatprep.subr.bf16.mxu0 0
      %1388 = vmatpush1.bf16.msra.mxu0 0
      %1389 = vmatprep.subr.bf16.mxu0 0
      %1390 = vmatpush1.bf16.msra.mxu0 0
      %1391 = vmatprep.subr.bf16.mxu0 0
      %1392 = vmatpush1.bf16.msra.mxu0 0
      %1393 = vmatprep.subr.bf16.mxu0 0
      %1394 = vmatpush1.bf16.msra.mxu0 0
      %1395 = vmatprep.subr.bf16.mxu0 0
      %1396 = vmatpush1.bf16.msra.mxu0 0
      %1397 = vmatprep.subr.bf16.mxu0 0
      %1398 = vmatpush1.bf16.msra.mxu0 0
      %1399 = vmatprep.subr.bf16.mxu0 0
      %1400 = vmatpush1.bf16.msra.mxu0 0
      %1401 = vmatprep.subr.bf16.mxu0 0
      %1402 = vmatpush1.bf16.msra.mxu0 0
      %1403 = vmatprep.subr.bf16.mxu0 0
      %1404 = vmatpush1.bf16.msra.mxu0 0
      %1405 = vmatprep.subr.bf16.mxu0 0
      %1406 = vmatpush1.bf16.msra.mxu0 0
      %1407 = vmatprep.subr.bf16.mxu0 0
      %1408 = vmatpush1.bf16.msra.mxu0 0
      %1409 = vmatprep.subr.bf16.mxu0 0
      %1410 = vmatpush1.bf16.msra.mxu0 0
      %1411 = vmatprep.subr.bf16.mxu0 0
      %1412 = vmatpush1.bf16.msra.mxu0 0
      %1413 = vmatprep.subr.bf16.mxu0 0
      %1414 = vmatpush1.bf16.msra.mxu0 0
      %1415 = vmatprep.subr.bf16.mxu0 0
      %1416 = vmatpush1.bf16.msra.mxu0 0
      %1417 = vmatprep.mubr.bf16.mxu0 0
      %1418 = vmatmul.mubr.bf16.gmra.mrb[0].mxu0 %v1380
      %v1419 = vpop.f32.mrb[0].mxu0
      %v1420 = vadd.f32 0.0, %v1419
      %v1421 = vpop.f32.mrb[0].mxu0
      %v1422 = vpop.f32.mrb[0].mxu0
      %v1423 = vpop.f32.mrb[0].mxu0
      %1424 = vdwg.mxu0
      %v1426 = vsel %vm834, %v1282, 0
      %v1429 = vsel %vm1091, %v1286, 0
      %1431 = vmatprep.subr.bf16.mxu0 0
      %1432 = vmatpush1.bf16.msra.mxu0 %v1429
      %1433 = vmatprep.subr.bf16.mxu0 0
      %1434 = vmatpush1.bf16.msra.mxu0 0
      %1435 = vmatprep.subr.bf16.mxu0 0
      %1436 = vmatpush1.bf16.msra.mxu0 0
      %1437 = vmatprep.subr.bf16.mxu0 0
      %1438 = vmatpush1.bf16.msra.mxu0 0
      %1439 = vmatprep.subr.bf16.mxu0 0
      %1440 = vmatpush1.bf16.msra.mxu0 0
      %1441 = vmatprep.subr.bf16.mxu0 0
      %1442 = vmatpush1.bf16.msra.mxu0 0
      %1443 = vmatprep.subr.bf16.mxu0 0
      %1444 = vmatpush1.bf16.msra.mxu0 0
      %1445 = vmatprep.subr.bf16.mxu0 0
      %1446 = vmatpush1.bf16.msra.mxu0 0
      %1447 = vmatprep.subr.bf16.mxu0 0
      %1448 = vmatpush1.bf16.msra.mxu0 0
      %1449 = vmatprep.subr.bf16.mxu0 0
      %1450 = vmatpush1.bf16.msra.mxu0 0
      %1451 = vmatprep.subr.bf16.mxu0 0
      %1452 = vmatpush1.bf16.msra.mxu0 0
      %1453 = vmatprep.subr.bf16.mxu0 0
      %1454 = vmatpush1.bf16.msra.mxu0 0
      %1455 = vmatprep.subr.bf16.mxu0 0
      %1456 = vmatpush1.bf16.msra.mxu0 0
      %1457 = vmatprep.subr.bf16.mxu0 0
      %1458 = vmatpush1.bf16.msra.mxu0 0
      %1459 = vmatprep.subr.bf16.mxu0 0
      %1460 = vmatpush1.bf16.msra.mxu0 0
      %1461 = vmatprep.subr.bf16.mxu0 0
      %1462 = vmatpush1.bf16.msra.mxu0 0
      %1463 = vmatprep.mubr.bf16.mxu0 0
      %1464 = vmatmul.mubr.bf16.gmra.mrb[0].mxu0 %v1426
      %v1465 = vpop.f32.mrb[0].mxu0
      %v1466 = vadd.f32 0.0, %v1465
      %v1467 = vpop.f32.mrb[0].mxu0
      %v1468 = vpop.f32.mrb[0].mxu0
      %v1469 = vpop.f32.mrb[0].mxu0
      %1470 = vdwg.mxu0
      %v1471 = vsel %vm714, %v1328, 0.0
      %v1472 = vsel %vm714, %v1374, 0.0
      %v1473 = vadd.f32 %v1471, %v1472
      %v1474 = vsel %vm714, %v1420, 0.0
      %v1475 = vadd.f32 %v1473, %v1474
      %v1476 = vsel %vm714, %v1466, 0.0
      %v1477 = vadd.f32 %v1475, %v1476
      %v1478 = vadd.f32 %v711, %v1477
      %v1479 = vld [vmem:[%s8] sm:$0x1]
      %v1481 = vlaneseq
      %v1482 = vshrl.u32 %v1481, 7
      %v1483 = vsub.s32 0, %v1482
      %v1484 = vrot.slane %v1479, %v1483
      %v1486 = vadd.f32 %v1478, %v1484
      %v1487 = vld [vmem:[%s15] sm:$0x1]
      %v1488 = vld [vmem:[%s16] sm:$0x1]
      %v1489 = vsel %vm714, %v1486, 0.0
      %1490 = vadd.xlane.f32.xlu0 %v1489
      %v1491 = vpop.xlane.xlu0 %1490
      %v1492 = vmul.f32 %v1491, %v718
      %v1493 = vsub.f32 %v1486, %v1492
      %v1494 = vmul.f32 %v1493, %v1493
      %v1495 = vsel %vm714, %v1494, 0.0
      %1496 = vadd.xlane.f32.xlu0 %v1495
      %v1497 = vpop.xlane.xlu0 %1496
      %v1498 = vmul.f32 %v1497, 0.032258064
      %v1499 = vrsqrt.pop %v1498
      %v1500 = vmul.f32 %v1498, %v1499
      %vm1501 = vcmp.eq.f32.partialorder %v1498, inf
      %v1502 = vsel %vm1501, %v1498, %v1500
      %vm1503 = vcmp.eq.f32.partialorder %v1498, 0.0
      %v1504 = vand.u32 %v1498, 2147483648
      %v1505 = vsel %vm1503, %v1504, %v1502
      %v1506 = vadd.f32 %v1505, 1e-06
      %v1507 = vrcp.pop %v1506
      %v1509 = vlaneseq
      %v1510 = vshrl.u32 %v1509, 7
      %v1511 = vsub.s32 0, %v1510
      %v1512 = vrot.slane %v1487, %v1511
      %v1514 = vmul.f32 %v1512, %v1493
      %v1515 = vmul.f32 %v1514, %v1507
      %v1517 = vlaneseq
      %v1518 = vshrl.u32 %v1517, 7
      %v1519 = vsub.s32 0, %v1518
      %v1520 = vrot.slane %v1488, %v1519
      %v1522 = vadd.f32 %v1515, %v1520
      %v1523 = vpack.c.bf16 %v1522, %v1522
      %v1524 = vld [vmem:[%s9] sm:$0xf]
      %v1525 = vld [vmem:[%s9 + $0x4] sm:$0xf]
      %v1526 = vld [vmem:[%s9 + $0x8] sm:$0xf]
      %v1527 = vld [vmem:[%s9 + $0xc] sm:$0xf]
      %v1528 = vld [vmem:[%s10] sm:$0x1]
      %v1530 = vlaneseq
      %v1531 = vshrl.u32 %v1530, 7
      %v1532 = vsub.s32 0, %v1531
      %v1533 = vrot.slane %v1528, %v1532
      %v1539 = vunpack.c.l.b16 %v1524
      %v1540 = vunpack.c.l.b16 %v1525
      %v1541 = vunpack.c.l.b16 %v1526
      %v1542 = vunpack.c.l.b16 %v1527
      %v1543 = vpack.c.b16 %v1540, %v1539
      %v1544 = vpack.c.b16 %v1542, %v1541
      %v1548 = vsel %vm714, %v1523, 0
      %1550 = vmatprep.subr.bf16.mxu0 0
      %1551 = vmatpush1.bf16.msra.mxu0 %v1543
      %1552 = vmatprep.subr.bf16.mxu0 0
      %1553 = vmatpush1.bf16.msra.mxu0 %v1544
      %1554 = vmatprep.subr.bf16.mxu0 0
      %1555 = vmatpush1.bf16.msra.mxu0 0
      %1556 = vmatprep.subr.bf16.mxu0 0
      %1557 = vmatpush1.bf16.msra.mxu0 0
      %1558 = vmatprep.subr.bf16.mxu0 0
      %1559 = vmatpush1.bf16.msra.mxu0 0
      %1560 = vmatprep.subr.bf16.mxu0 0
      %1561 = vmatpush1.bf16.msra.mxu0 0
      %1562 = vmatprep.subr.bf16.mxu0 0
      %1563 = vmatpush1.bf16.msra.mxu0 0
      %1564 = vmatprep.subr.bf16.mxu0 0
      %1565 = vmatpush1.bf16.msra.mxu0 0
      %1566 = vmatprep.subr.bf16.mxu0 0
      %1567 = vmatpush1.bf16.msra.mxu0 0
      %1568 = vmatprep.subr.bf16.mxu0 0
      %1569 = vmatpush1.bf16.msra.mxu0 0
      %1570 = vmatprep.subr.bf16.mxu0 0
      %1571 = vmatpush1.bf16.msra.mxu0 0
      %1572 = vmatprep.subr.bf16.mxu0 0
      %1573 = vmatpush1.bf16.msra.mxu0 0
      %1574 = vmatprep.subr.bf16.mxu0 0
      %1575 = vmatpush1.bf16.msra.mxu0 0
      %1576 = vmatprep.subr.bf16.mxu0 0
      %1577 = vmatpush1.bf16.msra.mxu0 0
      %1578 = vmatprep.subr.bf16.mxu0 0
      %1579 = vmatpush1.bf16.msra.mxu0 0
      %1580 = vmatprep.subr.bf16.mxu0 0
      %1581 = vmatpush1.bf16.msra.mxu0 0
      %1582 = vmatprep.mubr.bf16.mxu0 0
      %1583 = vmatmul.mubr.bf16.gmra.mrb[0].mxu0 %v1548
      %v1584 = vpop.f32.mrb[0].mxu0
      %v1585 = vadd.f32 %v1533, %v1584
      %v1586 = vpop.f32.mrb[0].mxu0
      %v1587 = vpop.f32.mrb[0].mxu0
      %v1588 = vpop.f32.mrb[0].mxu0
      %1589 = vdwg.mxu0
      %v1590 = vmax.f32 %v1585, 0.0
      %v1591 = vpack.c.bf16 %v1590, %v1590
      %v1592 = vld [vmem:[%s11] sm:$0xf]
      %v1593 = vld [vmem:[%s11 + $0x4] sm:$0xf]
      %v1594 = vld [vmem:[%s11 + $0x8] sm:$0xf]
      %v1595 = vld [vmem:[%s11 + $0xc] sm:$0xf]
      %v1596 = vld [vmem:[%s11 + $0x10] sm:$0xf]
      %v1597 = vld [vmem:[%s11 + $0x14] sm:$0xf]
      %v1598 = vld [vmem:[%s11 + $0x18] sm:$0xf]
      %v1599 = vld [vmem:[%s11 + $0x1c] sm:$0xf]
      %v1608 = vunpack.c.l.b16 %v1592
      %v1609 = vunpack.c.l.b16 %v1593
      %v1610 = vunpack.c.l.b16 %v1594
      %v1611 = vunpack.c.l.b16 %v1595
      %v1612 = vunpack.c.l.b16 %v1596
      %v1613 = vunpack.c.l.b16 %v1597
      %v1614 = vunpack.c.l.b16 %v1598
      %v1615 = vunpack.c.l.b16 %v1599
      %v1616 = vpack.c.b16 %v1609, %v1608
      %v1617 = vpack.c.b16 %v1611, %v1610
      %v1618 = vpack.c.b16 %v1613, %v1612
      %v1619 = vpack.c.b16 %v1615, %v1614
      %vm1624 = vcmask 523264
      %v1626 = vsel %vm1624, %v1591, 0
      %1628 = vmatprep.subr.bf16.mxu0 0
      %1629 = vmatpush1.bf16.msra.mxu0 %v1616
      %1630 = vmatprep.subr.bf16.mxu0 0
      %1631 = vmatpush1.bf16.msra.mxu0 %v1617
      %1632 = vmatprep.subr.bf16.mxu0 0
      %1633 = vmatpush1.bf16.msra.mxu0 %v1618
      %1634 = vmatprep.subr.bf16.mxu0 0
      %1635 = vmatpush1.bf16.msra.mxu0 %v1619
      %1636 = vmatprep.subr.bf16.mxu0 0
      %1637 = vmatpush1.bf16.msra.mxu0 0
      %1638 = vmatprep.subr.bf16.mxu0 0
      %1639 = vmatpush1.bf16.msra.mxu0 0
      %1640 = vmatprep.subr.bf16.mxu0 0
      %1641 = vmatpush1.bf16.msra.mxu0 0
      %1642 = vmatprep.subr.bf16.mxu0 0
      %1643 = vmatpush1.bf16.msra.mxu0 0
      %1644 = vmatprep.subr.bf16.mxu0 0
      %1645 = vmatpush1.bf16.msra.mxu0 0
      %1646 = vmatprep.subr.bf16.mxu0 0
      %1647 = vmatpush1.bf16.msra.mxu0 0
      %1648 = vmatprep.subr.bf16.mxu0 0
      %1649 = vmatpush1.bf16.msra.mxu0 0
      %1650 = vmatprep.subr.bf16.mxu0 0
      %1651 = vmatpush1.bf16.msra.mxu0 0
      %1652 = vmatprep.subr.bf16.mxu0 0
      %1653 = vmatpush1.bf16.msra.mxu0 0
      %1654 = vmatprep.subr.bf16.mxu0 0
      %1655 = vmatpush1.bf16.msra.mxu0 0
      %1656 = vmatprep.subr.bf16.mxu0 0
      %1657 = vmatpush1.bf16.msra.mxu0 0
      %1658 = vmatprep.subr.bf16.mxu0 0
      %1659 = vmatpush1.bf16.msra.mxu0 0
      %1660 = vmatprep.mubr.bf16.mxu0 0
      %1661 = vmatmul.mubr.bf16.gmra.mrb[0].mxu0 %v1626
      %v1662 = vpop.f32.mrb[0].mxu0
      %v1663 = vadd.f32 0.0, %v1662
      %v1664 = vpop.f32.mrb[0].mxu0
      %v1665 = vpop.f32.mrb[0].mxu0
      %v1666 = vpop.f32.mrb[0].mxu0
      %1667 = vdwg.mxu0
      %v1668 = vadd.f32 %v1486, %v1663
      %v1669 = vld [vmem:[%s12] sm:$0x1]
      %v1671 = vlaneseq
      %v1672 = vshrl.u32 %v1671, 7
      %v1673 = vsub.s32 0, %v1672
      %v1674 = vrot.slane %v1669, %v1673
      %v1676 = vadd.f32 %v1668, %v1674
      %s1677 = scalar_lea.vmem %s13, 1
      %v1678 = vld [vmem:[%s1677] sm:$0x1]
      %s1679 = scalar_lea.vmem %s14, 1
      %v1680 = vld [vmem:[%s1679] sm:$0x1]
      %v1681 = vsel %vm714, %v1676, 0.0
      %1682 = vadd.xlane.f32.xlu0 %v1681
      %v1683 = vpop.xlane.xlu0 %1682
      %v1684 = vmul.f32 %v1683, %v718
      %v1685 = vsub.f32 %v1676, %v1684
      %v1686 = vmul.f32 %v1685, %v1685
      %v1687 = vsel %vm714, %v1686, 0.0
      %1688 = vadd.xlane.f32.xlu0 %v1687
      %v1689 = vpop.xlane.xlu0 %1688
      %v1690 = vmul.f32 %v1689, 0.032258064
      %v1691 = vrsqrt.pop %v1690
      %v1692 = vmul.f32 %v1690, %v1691
      %vm1693 = vcmp.eq.f32.partialorder %v1690, inf
      %v1694 = vsel %vm1693, %v1690, %v1692
      %vm1695 = vcmp.eq.f32.partialorder %v1690, 0.0
      %v1696 = vand.u32 %v1690, 2147483648
      %v1697 = vsel %vm1695, %v1696, %v1694
      %v1698 = vadd.f32 %v1697, 1e-06
      %v1699 = vrcp.pop %v1698
      %v1701 = vlaneseq
      %v1702 = vshrl.u32 %v1701, 7
      %v1703 = vsub.s32 0, %v1702
      %v1704 = vrot.slane %v1678, %v1703
      %v1706 = vmul.f32 %v1704, %v1685
      %v1707 = vmul.f32 %v1706, %v1699
      %v1709 = vlaneseq
      %v1710 = vshrl.u32 %v1709, 7
      %v1711 = vsub.s32 0, %v1710
      %v1712 = vrot.slane %v1680, %v1711
      %v1714 = vadd.f32 %v1707, %v1712
      %v1715 = vpack.c.bf16 %v1714, %v1714
      %s1716 = scalar_lea.vmem %s5, 16
      %v1717 = vld [vmem:[%s1716] sm:$0xf]
      %v1718 = vld [vmem:[%s1716 + $0x4] sm:$0xf]
      %v1719 = vld [vmem:[%s1716 + $0x8] sm:$0xf]
      %v1720 = vld [vmem:[%s1716 + $0xc] sm:$0xf]
      %s1721 = scalar_lea.vmem %s6, 1
      %v1722 = vld [vmem:[%s1721] sm:$0x1]
      %v1724 = vlaneseq
      %v1725 = vshrl.u32 %v1724, 7
      %v1726 = vsub.s32 0, %v1725
      %v1727 = vrot.slane %v1722, %v1726
      %v1733 = vunpack.c.l.b16 %v1717
      %v1734 = vunpack.c.l.b16 %v1718
      %v1735 = vunpack.c.l.b16 %v1719
      %v1736 = vunpack.c.l.b16 %v1720
      %v1737 = vpack.c.b16 %v1734, %v1733
      %v1738 = vpack.c.b16 %v1736, %v1735
      %v1742 = vsel %vm714, %v1715, 0
      %1744 = vmatprep.subr.bf16.mxu0 0
      %1745 = vmatpush1.bf16.msra.mxu0 %v1737
      %1746 = vmatprep.subr.bf16.mxu0 0
      %1747 = vmatpush1.bf16.msra.mxu0 %v1738
      %1748 = vmatprep.subr.bf16.mxu0 0
      %1749 = vmatpush1.bf16.msra.mxu0 0
      %1750 = vmatprep.subr.bf16.mxu0 0
      %1751 = vmatpush1.bf16.msra.mxu0 0
      %1752 = vmatprep.subr.bf16.mxu0 0
      %1753 = vmatpush1.bf16.msra.mxu0 0
      %1754 = vmatprep.subr.bf16.mxu0 0
      %1755 = vmatpush1.bf16.msra.mxu0 0
      %1756 = vmatprep.subr.bf16.mxu0 0
      %1757 = vmatpush1.bf16.msra.mxu0 0
      %1758 = vmatprep.subr.bf16.mxu0 0
      %1759 = vmatpush1.bf16.msra.mxu0 0
      %1760 = vmatprep.subr.bf16.mxu0 0
      %1761 = vmatpush1.bf16.msra.mxu0 0
      %1762 = vmatprep.subr.bf16.mxu0 0
      %1763 = vmatpush1.bf16.msra.mxu0 0
      %1764 = vmatprep.subr.bf16.mxu0 0
      %1765 = vmatpush1.bf16.msra.mxu0 0
      %1766 = vmatprep.subr.bf16.mxu0 0
      %1767 = vmatpush1.bf16.msra.mxu0 0
      %1768 = vmatprep.subr.bf16.mxu0 0
      %1769 = vmatpush1.bf16.msra.mxu0 0
      %1770 = vmatprep.subr.bf16.mxu0 0
      %1771 = vmatpush1.bf16.msra.mxu0 0
      %1772 = vmatprep.subr.bf16.mxu0 0
      %1773 = vmatpush1.bf16.msra.mxu0 0
      %1774 = vmatprep.subr.bf16.mxu0 0
      %1775 = vmatpush1.bf16.msra.mxu0 0
      %1776 = vmatprep.mubr.bf16.mxu0 0
      %1777 = vmatmul.mubr.bf16.gmra.mrb[0].mxu0 %v1742
      %v1778 = vpop.f32.mrb[0].mxu0
      %v1779 = vadd.f32 %v1727, %v1778
      %v1780 = vpop.f32.mrb[0].mxu0
      %v1781 = vpop.f32.mrb[0].mxu0
      %v1782 = vpop.f32.mrb[0].mxu0
      %1783 = vdwg.mxu0
      %1785 = vrot.lane.b32.xlu0 %v1779, 120
      %v1786 = vpop.permute.xlu0 %1785
      %1788 = vrot.lane.b32.xlu0 %v1779, 112
      %v1789 = vpop.permute.xlu0 %1788
      %1791 = vrot.lane.b32.xlu0 %v1779, 104
      %v1792 = vpop.permute.xlu0 %1791
      %v1794 = vpack.c.bf16 %v1779, %v1779
      %v1795 = vpack.c.bf16 %v1786, %v1786
      %v1796 = vpack.c.bf16 %v1789, %v1789
      %v1797 = vpack.c.bf16 %v1792, %v1792
      %1799 = vrot.lane.b32.xlu0 %v1794, 96
      %v1800 = vpop.permute.xlu0 %1799
      %v1802 = vsel %vm834, %v1794, 0
      %v1805 = vsel %vm834, %v1800, 0
      %1807 = vmatprep.subr.bf16.mxu0 0
      %1808 = vmatpush1.bf16.xpose.msra.mxu0 %v1805
      %1809 = vmatprep.subr.bf16.mxu0 0
      %1810 = vmatpush1.bf16.xpose.msra.mxu0 0
      %1811 = vmatprep.subr.bf16.mxu0 0
      %1812 = vmatpush1.bf16.xpose.msra.mxu0 0
      %1813 = vmatprep.subr.bf16.mxu0 0
      %1814 = vmatpush1.bf16.xpose.msra.mxu0 0
      %1815 = vmatprep.subr.bf16.mxu0 0
      %1816 = vmatpush1.bf16.xpose.msra.mxu0 0
      %1817 = vmatprep.subr.bf16.mxu0 0
      %1818 = vmatpush1.bf16.xpose.msra.mxu0 0
      %1819 = vmatprep.subr.bf16.mxu0 0
      %1820 = vmatpush1.bf16.xpose.msra.mxu0 0
      %1821 = vmatprep.subr.bf16.mxu0 0
      %1822 = vmatpush1.bf16.xpose.msra.mxu0 0
      %1823 = vmatprep.subr.bf16.mxu0 0
      %1824 = vmatpush1.bf16.xpose.msra.mxu0 0
      %1825 = vmatprep.subr.bf16.mxu0 0
      %1826 = vmatpush1.bf16.xpose.msra.mxu0 0
      %1827 = vmatprep.subr.bf16.mxu0 0
      %1828 = vmatpush1.bf16.xpose.msra.mxu0 0
      %1829 = vmatprep.subr.bf16.mxu0 0
      %1830 = vmatpush1.bf16.xpose.msra.mxu0 0
      %1831 = vmatprep.subr.bf16.mxu0 0
      %1832 = vmatpush1.bf16.xpose.msra.mxu0 0
      %1833 = vmatprep.subr.bf16.mxu0 0
      %1834 = vmatpush1.bf16.xpose.msra.mxu0 0
      %1835 = vmatprep.subr.bf16.mxu0 0
      %1836 = vmatpush1.bf16.xpose.msra.mxu0 0
      %1837 = vmatprep.subr.bf16.mxu0 0
      %1838 = vmatpush1.bf16.xpose.msra.mxu0 0
      %1839 = vmatprep.mubr.bf16.mxu0 0
      %1840 = vmatmul.mubr.bf16.gmra.mrb[0].mxu0 %v1802
      %v1841 = vpop.f32.mrb[0].mxu0
      %v1842 = vadd.f32 0.0, %v1841
      %v1843 = vpop.f32.mrb[0].mxu0
      %v1844 = vpop.f32.mrb[0].mxu0
      %v1845 = vpop.f32.mrb[0].mxu0
      %1846 = vdwg.mxu0
      %1848 = vrot.lane.b32.xlu0 %v1795, 96
      %v1849 = vpop.permute.xlu0 %1848
      %v1851 = vsel %vm834, %v1795, 0
      %v1854 = vsel %vm834, %v1849, 0
      %1856 = vmatprep.subr.bf16.mxu0 0
      %1857 = vmatpush1.bf16.xpose.msra.mxu0 %v1854
      %1858 = vmatprep.subr.bf16.mxu0 0
      %1859 = vmatpush1.bf16.xpose.msra.mxu0 0
      %1860 = vmatprep.subr.bf16.mxu0 0
      %1861 = vmatpush1.bf16.xpose.msra.mxu0 0
      %1862 = vmatprep.subr.bf16.mxu0 0
      %1863 = vmatpush1.bf16.xpose.msra.mxu0 0
      %1864 = vmatprep.subr.bf16.mxu0 0
      %1865 = vmatpush1.bf16.xpose.msra.mxu0 0
      %1866 = vmatprep.subr.bf16.mxu0 0
      %1867 = vmatpush1.bf16.xpose.msra.mxu0 0
      %1868 = vmatprep.subr.bf16.mxu0 0
      %1869 = vmatpush1.bf16.xpose.msra.mxu0 0
      %1870 = vmatprep.subr.bf16.mxu0 0
      %1871 = vmatpush1.bf16.xpose.msra.mxu0 0
      %1872 = vmatprep.subr.bf16.mxu0 0
      %1873 = vmatpush1.bf16.xpose.msra.mxu0 0
      %1874 = vmatprep.subr.bf16.mxu0 0
      %1875 = vmatpush1.bf16.xpose.msra.mxu0 0
      %1876 = vmatprep.subr.bf16.mxu0 0
      %1877 = vmatpush1.bf16.xpose.msra.mxu0 0
      %1878 = vmatprep.subr.bf16.mxu0 0
      %1879 = vmatpush1.bf16.xpose.msra.mxu0 0
      %1880 = vmatprep.subr.bf16.mxu0 0
      %1881 = vmatpush1.bf16.xpose.msra.mxu0 0
      %1882 = vmatprep.subr.bf16.mxu0 0
      %1883 = vmatpush1.bf16.xpose.msra.mxu0 0
      %1884 = vmatprep.subr.bf16.mxu0 0
      %1885 = vmatpush1.bf16.xpose.msra.mxu0 0
      %1886 = vmatprep.subr.bf16.mxu0 0
      %1887 = vmatpush1.bf16.xpose.msra.mxu0 0
      %1888 = vmatprep.mubr.bf16.mxu0 0
      %1889 = vmatmul.mubr.bf16.gmra.mrb[0].mxu0 %v1851
      %v1890 = vpop.f32.mrb[0].mxu0
      %v1891 = vadd.f32 0.0, %v1890
      %v1892 = vpop.f32.mrb[0].mxu0
      %v1893 = vpop.f32.mrb[0].mxu0
      %v1894 = vpop.f32.mrb[0].mxu0
      %1895 = vdwg.mxu0
      %1897 = vrot.lane.b32.xlu0 %v1796, 96
      %v1898 = vpop.permute.xlu0 %1897
      %v1900 = vsel %vm834, %v1796, 0
      %v1903 = vsel %vm834, %v1898, 0
      %1905 = vmatprep.subr.bf16.mxu0 0
      %1906 = vmatpush1.bf16.xpose.msra.mxu0 %v1903
      %1907 = vmatprep.subr.bf16.mxu0 0
      %1908 = vmatpush1.bf16.xpose.msra.mxu0 0
      %1909 = vmatprep.subr.bf16.mxu0 0
      %1910 = vmatpush1.bf16.xpose.msra.mxu0 0
      %1911 = vmatprep.subr.bf16.mxu0 0
      %1912 = vmatpush1.bf16.xpose.msra.mxu0 0
      %1913 = vmatprep.subr.bf16.mxu0 0
      %1914 = vmatpush1.bf16.xpose.msra.mxu0 0
      %1915 = vmatprep.subr.bf16.mxu0 0
      %1916 = vmatpush1.bf16.xpose.msra.mxu0 0
      %1917 = vmatprep.subr.bf16.mxu0 0
      %1918 = vmatpush1.bf16.xpose.msra.mxu0 0
      %1919 = vmatprep.subr.bf16.mxu0 0
      %1920 = vmatpush1.bf16.xpose.msra.mxu0 0
      %1921 = vmatprep.subr.bf16.mxu0 0
      %1922 = vmatpush1.bf16.xpose.msra.mxu0 0
      %1923 = vmatprep.subr.bf16.mxu0 0
      %1924 = vmatpush1.bf16.xpose.msra.mxu0 0
      %1925 = vmatprep.subr.bf16.mxu0 0
      %1926 = vmatpush1.bf16.xpose.msra.mxu0 0
      %1927 = vmatprep.subr.bf16.mxu0 0
      %1928 = vmatpush1.bf16.xpose.msra.mxu0 0
      %1929 = vmatprep.subr.bf16.mxu0 0
      %1930 = vmatpush1.bf16.xpose.msra.mxu0 0
      %1931 = vmatprep.subr.bf16.mxu0 0
      %1932 = vmatpush1.bf16.xpose.msra.mxu0 0
      %1933 = vmatprep.subr.bf16.mxu0 0
      %1934 = vmatpush1.bf16.xpose.msra.mxu0 0
      %1935 = vmatprep.subr.bf16.mxu0 0
      %1936 = vmatpush1.bf16.xpose.msra.mxu0 0
      %1937 = vmatprep.mubr.bf16.mxu0 0
      %1938 = vmatmul.mubr.bf16.gmra.mrb[0].mxu0 %v1900
      %v1939 = vpop.f32.mrb[0].mxu0
      %v1940 = vadd.f32 0.0, %v1939
      %v1941 = vpop.f32.mrb[0].mxu0
      %v1942 = vpop.f32.mrb[0].mxu0
      %v1943 = vpop.f32.mrb[0].mxu0
      %1944 = vdwg.mxu0
      %1946 = vrot.lane.b32.xlu0 %v1797, 96
      %v1947 = vpop.permute.xlu0 %1946
      %v1949 = vsel %vm834, %v1797, 0
      %v1952 = vsel %vm834, %v1947, 0
      %1954 = vmatprep.subr.bf16.mxu0 0
      %1955 = vmatpush1.bf16.xpose.msra.mxu0 %v1952
      %1956 = vmatprep.subr.bf16.mxu0 0
      %1957 = vmatpush1.bf16.xpose.msra.mxu0 0
      %1958 = vmatprep.subr.bf16.mxu0 0
      %1959 = vmatpush1.bf16.xpose.msra.mxu0 0
      %1960 = vmatprep.subr.bf16.mxu0 0
      %1961 = vmatpush1.bf16.xpose.msra.mxu0 0
      %1962 = vmatprep.subr.bf16.mxu0 0
      %1963 = vmatpush1.bf16.xpose.msra.mxu0 0
      %1964 = vmatprep.subr.bf16.mxu0 0
      %1965 = vmatpush1.bf16.xpose.msra.mxu0 0
      %1966 = vmatprep.subr.bf16.mxu0 0
      %1967 = vmatpush1.bf16.xpose.msra.mxu0 0
      %1968 = vmatprep.subr.bf16.mxu0 0
      %1969 = vmatpush1.bf16.xpose.msra.mxu0 0
      %1970 = vmatprep.subr.bf16.mxu0 0
      %1971 = vmatpush1.bf16.xpose.msra.mxu0 0
      %1972 = vmatprep.subr.bf16.mxu0 0
      %1973 = vmatpush1.bf16.xpose.msra.mxu0 0
      %1974 = vmatprep.subr.bf16.mxu0 0
      %1975 = vmatpush1.bf16.xpose.msra.mxu0 0
      %1976 = vmatprep.subr.bf16.mxu0 0
      %1977 = vmatpush1.bf16.xpose.msra.mxu0 0
      %1978 = vmatprep.subr.bf16.mxu0 0
      %1979 = vmatpush1.bf16.xpose.msra.mxu0 0
      %1980 = vmatprep.subr.bf16.mxu0 0
      %1981 = vmatpush1.bf16.xpose.msra.mxu0 0
      %1982 = vmatprep.subr.bf16.mxu0 0
      %1983 = vmatpush1.bf16.xpose.msra.mxu0 0
      %1984 = vmatprep.subr.bf16.mxu0 0
      %1985 = vmatpush1.bf16.xpose.msra.mxu0 0
      %1986 = vmatprep.mubr.bf16.mxu0 0
      %1987 = vmatmul.mubr.bf16.gmra.mrb[0].mxu0 %v1949
      %v1988 = vpop.f32.mrb[0].mxu0
      %v1989 = vadd.f32 0.0, %v1988
      %v1990 = vpop.f32.mrb[0].mxu0
      %v1991 = vpop.f32.mrb[0].mxu0
      %v1992 = vpop.f32.mrb[0].mxu0
      %1993 = vdwg.mxu0
      %v1994 = vmul.f32 %v1842, 0.35355338
      %v1995 = vmul.f32 %v1891, 0.35355338
      %v1996 = vmul.f32 %v1940, 0.35355338
      %v1997 = vmul.f32 %v1989, 0.35355338
      %v1998 = vsel %vm1033, %v1994, -1e+09
      %v1999 = vsel %vm1033, %v1995, -1e+09
      %v2000 = vsel %vm1033, %v1996, -1e+09
      %v2001 = vsel %vm1033, %v1997, -1e+09
      %v2002 = vsel %vm834, %v1998, -inf
      %2003 = vmax.xlane.f32.xlu0 %v2002
      %v2004 = vpop.xlane.xlu0 %2003
      %v2005 = vsel %vm834, %v1999, -inf
      %2006 = vmax.xlane.f32.xlu0 %v2005
      %v2007 = vpop.xlane.xlu0 %2006
      %v2008 = vsel %vm834, %v2000, -inf
      %2009 = vmax.xlane.f32.xlu0 %v2008
      %v2010 = vpop.xlane.xlu0 %2009
      %v2011 = vsel %vm834, %v2001, -inf
      %2012 = vmax.xlane.f32.xlu0 %v2011
      %v2013 = vpop.xlane.xlu0 %2012
      %v2014 = vsub.f32 %v1998, %v2004
      %v2015 = vsub.f32 %v1999, %v2007
      %v2016 = vsub.f32 %v2000, %v2010
      %v2017 = vsub.f32 %v2001, %v2013
      %v2018 = vmul.f32 %v2014, 1.442695
      %v2019 = vpow.pop %v2018
      %v2020 = vmul.f32 %v2015, 1.442695
      %v2021 = vpow.pop %v2020
      %v2022 = vmul.f32 %v2016, 1.442695
      %v2023 = vpow.pop %v2022
      %v2024 = vmul.f32 %v2017, 1.442695
      %v2025 = vpow.pop %v2024
      %v2026 = vsel %vm834, %v2019, 0.0
      %2027 = vadd.xlane.f32.xlu0 %v2026
      %v2028 = vpop.xlane.xlu0 %2027
      %v2029 = vsel %vm834, %v2021, 0.0
      %2030 = vadd.xlane.f32.xlu0 %v2029
      %v2031 = vpop.xlane.xlu0 %2030
      %v2032 = vsel %vm834, %v2023, 0.0
      %2033 = vadd.xlane.f32.xlu0 %v2032
      %v2034 = vpop.xlane.xlu0 %2033
      %v2035 = vsel %vm834, %v2025, 0.0
      %2036 = vadd.xlane.f32.xlu0 %v2035
      %v2037 = vpop.xlane.xlu0 %2036
      %v2038 = vrcp.pop %v2028
      %v2039 = vrcp.pop %v2031
      %v2040 = vrcp.pop %v2034
      %v2041 = vrcp.pop %v2037
      %v2042 = vmul.f32 %v2019, %v2038
      %v2043 = vmul.f32 %v2021, %v2039
      %v2044 = vmul.f32 %v2023, %v2040
      %v2045 = vmul.f32 %v2025, %v2041
      %v2046 = vpack.c.bf16 %v2042, %v2042
      %v2047 = vpack.c.bf16 %v2043, %v2043
      %v2048 = vpack.c.bf16 %v2044, %v2044
      %v2049 = vpack.c.bf16 %v2045, %v2045
      %2050 = vrot.lane.b32.xlu0 %v1794, 64
      %v2051 = vpop.permute.xlu0 %2050
      %v2053 = vsel %vm834, %v2046, 0
      %v2056 = vsel %vm1091, %v2051, 0
      %2058 = vmatprep.subr.bf16.mxu0 0
      %2059 = vmatpush1.bf16.msra.mxu0 %v2056
      %2060 = vmatprep.subr.bf16.mxu0 0
      %2061 = vmatpush1.bf16.msra.mxu0 0
      %2062 = vmatprep.subr.bf16.mxu0 0
      %2063 = vmatpush1.bf16.msra.mxu0 0
      %2064 = vmatprep.subr.bf16.mxu0 0
      %2065 = vmatpush1.bf16.msra.mxu0 0
      %2066 = vmatprep.subr.bf16.mxu0 0
      %2067 = vmatpush1.bf16.msra.mxu0 0
      %2068 = vmatprep.subr.bf16.mxu0 0
      %2069 = vmatpush1.bf16.msra.mxu0 0
      %2070 = vmatprep.subr.bf16.mxu0 0
      %2071 = vmatpush1.bf16.msra.mxu0 0
      %2072 = vmatprep.subr.bf16.mxu0 0
      %2073 = vmatpush1.bf16.msra.mxu0 0
      %2074 = vmatprep.subr.bf16.mxu0 0
      %2075 = vmatpush1.bf16.msra.mxu0 0
      %2076 = vmatprep.subr.bf16.mxu0 0
      %2077 = vmatpush1.bf16.msra.mxu0 0
      %2078 = vmatprep.subr.bf16.mxu0 0
      %2079 = vmatpush1.bf16.msra.mxu0 0
      %2080 = vmatprep.subr.bf16.mxu0 0
      %2081 = vmatpush1.bf16.msra.mxu0 0
      %2082 = vmatprep.subr.bf16.mxu0 0
      %2083 = vmatpush1.bf16.msra.mxu0 0
      %2084 = vmatprep.subr.bf16.mxu0 0
      %2085 = vmatpush1.bf16.msra.mxu0 0
      %2086 = vmatprep.subr.bf16.mxu0 0
      %2087 = vmatpush1.bf16.msra.mxu0 0
      %2088 = vmatprep.subr.bf16.mxu0 0
      %2089 = vmatpush1.bf16.msra.mxu0 0
      %2090 = vmatprep.mubr.bf16.mxu0 0
      %2091 = vmatmul.mubr.bf16.gmra.mrb[0].mxu0 %v2053
      %v2092 = vpop.f32.mrb[0].mxu0
      %v2093 = vadd.f32 0.0, %v2092
      %v2094 = vpop.f32.mrb[0].mxu0
      %v2095 = vpop.f32.mrb[0].mxu0
      %v2096 = vpop.f32.mrb[0].mxu0
      %2097 = vdwg.mxu0
      %2098 = vrot.lane.b32.xlu0 %v1795, 64
      %v2099 = vpop.permute.xlu0 %2098
      %v2101 = vsel %vm834, %v2047, 0
      %v2104 = vsel %vm1091, %v2099, 0
      %2106 = vmatprep.subr.bf16.mxu0 0
      %2107 = vmatpush1.bf16.msra.mxu0 %v2104
      %2108 = vmatprep.subr.bf16.mxu0 0
      %2109 = vmatpush1.bf16.msra.mxu0 0
      %2110 = vmatprep.subr.bf16.mxu0 0
      %2111 = vmatpush1.bf16.msra.mxu0 0
      %2112 = vmatprep.subr.bf16.mxu0 0
      %2113 = vmatpush1.bf16.msra.mxu0 0
      %2114 = vmatprep.subr.bf16.mxu0 0
      %2115 = vmatpush1.bf16.msra.mxu0 0
      %2116 = vmatprep.subr.bf16.mxu0 0
      %2117 = vmatpush1.bf16.msra.mxu0 0
      %2118 = vmatprep.subr.bf16.mxu0 0
      %2119 = vmatpush1.bf16.msra.mxu0 0
      %2120 = vmatprep.subr.bf16.mxu0 0
      %2121 = vmatpush1.bf16.msra.mxu0 0
      %2122 = vmatprep.subr.bf16.mxu0 0
      %2123 = vmatpush1.bf16.msra.mxu0 0
      %2124 = vmatprep.subr.bf16.mxu0 0
      %2125 = vmatpush1.bf16.msra.mxu0 0
      %2126 = vmatprep.subr.bf16.mxu0 0
      %2127 = vmatpush1.bf16.msra.mxu0 0
      %2128 = vmatprep.subr.bf16.mxu0 0
      %2129 = vmatpush1.bf16.msra.mxu0 0
      %2130 = vmatprep.subr.bf16.mxu0 0
      %2131 = vmatpush1.bf16.msra.mxu0 0
      %2132 = vmatprep.subr.bf16.mxu0 0
      %2133 = vmatpush1.bf16.msra.mxu0 0
      %2134 = vmatprep.subr.bf16.mxu0 0
      %2135 = vmatpush1.bf16.msra.mxu0 0
      %2136 = vmatprep.subr.bf16.mxu0 0
      %2137 = vmatpush1.bf16.msra.mxu0 0
      %2138 = vmatprep.mubr.bf16.mxu0 0
      %2139 = vmatmul.mubr.bf16.gmra.mrb[0].mxu0 %v2101
      %v2140 = vpop.f32.mrb[0].mxu0
      %v2141 = vadd.f32 0.0, %v2140
      %v2142 = vpop.f32.mrb[0].mxu0
      %v2143 = vpop.f32.mrb[0].mxu0
      %v2144 = vpop.f32.mrb[0].mxu0
      %2145 = vdwg.mxu0
      %2146 = vrot.lane.b32.xlu0 %v1796, 64
      %v2147 = vpop.permute.xlu0 %2146
      %v2149 = vsel %vm834, %v2048, 0
      %v2152 = vsel %vm1091, %v2147, 0
      %2154 = vmatprep.subr.bf16.mxu0 0
      %2155 = vmatpush1.bf16.msra.mxu0 %v2152
      %2156 = vmatprep.subr.bf16.mxu0 0
      %2157 = vmatpush1.bf16.msra.mxu0 0
      %2158 = vmatprep.subr.bf16.mxu0 0
      %2159 = vmatpush1.bf16.msra.mxu0 0
      %2160 = vmatprep.subr.bf16.mxu0 0
      %2161 = vmatpush1.bf16.msra.mxu0 0
      %2162 = vmatprep.subr.bf16.mxu0 0
      %2163 = vmatpush1.bf16.msra.mxu0 0
      %2164 = vmatprep.subr.bf16.mxu0 0
      %2165 = vmatpush1.bf16.msra.mxu0 0
      %2166 = vmatprep.subr.bf16.mxu0 0
      %2167 = vmatpush1.bf16.msra.mxu0 0
      %2168 = vmatprep.subr.bf16.mxu0 0
      %2169 = vmatpush1.bf16.msra.mxu0 0
      %2170 = vmatprep.subr.bf16.mxu0 0
      %2171 = vmatpush1.bf16.msra.mxu0 0
      %2172 = vmatprep.subr.bf16.mxu0 0
      %2173 = vmatpush1.bf16.msra.mxu0 0
      %2174 = vmatprep.subr.bf16.mxu0 0
      %2175 = vmatpush1.bf16.msra.mxu0 0
      %2176 = vmatprep.subr.bf16.mxu0 0
      %2177 = vmatpush1.bf16.msra.mxu0 0
      %2178 = vmatprep.subr.bf16.mxu0 0
      %2179 = vmatpush1.bf16.msra.mxu0 0
      %2180 = vmatprep.subr.bf16.mxu0 0
      %2181 = vmatpush1.bf16.msra.mxu0 0
      %2182 = vmatprep.subr.bf16.mxu0 0
      %2183 = vmatpush1.bf16.msra.mxu0 0
      %2184 = vmatprep.subr.bf16.mxu0 0
      %2185 = vmatpush1.bf16.msra.mxu0 0
      %2186 = vmatprep.mubr.bf16.mxu0 0
      %2187 = vmatmul.mubr.bf16.gmra.mrb[0].mxu0 %v2149
      %v2188 = vpop.f32.mrb[0].mxu0
      %v2189 = vadd.f32 0.0, %v2188
      %v2190 = vpop.f32.mrb[0].mxu0
      %v2191 = vpop.f32.mrb[0].mxu0
      %v2192 = vpop.f32.mrb[0].mxu0
      %2193 = vdwg.mxu0
      %2194 = vrot.lane.b32.xlu0 %v1797, 64
      %v2195 = vpop.permute.xlu0 %2194
      %v2197 = vsel %vm834, %v2049, 0
      %v2200 = vsel %vm1091, %v2195, 0
      %2202 = vmatprep.subr.bf16.mxu0 0
      %2203 = vmatpush1.bf16.msra.mxu0 %v2200
      %2204 = vmatprep.subr.bf16.mxu0 0
      %2205 = vmatpush1.bf16.msra.mxu0 0
      %2206 = vmatprep.subr.bf16.mxu0 0
      %2207 = vmatpush1.bf16.msra.mxu0 0
      %2208 = vmatprep.subr.bf16.mxu0 0
      %2209 = vmatpush1.bf16.msra.mxu0 0
      %2210 = vmatprep.subr.bf16.mxu0 0
      %2211 = vmatpush1.bf16.msra.mxu0 0
      %2212 = vmatprep.subr.bf16.mxu0 0
      %2213 = vmatpush1.bf16.msra.mxu0 0
      %2214 = vmatprep.subr.bf16.mxu0 0
      %2215 = vmatpush1.bf16.msra.mxu0 0
      %2216 = vmatprep.subr.bf16.mxu0 0
      %2217 = vmatpush1.bf16.msra.mxu0 0
      %2218 = vmatprep.subr.bf16.mxu0 0
      %2219 = vmatpush1.bf16.msra.mxu0 0
      %2220 = vmatprep.subr.bf16.mxu0 0
      %2221 = vmatpush1.bf16.msra.mxu0 0
      %2222 = vmatprep.subr.bf16.mxu0 0
      %2223 = vmatpush1.bf16.msra.mxu0 0
      %2224 = vmatprep.subr.bf16.mxu0 0
      %2225 = vmatpush1.bf16.msra.mxu0 0
      %2226 = vmatprep.subr.bf16.mxu0 0
      %2227 = vmatpush1.bf16.msra.mxu0 0
      %2228 = vmatprep.subr.bf16.mxu0 0
      %2229 = vmatpush1.bf16.msra.mxu0 0
      %2230 = vmatprep.subr.bf16.mxu0 0
      %2231 = vmatpush1.bf16.msra.mxu0 0
      %2232 = vmatprep.subr.bf16.mxu0 0
      %2233 = vmatpush1.bf16.msra.mxu0 0
      %2234 = vmatprep.mubr.bf16.mxu0 0
      %2235 = vmatmul.mubr.bf16.gmra.mrb[0].mxu0 %v2197
      %v2236 = vpop.f32.mrb[0].mxu0
      %v2237 = vadd.f32 0.0, %v2236
      %v2238 = vpop.f32.mrb[0].mxu0
      %v2239 = vpop.f32.mrb[0].mxu0
      %v2240 = vpop.f32.mrb[0].mxu0
      %2241 = vdwg.mxu0
      %v2242 = vpack.c.bf16 %v2093, %v2093
      %v2243 = vpack.c.bf16 %v2141, %v2141
      %v2244 = vpack.c.bf16 %v2189, %v2189
      %v2245 = vpack.c.bf16 %v2237, %v2237
      %s2246 = scalar_lea.vmem %s7, 16
      %v2247 = vld [vmem:[%s2246] sm:$0xf]
      %v2248 = vld [vmem:[%s2246 + $0x4] sm:$0xf]
      %v2249 = vld [vmem:[%s2246 + $0x8] sm:$0xf]
      %v2250 = vld [vmem:[%s2246 + $0xc] sm:$0xf]
      %v2252 = vsel %vm834, %v2242, 0
      %v2255 = vsel %vm1091, %v2247, 0
      %2257 = vmatprep.subr.bf16.mxu0 0
      %2258 = vmatpush1.bf16.msra.mxu0 %v2255
      %2259 = vmatprep.subr.bf16.mxu0 0
      %2260 = vmatpush1.bf16.msra.mxu0 0
      %2261 = vmatprep.subr.bf16.mxu0 0
      %2262 = vmatpush1.bf16.msra.mxu0 0
      %2263 = vmatprep.subr.bf16.mxu0 0
      %2264 = vmatpush1.bf16.msra.mxu0 0
      %2265 = vmatprep.subr.bf16.mxu0 0
      %2266 = vmatpush1.bf16.msra.mxu0 0
      %2267 = vmatprep.subr.bf16.mxu0 0
      %2268 = vmatpush1.bf16.msra.mxu0 0
      %2269 = vmatprep.subr.bf16.mxu0 0
      %2270 = vmatpush1.bf16.msra.mxu0 0
      %2271 = vmatprep.subr.bf16.mxu0 0
      %2272 = vmatpush1.bf16.msra.mxu0 0
      %2273 = vmatprep.subr.bf16.mxu0 0
      %2274 = vmatpush1.bf16.msra.mxu0 0
      %2275 = vmatprep.subr.bf16.mxu0 0
      %2276 = vmatpush1.bf16.msra.mxu0 0
      %2277 = vmatprep.subr.bf16.mxu0 0
      %2278 = vmatpush1.bf16.msra.mxu0 0
      %2279 = vmatprep.subr.bf16.mxu0 0
      %2280 = vmatpush1.bf16.msra.mxu0 0
      %2281 = vmatprep.subr.bf16.mxu0 0
      %2282 = vmatpush1.bf16.msra.mxu0 0
      %2283 = vmatprep.subr.bf16.mxu0 0
      %2284 = vmatpush1.bf16.msra.mxu0 0
      %2285 = vmatprep.subr.bf16.mxu0 0
      %2286 = vmatpush1.bf16.msra.mxu0 0
      %2287 = vmatprep.subr.bf16.mxu0 0
      %2288 = vmatpush1.bf16.msra.mxu0 0
      %2289 = vmatprep.mubr.bf16.mxu0 0
      %2290 = vmatmul.mubr.bf16.gmra.mrb[0].mxu0 %v2252
      %v2291 = vpop.f32.mrb[0].mxu0
      %v2292 = vadd.f32 0.0, %v2291
      %v2293 = vpop.f32.mrb[0].mxu0
      %v2294 = vpop.f32.mrb[0].mxu0
      %v2295 = vpop.f32.mrb[0].mxu0
      %2296 = vdwg.mxu0
      %v2298 = vsel %vm834, %v2243, 0
      %v2301 = vsel %vm1091, %v2248, 0
      %2303 = vmatprep.subr.bf16.mxu0 0
      %2304 = vmatpush1.bf16.msra.mxu0 %v2301
      %2305 = vmatprep.subr.bf16.mxu0 0
      %2306 = vmatpush1.bf16.msra.mxu0 0
      %2307 = vmatprep.subr.bf16.mxu0 0
      %2308 = vmatpush1.bf16.msra.mxu0 0
      %2309 = vmatprep.subr.bf16.mxu0 0
      %2310 = vmatpush1.bf16.msra.mxu0 0
      %2311 = vmatprep.subr.bf16.mxu0 0
      %2312 = vmatpush1.bf16.msra.mxu0 0
      %2313 = vmatprep.subr.bf16.mxu0 0
      %2314 = vmatpush1.bf16.msra.mxu0 0
      %2315 = vmatprep.subr.bf16.mxu0 0
      %2316 = vmatpush1.bf16.msra.mxu0 0
      %2317 = vmatprep.subr.bf16.mxu0 0
      %2318 = vmatpush1.bf16.msra.mxu0 0
      %2319 = vmatprep.subr.bf16.mxu0 0
      %2320 = vmatpush1.bf16.msra.mxu0 0
      %2321 = vmatprep.subr.bf16.mxu0 0
      %2322 = vmatpush1.bf16.msra.mxu0 0
      %2323 = vmatprep.subr.bf16.mxu0 0
      %2324 = vmatpush1.bf16.msra.mxu0 0
      %2325 = vmatprep.subr.bf16.mxu0 0
      %2326 = vmatpush1.bf16.msra.mxu0 0
      %2327 = vmatprep.subr.bf16.mxu0 0
      %2328 = vmatpush1.bf16.msra.mxu0 0
      %2329 = vmatprep.subr.bf16.mxu0 0
      %2330 = vmatpush1.bf16.msra.mxu0 0
      %2331 = vmatprep.subr.bf16.mxu0 0
      %2332 = vmatpush1.bf16.msra.mxu0 0
      %2333 = vmatprep.subr.bf16.mxu0 0
      %2334 = vmatpush1.bf16.msra.mxu0 0
      %2335 = vmatprep.mubr.bf16.mxu0 0
      %2336 = vmatmul.mubr.bf16.gmra.mrb[0].mxu0 %v2298
      %v2337 = vpop.f32.mrb[0].mxu0
      %v2338 = vadd.f32 0.0, %v2337
      %v2339 = vpop.f32.mrb[0].mxu0
      %v2340 = vpop.f32.mrb[0].mxu0
      %v2341 = vpop.f32.mrb[0].mxu0
      %2342 = vdwg.mxu0
      %v2344 = vsel %vm834, %v2244, 0
      %v2347 = vsel %vm1091, %v2249, 0
      %2349 = vmatprep.subr.bf16.mxu0 0
      %2350 = vmatpush1.bf16.msra.mxu0 %v2347
      %2351 = vmatprep.subr.bf16.mxu0 0
      %2352 = vmatpush1.bf16.msra.mxu0 0
      %2353 = vmatprep.subr.bf16.mxu0 0
      %2354 = vmatpush1.bf16.msra.mxu0 0
      %2355 = vmatprep.subr.bf16.mxu0 0
      %2356 = vmatpush1.bf16.msra.mxu0 0
      %2357 = vmatprep.subr.bf16.mxu0 0
      %2358 = vmatpush1.bf16.msra.mxu0 0
      %2359 = vmatprep.subr.bf16.mxu0 0
      %2360 = vmatpush1.bf16.msra.mxu0 0
      %2361 = vmatprep.subr.bf16.mxu0 0
      %2362 = vmatpush1.bf16.msra.mxu0 0
      %2363 = vmatprep.subr.bf16.mxu0 0
      %2364 = vmatpush1.bf16.msra.mxu0 0
      %2365 = vmatprep.subr.bf16.mxu0 0
      %2366 = vmatpush1.bf16.msra.mxu0 0
      %2367 = vmatprep.subr.bf16.mxu0 0
      %2368 = vmatpush1.bf16.msra.mxu0 0
      %2369 = vmatprep.subr.bf16.mxu0 0
      %2370 = vmatpush1.bf16.msra.mxu0 0
      %2371 = vmatprep.subr.bf16.mxu0 0
      %2372 = vmatpush1.bf16.msra.mxu0 0
      %2373 = vmatprep.subr.bf16.mxu0 0
      %2374 = vmatpush1.bf16.msra.mxu0 0
      %2375 = vmatprep.subr.bf16.mxu0 0
      %2376 = vmatpush1.bf16.msra.mxu0 0
      %2377 = vmatprep.subr.bf16.mxu0 0
      %2378 = vmatpush1.bf16.msra.mxu0 0
      %2379 = vmatprep.subr.bf16.mxu0 0
      %2380 = vmatpush1.bf16.msra.mxu0 0
      %2381 = vmatprep.mubr.bf16.mxu0 0
      %2382 = vmatmul.mubr.bf16.gmra.mrb[0].mxu0 %v2344
      %v2383 = vpop.f32.mrb[0].mxu0
      %v2384 = vadd.f32 0.0, %v2383
      %v2385 = vpop.f32.mrb[0].mxu0
      %v2386 = vpop.f32.mrb[0].mxu0
      %v2387 = vpop.f32.mrb[0].mxu0
      %2388 = vdwg.mxu0
      %v2390 = vsel %vm834, %v2245, 0
      %v2393 = vsel %vm1091, %v2250, 0
      %2395 = vmatprep.subr.bf16.mxu0 0
      %2396 = vmatpush1.bf16.msra.mxu0 %v2393
      %2397 = vmatprep.subr.bf16.mxu0 0
      %2398 = vmatpush1.bf16.msra.mxu0 0
      %2399 = vmatprep.subr.bf16.mxu0 0
      %2400 = vmatpush1.bf16.msra.mxu0 0
      %2401 = vmatprep.subr.bf16.mxu0 0
      %2402 = vmatpush1.bf16.msra.mxu0 0
      %2403 = vmatprep.subr.bf16.mxu0 0
      %2404 = vmatpush1.bf16.msra.mxu0 0
      %2405 = vmatprep.subr.bf16.mxu0 0
      %2406 = vmatpush1.bf16.msra.mxu0 0
      %2407 = vmatprep.subr.bf16.mxu0 0
      %2408 = vmatpush1.bf16.msra.mxu0 0
      %2409 = vmatprep.subr.bf16.mxu0 0
      %2410 = vmatpush1.bf16.msra.mxu0 0
      %2411 = vmatprep.subr.bf16.mxu0 0
      %2412 = vmatpush1.bf16.msra.mxu0 0
      %2413 = vmatprep.subr.bf16.mxu0 0
      %2414 = vmatpush1.bf16.msra.mxu0 0
      %2415 = vmatprep.subr.bf16.mxu0 0
      %2416 = vmatpush1.bf16.msra.mxu0 0
      %2417 = vmatprep.subr.bf16.mxu0 0
      %2418 = vmatpush1.bf16.msra.mxu0 0
      %2419 = vmatprep.subr.bf16.mxu0 0
      %2420 = vmatpush1.bf16.msra.mxu0 0
      %2421 = vmatprep.subr.bf16.mxu0 0
      %2422 = vmatpush1.bf16.msra.mxu0 0
      %2423 = vmatprep.subr.bf16.mxu0 0
      %2424 = vmatpush1.bf16.msra.mxu0 0
      %2425 = vmatprep.subr.bf16.mxu0 0
      %2426 = vmatpush1.bf16.msra.mxu0 0
      %2427 = vmatprep.mubr.bf16.mxu0 0
      %2428 = vmatmul.mubr.bf16.gmra.mrb[0].mxu0 %v2390
      %v2429 = vpop.f32.mrb[0].mxu0
      %v2430 = vadd.f32 0.0, %v2429
      %v2431 = vpop.f32.mrb[0].mxu0
      %v2432 = vpop.f32.mrb[0].mxu0
      %v2433 = vpop.f32.mrb[0].mxu0
      %2434 = vdwg.mxu0
      %v2435 = vsel %vm714, %v2292, 0.0
      %v2436 = vsel %vm714, %v2338, 0.0
      %v2437 = vadd.f32 %v2435, %v2436
      %v2438 = vsel %vm714, %v2384, 0.0
      %v2439 = vadd.f32 %v2437, %v2438
      %v2440 = vsel %vm714, %v2430, 0.0
      %v2441 = vadd.f32 %v2439, %v2440
      %v2442 = vadd.f32 %v1676, %v2441
      %s2443 = scalar_lea.vmem %s8, 1
      %v2444 = vld [vmem:[%s2443] sm:$0x1]
      %v2446 = vlaneseq
      %v2447 = vshrl.u32 %v2446, 7
      %v2448 = vsub.s32 0, %v2447
      %v2449 = vrot.slane %v2444, %v2448
      %v2451 = vadd.f32 %v2442, %v2449
      %s2452 = scalar_lea.vmem %s15, 1
      %v2453 = vld [vmem:[%s2452] sm:$0x1]
      %s2454 = scalar_lea.vmem %s16, 1
      %v2455 = vld [vmem:[%s2454] sm:$0x1]
      %v2456 = vsel %vm714, %v2451, 0.0
      %2457 = vadd.xlane.f32.xlu0 %v2456
      %v2458 = vpop.xlane.xlu0 %2457
      %v2459 = vmul.f32 %v2458, %v718
      %v2460 = vsub.f32 %v2451, %v2459
      %v2461 = vmul.f32 %v2460, %v2460
      %v2462 = vsel %vm714, %v2461, 0.0
      %2463 = vadd.xlane.f32.xlu0 %v2462
      %v2464 = vpop.xlane.xlu0 %2463
      %v2465 = vmul.f32 %v2464, 0.032258064
      %v2466 = vrsqrt.pop %v2465
      %v2467 = vmul.f32 %v2465, %v2466
      %vm2468 = vcmp.eq.f32.partialorder %v2465, inf
      %v2469 = vsel %vm2468, %v2465, %v2467
      %vm2470 = vcmp.eq.f32.partialorder %v2465, 0.0
      %v2471 = vand.u32 %v2465, 2147483648
      %v2472 = vsel %vm2470, %v2471, %v2469
      %v2473 = vadd.f32 %v2472, 1e-06
      %v2474 = vrcp.pop %v2473
      %v2476 = vlaneseq
      %v2477 = vshrl.u32 %v2476, 7
      %v2478 = vsub.s32 0, %v2477
      %v2479 = vrot.slane %v2453, %v2478
      %v2481 = vmul.f32 %v2479, %v2460
      %v2482 = vmul.f32 %v2481, %v2474
      %v2484 = vlaneseq
      %v2485 = vshrl.u32 %v2484, 7
      %v2486 = vsub.s32 0, %v2485
      %v2487 = vrot.slane %v2455, %v2486
      %v2489 = vadd.f32 %v2482, %v2487
      %v2490 = vpack.c.bf16 %v2489, %v2489
      %s2491 = scalar_lea.vmem %s9, 16
      %v2492 = vld [vmem:[%s2491] sm:$0xf]
      %v2493 = vld [vmem:[%s2491 + $0x4] sm:$0xf]
      %v2494 = vld [vmem:[%s2491 + $0x8] sm:$0xf]
      %v2495 = vld [vmem:[%s2491 + $0xc] sm:$0xf]
      %s2496 = scalar_lea.vmem %s10, 1
      %v2497 = vld [vmem:[%s2496] sm:$0x1]
      %v2499 = vlaneseq
      %v2500 = vshrl.u32 %v2499, 7
      %v2501 = vsub.s32 0, %v2500
      %v2502 = vrot.slane %v2497, %v2501
      %v2508 = vunpack.c.l.b16 %v2492
      %v2509 = vunpack.c.l.b16 %v2493
      %v2510 = vunpack.c.l.b16 %v2494
      %v2511 = vunpack.c.l.b16 %v2495
      %v2512 = vpack.c.b16 %v2509, %v2508
      %v2513 = vpack.c.b16 %v2511, %v2510
      %v2517 = vsel %vm714, %v2490, 0
      %2519 = vmatprep.subr.bf16.mxu0 0
      %2520 = vmatpush1.bf16.msra.mxu0 %v2512
      %2521 = vmatprep.subr.bf16.mxu0 0
      %2522 = vmatpush1.bf16.msra.mxu0 %v2513
      %2523 = vmatprep.subr.bf16.mxu0 0
      %2524 = vmatpush1.bf16.msra.mxu0 0
      %2525 = vmatprep.subr.bf16.mxu0 0
      %2526 = vmatpush1.bf16.msra.mxu0 0
      %2527 = vmatprep.subr.bf16.mxu0 0
      %2528 = vmatpush1.bf16.msra.mxu0 0
      %2529 = vmatprep.subr.bf16.mxu0 0
      %2530 = vmatpush1.bf16.msra.mxu0 0
      %2531 = vmatprep.subr.bf16.mxu0 0
      %2532 = vmatpush1.bf16.msra.mxu0 0
      %2533 = vmatprep.subr.bf16.mxu0 0
      %2534 = vmatpush1.bf16.msra.mxu0 0
      %2535 = vmatprep.subr.bf16.mxu0 0
      %2536 = vmatpush1.bf16.msra.mxu0 0
      %2537 = vmatprep.subr.bf16.mxu0 0
      %2538 = vmatpush1.bf16.msra.mxu0 0
      %2539 = vmatprep.subr.bf16.mxu0 0
      %2540 = vmatpush1.bf16.msra.mxu0 0
      %2541 = vmatprep.subr.bf16.mxu0 0
      %2542 = vmatpush1.bf16.msra.mxu0 0
      %2543 = vmatprep.subr.bf16.mxu0 0
      %2544 = vmatpush1.bf16.msra.mxu0 0
      %2545 = vmatprep.subr.bf16.mxu0 0
      %2546 = vmatpush1.bf16.msra.mxu0 0
      %2547 = vmatprep.subr.bf16.mxu0 0
      %2548 = vmatpush1.bf16.msra.mxu0 0
      %2549 = vmatprep.subr.bf16.mxu0 0
      %2550 = vmatpush1.bf16.msra.mxu0 0
      %2551 = vmatprep.mubr.bf16.mxu0 0
      %2552 = vmatmul.mubr.bf16.gmra.mrb[0].mxu0 %v2517
      %v2553 = vpop.f32.mrb[0].mxu0
      %v2554 = vadd.f32 %v2502, %v2553
      %v2555 = vpop.f32.mrb[0].mxu0
      %v2556 = vpop.f32.mrb[0].mxu0
      %v2557 = vpop.f32.mrb[0].mxu0
      %2558 = vdwg.mxu0
      %v2559 = vmax.f32 %v2554, 0.0
      %v2560 = vpack.c.bf16 %v2559, %v2559
      %s2561 = scalar_lea.vmem %s11, 32
      %v2562 = vld [vmem:[%s2561] sm:$0xf]
      %v2563 = vld [vmem:[%s2561 + $0x4] sm:$0xf]
      %v2564 = vld [vmem:[%s2561 + $0x8] sm:$0xf]
      %v2565 = vld [vmem:[%s2561 + $0xc] sm:$0xf]
      %v2566 = vld [vmem:[%s2561 + $0x10] sm:$0xf]
      %v2567 = vld [vmem:[%s2561 + $0x14] sm:$0xf]
      %v2568 = vld [vmem:[%s2561 + $0x18] sm:$0xf]
      %v2569 = vld [vmem:[%s2561 + $0x1c] sm:$0xf]
      %v2578 = vunpack.c.l.b16 %v2562
      %v2579 = vunpack.c.l.b16 %v2563
      %v2580 = vunpack.c.l.b16 %v2564
      %v2581 = vunpack.c.l.b16 %v2565
      %v2582 = vunpack.c.l.b16 %v2566
      %v2583 = vunpack.c.l.b16 %v2567
      %v2584 = vunpack.c.l.b16 %v2568
      %v2585 = vunpack.c.l.b16 %v2569
      %v2586 = vpack.c.b16 %v2579, %v2578
      %v2587 = vpack.c.b16 %v2581, %v2580
      %v2588 = vpack.c.b16 %v2583, %v2582
      %v2589 = vpack.c.b16 %v2585, %v2584
      %v2595 = vsel %vm1624, %v2560, 0
      %2597 = vmatprep.subr.bf16.mxu0 0
      %2598 = vmatpush1.bf16.msra.mxu0 %v2586
      %2599 = vmatprep.subr.bf16.mxu0 0
      %2600 = vmatpush1.bf16.msra.mxu0 %v2587
      %2601 = vmatprep.subr.bf16.mxu0 0
      %2602 = vmatpush1.bf16.msra.mxu0 %v2588
      %2603 = vmatprep.subr.bf16.mxu0 0
      %2604 = vmatpush1.bf16.msra.mxu0 %v2589
      %2605 = vmatprep.subr.bf16.mxu0 0
      %2606 = vmatpush1.bf16.msra.mxu0 0
      %2607 = vmatprep.subr.bf16.mxu0 0
      %2608 = vmatpush1.bf16.msra.mxu0 0
      %2609 = vmatprep.subr.bf16.mxu0 0
      %2610 = vmatpush1.bf16.msra.mxu0 0
      %2611 = vmatprep.subr.bf16.mxu0 0
      %2612 = vmatpush1.bf16.msra.mxu0 0
      %2613 = vmatprep.subr.bf16.mxu0 0
      %2614 = vmatpush1.bf16.msra.mxu0 0
      %2615 = vmatprep.subr.bf16.mxu0 0
      %2616 = vmatpush1.bf16.msra.mxu0 0
      %2617 = vmatprep.subr.bf16.mxu0 0
      %2618 = vmatpush1.bf16.msra.mxu0 0
      %2619 = vmatprep.subr.bf16.mxu0 0
      %2620 = vmatpush1.bf16.msra.mxu0 0
      %2621 = vmatprep.subr.bf16.mxu0 0
      %2622 = vmatpush1.bf16.msra.mxu0 0
      %2623 = vmatprep.subr.bf16.mxu0 0
      %2624 = vmatpush1.bf16.msra.mxu0 0
      %2625 = vmatprep.subr.bf16.mxu0 0
      %2626 = vmatpush1.bf16.msra.mxu0 0
      %2627 = vmatprep.subr.bf16.mxu0 0
      %2628 = vmatpush1.bf16.msra.mxu0 0
      %2629 = vmatprep.mubr.bf16.mxu0 0
      %2630 = vmatmul.mubr.bf16.gmra.mrb[0].mxu0 %v2595
      %v2631 = vpop.f32.mrb[0].mxu0
      %v2632 = vadd.f32 0.0, %v2631
      %v2633 = vpop.f32.mrb[0].mxu0
      %v2634 = vpop.f32.mrb[0].mxu0
      %v2635 = vpop.f32.mrb[0].mxu0
      %2636 = vdwg.mxu0
      %v2637 = vadd.f32 %v2451, %v2632
      %s2638 = scalar_lea.vmem %s12, 1
      %v2639 = vld [vmem:[%s2638] sm:$0x1]
      %v2641 = vlaneseq
      %v2642 = vshrl.u32 %v2641, 7
      %v2643 = vsub.s32 0, %v2642
      %v2644 = vrot.slane %v2639, %v2643
      %v2646 = vadd.f32 %v2637, %v2644
      %v2647 = vld [vmem:[%s17] sm:$0x1]
      %v2648 = vld [vmem:[%s18] sm:$0x1]
      %v2649 = vsel %vm714, %v2646, 0.0
      %2650 = vadd.xlane.f32.xlu0 %v2649
      %v2651 = vpop.xlane.xlu0 %2650
      %v2652 = vmul.f32 %v2651, %v718
      %v2653 = vsub.f32 %v2646, %v2652
      %v2654 = vmul.f32 %v2653, %v2653
      %v2655 = vsel %vm714, %v2654, 0.0
      %2656 = vadd.xlane.f32.xlu0 %v2655
      %v2657 = vpop.xlane.xlu0 %2656
      %v2658 = vmul.f32 %v2657, 0.032258064
      %v2659 = vrsqrt.pop %v2658
      %v2660 = vmul.f32 %v2658, %v2659
      %vm2661 = vcmp.eq.f32.partialorder %v2658, inf
      %v2662 = vsel %vm2661, %v2658, %v2660
      %vm2663 = vcmp.eq.f32.partialorder %v2658, 0.0
      %v2664 = vand.u32 %v2658, 2147483648
      %v2665 = vsel %vm2663, %v2664, %v2662
      %v2666 = vadd.f32 %v2665, 1e-06
      %v2667 = vrcp.pop %v2666
      %v2669 = vlaneseq
      %v2670 = vshrl.u32 %v2669, 7
      %v2671 = vsub.s32 0, %v2670
      %v2672 = vrot.slane %v2647, %v2671
      %v2674 = vmul.f32 %v2672, %v2653
      %v2675 = vmul.f32 %v2674, %v2667
      %v2677 = vlaneseq
      %v2678 = vshrl.u32 %v2677, 7
      %v2679 = vsub.s32 0, %v2678
      %v2680 = vrot.slane %v2648, %v2679
      %v2682 = vadd.f32 %v2675, %v2680
      %vm2683 = vcmp.eq.s32.totalorder %v612, 1
      %v2684 = vsel %vm2683, %v2682, 0.0
      %2685 = vst.msk [vmem:[%s594] sm:$0xff] %vm714, %v2684
      %p2686 = scmp.lt.s32.totalorder %s36, 1
      %s2687 = scalar_select %p2686, %s36, 1
      %s2688 = smul.addr %s2687, 8
      %s2689 = scalar_lea.vmem %s19, %s2688
      // Predicated region
      $region93: #{_encoder_forward.1} parent=91 // pred_check
        %p2690 = pneg %p442
      $region94: #{_encoder_forward.1} parent=91 // pred_check_branch
        %2692 = sbr.rel (%p2690) target = $region96
      $region95: #{_encoder_forward.1} parent=91 // pred_region
        _
      $region96: #{_encoder_forward.1} parent=91 // pred_fallthru
        _
    $region92: #{_encoder_forward.1} parent=5 // pred_fallthru
      _
    %p2693 = scmp.le.s32.totalorder 2, %s31
    // Predicated region
    $region97: #{_encoder_forward.1} parent=5 // pred_check
      %p2694 = pneg %p2693
    $region98: #{_encoder_forward.1} parent=5 // pred_check_branch
      %2696 = sbr.rel (%p2694) target = $region100
    $region99: #{_encoder_forward.1} parent=5 // pred_region
      %s2697 = ssub.s32 %s31, 2
      // Predicated region
      $region101: #{_encoder_forward.1} parent=99 // pred_check
        %p2698 = pneg %p448
      $region102: #{_encoder_forward.1} parent=99 // pred_check_branch
        %2700 = sbr.rel (%p2698) target = $region104
      $region103: #{_encoder_forward.1} parent=99 // pred_region
        %p2701 = scmp.lt.s32.totalorder %s37, 1
        %s2702 = scalar_select %p2701, %s37, 1
        %s2703 = smul.addr %s2702, 8
        %s2704 = scalar_lea.vmem %s19, %s2703
      $region104: #{_encoder_forward.1} parent=99 // pred_fallthru
        _
    $region100: #{_encoder_forward.1} parent=5 // pred_fallthru
      _
  $region6: #{_encoder_forward.1} parent=0 // loop_footer
    %s35 = sadd.s32 1, %s31
  $region7: #{_encoder_forward.1} parent=0 // loop_footer_branch
    %30 = sbr.rel target = $region3
  $region8: #{_encoder_forward.1} parent=0 // loop_exit
    _

</llo_original>
